<compile_context>
chip_gen: v6e
topology: v6e:2x2x1
jax: 0.10.0
libtpu: 0.0.40
codegen_flags: <defaults>
</compile_context>

<pallas_src>
import numpy as np
import jax
import jax.numpy as jnp
from jax.experimental import pallas as pl
from jax.experimental.pallas import tpu as pltpu

LANES = 128


def _round_up(v, m):
    return (v + m - 1) // m * m


def _pick_batch_block(N, Ho, Wo):
    """Images per grid step: fill the MXU rows (M = NB*Ho*Wo >= 256) but keep >= 2
    grid steps when the batch allows it, so v7x's two TensorCores both get work."""
    best = 1
    for nb in range(1, N + 1):
        if N % nb:
            continue
        if N >= 2 and N // nb < 2:
            break
        best = nb
        if nb * Ho * Wo >= 256:
            break
    return best


def _make_basic_block_kernel(NB, H, W, Cin, Pp, Ho, Wo, stride):
    """Kernel for one batch-block of NB images.

    Ref shapes:
      x_ref:   stride==1 -> (NB, H, W, Cin)      bf16 NHWC
               stride==2 -> (NB, Ho, Wo, 4*Cin)  bf16, 2x2 space-to-depth NHWC
      w1_ref:  (9, Cin, Pp) bf16   BN1 scale folded, Cout zero-padded to Pp
      b1_ref:  (1, Pp)      f32
      w2_ref:  (9, Pp, Pp)  bf16   BN2 scale folded, in/out channels zero-padded
      b2_ref:  (1, Pp)      f32
      wsc_ref: (Cin, Pp)    bf16   1x1 projection (or identity matrix)
      bsc_ref: (1, Pp)      f32
      o_ref:   (NB, Ho*Wo, Pp)     lane-dense output tile
      xp1_ref: VMEM padded conv1 input scratch
      xp2_ref: VMEM (NB, Ho+2, Wo+2, Pp) padded conv2 input scratch
    """
    M = NB * Ho * Wo

    # conv1 tap table: (row_off, col_off, channel_off) into the padded scratch --
    # unit-stride slices only.  For stride==2 the wrapper did a 2x2 space-to-depth,
    # so each tap just selects one of the 4 phases.
    if stride == 1:
        taps1 = [(kh, kw, 0) for kh in range(3) for kw in range(3)]
        Hi1, Wi1 = H, W
    else:
        taps1 = []
        for kh in range(3):
            for kw in range(3):
                rh = 0 if kh == 0 else 1
                rw = 0 if kw == 0 else 1
                dy = 0 if kh == 1 else 1
                dx = 0 if kw == 1 else 1
                taps1.append((rh, rw, (dy * 2 + dx) * Cin))
        Hi1, Wi1 = Ho, Wo
    taps2 = [(kh, kw, 0) for kh in range(3) for kw in range(3)]

    def zero_halo(ref, hi, wi):
        # Interior rows 1..hi / cols 1..wi are rewritten every step; only the halo
        # needs zeros (O(perimeter) stores instead of re-zeroing the whole scratch).
        nb, Hp, Wp, C = ref.shape
        ref[:, 0:1, :, :] = jnp.zeros((nb, 1, Wp, C), ref.dtype)
        if Hp > hi + 1:
            ref[:, hi + 1:, :, :] = jnp.zeros((nb, Hp - hi - 1, Wp, C), ref.dtype)
        ref[:, :, 0:1, :] = jnp.zeros((nb, Hp, 1, C), ref.dtype)
        if Wp > wi + 1:
            ref[:, :, wi + 1:, :] = jnp.zeros((nb, Hp, Wp - wi - 1, C), ref.dtype)

    def conv3x3(xp_ref, w_ref, C, taps):
        # 9 accumulating (M, C) x (C, Pp) MXU matmuls with f32 accumulation.
        acc = None
        for t, (rh, rw, c0) in enumerate(taps):
            tap = xp_ref[:, rh:rh + Ho, rw:rw + Wo, c0:c0 + C].reshape(M, C)
            d = jnp.dot(tap, w_ref[t], preferred_element_type=jnp.float32)
            acc = d if acc is None else acc + d
        return acc

    def kernel(x_ref, w1_ref, b1_ref, w2_ref, b2_ref, wsc_ref, bsc_ref,
               o_ref, xp1_ref, xp2_ref):
        zero_halo(xp1_ref, Hi1, Wi1)
        zero_halo(xp2_ref, Ho, Wo)

        xb = x_ref[...]                                        # bf16 block
        xp1_ref[:, 1:1 + Hi1, 1:1 + Wi1, :] = xb

        # conv1 + folded-BN1 + relu (f32 epilogue, Pp-lane dense)
        out1 = jnp.maximum(conv3x3(xp1_ref, w1_ref, Cin, taps1) + b1_ref[...], 0.0)

        # conv2 + folded-BN2 (intermediate stays on-chip, recast to bf16 for the MXU)
        xp2_ref[:, 1:1 + Ho, 1:1 + Wo, :] = (
            out1.reshape(NB, Ho, Wo, Pp).astype(xp2_ref.dtype))
        out2 = conv3x3(xp2_ref, w2_ref, Pp, taps2) + b2_ref[...]

        # shortcut: 1x1 projection, or identity expressed as an exact identity matmul
        # (keeps one lane-dense code path, no pad/concat in the epilogue).
        if stride == 1:
            win = xb                                           # (NB, H, W, Cin)
        else:
            win = xb[:, :, :, 0:Cin]                           # s2d phase (0,0) == x[::2, ::2]
        sc = jnp.dot(win.reshape(M, Cin), wsc_ref[...],
                     preferred_element_type=jnp.float32) + bsc_ref[...]

        out = jnp.maximum(out2 + sc, 0.0)
        o_ref[...] = out.reshape(NB, Ho * Wo, Pp).astype(o_ref.dtype)

    return kernel


def basic_block_forward(x_nchw, params, stride):
    """Pallas implementation of BasicBlock.forward (NCHW in, NCHW out)."""
    N, Cin, H, W = x_nchw.shape
    P = params["w1"].shape[-1]
    assert stride in (1, 2)
    Ho = (H + 2 - 3) // stride + 1
    Wo = (W + 2 - 3) // stride + 1
    has_proj = "w_sc" in params
    if not has_proj:
        assert stride == 1 and Cin == P, "identity shortcut needs stride=1 and Cin==planes"
    out_dtype = x_nchw.dtype

    Pp = _round_up(P, LANES)            # Cout padded to full 128-lane width
    NB = _pick_batch_block(N, Ho, Wo)

    # NHWC bf16 activations; stride-2 inputs get a 2x2 space-to-depth so every conv
    # tap and the shortcut window are unit-stride slices inside the kernel.
    x = jnp.transpose(x_nchw, (0, 2, 3, 1)).astype(jnp.bfloat16)
    if stride == 2:
        assert H % 2 == 0 and W % 2 == 0
        x = x.reshape(N, Ho, 2, Wo, 2, Cin)
        x = jnp.transpose(x, (0, 1, 3, 2, 4, 5)).reshape(N, Ho, Wo, 4 * Cin)
        x_blk = (NB, Ho, Wo, 4 * Cin)
        xp1_shape = (NB, Ho + 1, Wo + 1, 4 * Cin)
    else:
        x_blk = (NB, H, W, Cin)
        xp1_shape = (NB, H + 2, W + 2, Cin)

    # Fold BN scales into the conv weights; zero-pad Cout (and conv2's Cin) to Pp.
    w1 = params["w1"] * params["s1"]
    w1m = jnp.pad(w1, ((0, 0), (0, 0), (0, 0), (0, Pp - P))
                  ).reshape(9, Cin, Pp).astype(jnp.bfloat16)
    b1 = jnp.pad(params["b1"], (0, Pp - P)).reshape(1, Pp).astype(jnp.float32)

    w2 = params["w2"] * params["s2"]
    w2m = jnp.pad(w2, ((0, 0), (0, 0), (0, Pp - P), (0, Pp - P))
                  ).reshape(9, Pp, Pp).astype(jnp.bfloat16)
    b2 = jnp.pad(params["b2"], (0, Pp - P)).reshape(1, Pp).astype(jnp.float32)

    if has_proj:
        wsc = (params["w_sc"] * params["s_sc"]).reshape(Cin, P)
        wscm = jnp.pad(wsc, ((0, 0), (0, Pp - P))).astype(jnp.bfloat16)
        bsc = jnp.pad(params["b_sc"], (0, Pp - P)).reshape(1, Pp).astype(jnp.float32)
    else:
        # identity shortcut as an exact bf16 identity matmul
        wscm = jnp.pad(jnp.eye(Cin, dtype=jnp.float32),
                       ((0, 0), (0, Pp - P))).astype(jnp.bfloat16)
        bsc = jnp.zeros((1, Pp), jnp.float32)

    kernel = _make_basic_block_kernel(NB, H, W, Cin, Pp, Ho, Wo, stride)

    in_specs = [
        pl.BlockSpec(x_blk, lambda n: (n, 0, 0, 0)),
        # TODO(synk): for real ResNet widths (P >= 256) add pipeline_mode=pl.Buffered(1)
        # on these constant-index weight specs (v7x VMEM budget).
        pl.BlockSpec((9, Cin, Pp), lambda n: (0, 0, 0)),
        pl.BlockSpec((1, Pp), lambda n: (0, 0)),
        pl.BlockSpec((9, Pp, Pp), lambda n: (0, 0, 0)),
        pl.BlockSpec((1, Pp), lambda n: (0, 0)),
        pl.BlockSpec((Cin, Pp), lambda n: (0, 0)),
        pl.BlockSpec((1, Pp), lambda n: (0, 0)),
    ]

    args = [x, w1m, b1, w2m, b2, wscm, bsc]
    flops = 2 * N * Ho * Wo * (9 * Cin + 9 * Pp + Cin) * Pp
    bytes_accessed = int(sum(int(np.prod(a.shape)) * a.dtype.itemsize for a in args)
                         + N * Ho * Wo * Pp * jnp.dtype(out_dtype).itemsize)

    out_flat = pl.pallas_call(
        kernel,
        out_shape=jax.ShapeDtypeStruct((N, Ho * Wo, Pp), out_dtype),
        grid=(N // NB,),
        in_specs=in_specs,
        out_specs=pl.BlockSpec((NB, Ho * Wo, Pp), lambda n: (n, 0, 0)),
        scratch_shapes=[
            pltpu.VMEM(xp1_shape, jnp.bfloat16),
            pltpu.VMEM((NB, Ho + 2, Wo + 2, Pp), jnp.bfloat16),
        ],
        compiler_params=pltpu.CompilerParams(
            dimension_semantics=("parallel",),
            vmem_limit_bytes=32 * 1024 * 1024,
        ),
        cost_estimate=pl.CostEstimate(flops=flops, transcendentals=0,
                                      bytes_accessed=bytes_accessed),
    )(*args)

    out = out_flat.reshape(N, Ho, Wo, Pp)[:, :, :, :P]
    return jnp.transpose(out, (0, 3, 1, 2))   # -> NCHW


# ------------------------- pure-JAX reference (mirrors the kernel's casts) ---------

def _ref_conv(x, w, stride, pad):
    return jax.lax.conv_general_dilated(
        x, w, window_strides=(stride, stride),
        padding=((pad, pad), (pad, pad)),
        dimension_numbers=("NHWC", "HWIO", "NHWC"),
        preferred_element_type=jnp.float32)


def ref_forward(x_nchw, params, stride):
    x = jnp.transpose(x_nchw, (0, 2, 3, 1)).astype(jnp.bfloat16)
    w1b = (params["w1"] * params["s1"]).astype(jnp.bfloat16)
    w2b = (params["w2"] * params["s2"]).astype(jnp.bfloat16)
    h = jnp.maximum(_ref_conv(x, w1b, stride, 1) + params["b1"], 0.0)
    h2 = _ref_conv(h.astype(jnp.bfloat16), w2b, 1, 1) + params["b2"]
    if "w_sc" in params:
        wscb = (params["w_sc"] * params["s_sc"]).astype(jnp.bfloat16)
        sc = _ref_conv(x, wscb, stride, 0) + params["b_sc"]
    else:
        sc = x.astype(jnp.float32)
    out = jnp.maximum(h2 + sc, 0.0)
    return jnp.transpose(out, (0, 3, 1, 2)).astype(x_nchw.dtype)


# ------------------------- parameter init -------------------------

def _fold_bn(gamma, beta, mean, var, eps=1e-5):
    scale = gamma / jnp.sqrt(var + eps)
    bias = beta - mean * scale
    return scale, bias


def init_params(key, in_planes, planes, stride):
    ks = jax.random.split(key, 16)
    p = {}

    # conv1: (planes, in_planes, 3, 3) OIHW -> HWIO
    w1 = jax.random.normal(ks[0], (planes, in_planes, 3, 3), jnp.float32) * 0.2
    p["w1"] = jnp.transpose(w1, (2, 3, 1, 0))
    g1 = jax.random.uniform(ks[1], (planes,), minval=0.5, maxval=1.5)
    b1 = jax.random.normal(ks[2], (planes,)) * 0.1
    m1 = jax.random.normal(ks[3], (planes,)) * 0.1
    v1 = jax.random.uniform(ks[4], (planes,), minval=0.5, maxval=1.5)
    p["s1"], p["b1"] = _fold_bn(g1, b1, m1, v1)

    # conv2: (planes, planes, 3, 3)
    w2 = jax.random.normal(ks[5], (planes, planes, 3, 3), jnp.float32) * 0.2
    p["w2"] = jnp.transpose(w2, (2, 3, 1, 0))
    g2 = jax.random.uniform(ks[6], (planes,), minval=0.5, maxval=1.5)
    b2 = jax.random.normal(ks[7], (planes,)) * 0.1
    m2 = jax.random.normal(ks[8], (planes,)) * 0.1
    v2 = jax.random.uniform(ks[9], (planes,), minval=0.5, maxval=1.5)
    p["s2"], p["b2"] = _fold_bn(g2, b2, m2, v2)

    if stride != 1 or in_planes != planes:
        wsc = jax.random.normal(ks[10], (planes, in_planes, 1, 1), jnp.float32) * 0.2
        p["w_sc"] = jnp.transpose(wsc, (2, 3, 1, 0))
        gs = jax.random.uniform(ks[11], (planes,), minval=0.5, maxval=1.5)
        bs = jax.random.normal(ks[12], (planes,)) * 0.1
        ms = jax.random.normal(ks[13], (planes,)) * 0.1
        vs = jax.random.uniform(ks[14], (planes,), minval=0.5, maxval=1.5)
        p["s_sc"], p["b_sc"] = _fold_bn(gs, bs, ms, vs)

    return p


if __name__ == "__main__":
    key = jax.random.PRNGKey(0)
    k1, k2, k3, k4 = jax.random.split(key, 4)

    # Case 1: downsampling block with 1x1 projection shortcut (stride=2, 4->8 planes).
    x1 = jax.random.normal(k1, (2, 4, 16, 16), jnp.float32)  # NCHW
    p1 = init_params(k2, 4, 8, 2)
    out1 = jax.block_until_ready(basic_block_forward(x1, p1, 2))
    ref1 = jax.block_until_ready(ref_forward(x1, p1, 2))
    assert out1.shape == (2, 8, 8, 8), out1.shape
    np.testing.assert_allclose(np.asarray(out1), np.asarray(ref1), rtol=2e-3, atol=2e-3)

    # Case 2: identity shortcut (stride=1, 8->8 planes).
    x2 = jax.random.normal(k3, (2, 8, 16, 16), jnp.float32)
    p2 = init_params(k4, 8, 8, 1)
    out2 = jax.block_until_ready(basic_block_forward(x2, p2, 1))
    ref2 = jax.block_until_ready(ref_forward(x2, p2, 1))
    assert out2.shape == (2, 8, 16, 16), out2.shape
    np.testing.assert_allclose(np.asarray(out2), np.asarray(ref2), rtol=2e-3, atol=2e-3)

    print("KERNEL_OK")
</pallas_src>

<mosaic_0001>
module attributes {stable_mosaic.version = 11 : i64} {
  func.func @kernel(%arg0: i32, %arg1: memref<1x8x8x16xbf16, #tpu.memory_space<vmem>>, %arg2: memref<9x4x128xbf16, #tpu.memory_space<vmem>>, %arg3: memref<1x128xf32, #tpu.memory_space<vmem>>, %arg4: memref<9x128x128xbf16, #tpu.memory_space<vmem>>, %arg5: memref<1x128xf32, #tpu.memory_space<vmem>>, %arg6: memref<4x128xbf16, #tpu.memory_space<vmem>>, %arg7: memref<1x128xf32, #tpu.memory_space<vmem>>, %arg8: memref<1x64x128xf32, #tpu.memory_space<vmem>>, %arg9: memref<1x9x9x16xbf16, #tpu.memory_space<vmem>>, %arg10: memref<1x10x10x128xbf16, #tpu.memory_space<vmem>>) attributes {dimension_semantics = [#tpu.dimension_semantics<parallel>], iteration_bounds = array<i64: 2>, scalar_prefetch = 0 : i64, scratch_operands = 2 : i64, tpu.core_type = #tpu.core_type<tc>, window_params = [{transform_indices = @transform_0, window_bounds = array<i64: 1, 8, 8, 16>}, {pipeline_mode = #tpu.pipeline_mode<synchronous>, transform_indices = @transform_1, window_bounds = array<i64: 9, 4, 128>}, {pipeline_mode = #tpu.pipeline_mode<synchronous>, transform_indices = @transform_2, window_bounds = array<i64: 1, 128>}, {pipeline_mode = #tpu.pipeline_mode<synchronous>, transform_indices = @transform_3, window_bounds = array<i64: 9, 128, 128>}, {pipeline_mode = #tpu.pipeline_mode<synchronous>, transform_indices = @transform_4, window_bounds = array<i64: 1, 128>}, {pipeline_mode = #tpu.pipeline_mode<synchronous>, transform_indices = @transform_5, window_bounds = array<i64: 4, 128>}, {pipeline_mode = #tpu.pipeline_mode<synchronous>, transform_indices = @transform_6, window_bounds = array<i64: 1, 128>}, {transform_indices = @transform_7, window_bounds = array<i64: 1, 64, 128>}]} {
    %cst = arith.constant 0.000000e+00 : bf16
    %0 = vector.broadcast %cst : bf16 to vector<1x1x9x16xbf16>
    %c0 = arith.constant 0 : index
    %c0_0 = arith.constant 0 : index
    %c0_1 = arith.constant 0 : index
    %c0_2 = arith.constant 0 : index
    %1 = vector.load %arg9[%c0, %c0_0, %c0_1, %c0_2] : memref<1x9x9x16xbf16, #tpu.memory_space<vmem>>, vector<1x1x9x16xbf16>
    tpu.vector_store %arg9[%c0, %c0_0, %c0_1, %c0_2], %0 {strides = array<i32>} : memref<1x9x9x16xbf16, #tpu.memory_space<vmem>>, vector<1x1x9x16xbf16>,
    %cst_3 = arith.constant 0.000000e+00 : bf16
    %2 = vector.broadcast %cst_3 : bf16 to vector<1x9x1x16xbf16>
    %c0_4 = arith.constant 0 : index
    %c0_5 = arith.constant 0 : index
    %c0_6 = arith.constant 0 : index
    %c0_7 = arith.constant 0 : index
    %3 = vector.load %arg9[%c0_4, %c0_5, %c0_6, %c0_7] : memref<1x9x9x16xbf16, #tpu.memory_space<vmem>>, vector<1x9x1x16xbf16>
    tpu.vector_store %arg9[%c0_4, %c0_5, %c0_6, %c0_7], %2 {strides = array<i32>} : memref<1x9x9x16xbf16, #tpu.memory_space<vmem>>, vector<1x9x1x16xbf16>,
    %cst_8 = arith.constant 0.000000e+00 : bf16
    %4 = vector.broadcast %cst_8 : bf16 to vector<1x1x10x128xbf16>
    %c0_9 = arith.constant 0 : index
    %c0_10 = arith.constant 0 : index
    %c0_11 = arith.constant 0 : index
    %c0_12 = arith.constant 0 : index
    %5 = vector.load %arg10[%c0_9, %c0_10, %c0_11, %c0_12] : memref<1x10x10x128xbf16, #tpu.memory_space<vmem>>, vector<1x1x10x128xbf16>
    tpu.vector_store %arg10[%c0_9, %c0_10, %c0_11, %c0_12], %4 {strides = array<i32>} : memref<1x10x10x128xbf16, #tpu.memory_space<vmem>>, vector<1x1x10x128xbf16>,
    %cst_13 = arith.constant 0.000000e+00 : bf16
    %6 = vector.broadcast %cst_13 : bf16 to vector<1x1x10x128xbf16>
    %c0_14 = arith.constant 0 : index
    %c9 = arith.constant 9 : index
    %c0_15 = arith.constant 0 : index
    %c0_16 = arith.constant 0 : index
    %7 = vector.load %arg10[%c0_14, %c9, %c0_15, %c0_16] : memref<1x10x10x128xbf16, #tpu.memory_space<vmem>>, vector<1x1x10x128xbf16>
    tpu.vector_store %arg10[%c0_14, %c9, %c0_15, %c0_16], %6 {strides = array<i32>} : memref<1x10x10x128xbf16, #tpu.memory_space<vmem>>, vector<1x1x10x128xbf16>,
    %cst_17 = arith.constant 0.000000e+00 : bf16
    %8 = vector.broadcast %cst_17 : bf16 to vector<1x10x1x128xbf16>
    %c0_18 = arith.constant 0 : index
    %c0_19 = arith.constant 0 : index
    %c0_20 = arith.constant 0 : index
    %c0_21 = arith.constant 0 : index
    %9 = vector.load %arg10[%c0_18, %c0_19, %c0_20, %c0_21] : memref<1x10x10x128xbf16, #tpu.memory_space<vmem>>, vector<1x10x1x128xbf16>
    tpu.vector_store %arg10[%c0_18, %c0_19, %c0_20, %c0_21], %8 {strides = array<i32>} : memref<1x10x10x128xbf16, #tpu.memory_space<vmem>>, vector<1x10x1x128xbf16>,
    %cst_22 = arith.constant 0.000000e+00 : bf16
    %10 = vector.broadcast %cst_22 : bf16 to vector<1x10x1x128xbf16>
    %c0_23 = arith.constant 0 : index
    %c0_24 = arith.constant 0 : index
    %c9_25 = arith.constant 9 : index
    %c0_26 = arith.constant 0 : index
    %11 = vector.load %arg10[%c0_23, %c0_24, %c9_25, %c0_26] : memref<1x10x10x128xbf16, #tpu.memory_space<vmem>>, vector<1x10x1x128xbf16>
    tpu.vector_store %arg10[%c0_23, %c0_24, %c9_25, %c0_26], %10 {strides = array<i32>} : memref<1x10x10x128xbf16, #tpu.memory_space<vmem>>, vector<1x10x1x128xbf16>,
    %c0_27 = arith.constant 0 : index
    %c0_28 = arith.constant 0 : index
    %c0_29 = arith.constant 0 : index
    %c0_30 = arith.constant 0 : index
    %12 = vector.load %arg1[%c0_27, %c0_28, %c0_29, %c0_30] : memref<1x8x8x16xbf16, #tpu.memory_space<vmem>>, vector<1x8x8x16xbf16>
    %c0_31 = arith.constant 0 : index
    %c1 = arith.constant 1 : index
    %c1_32 = arith.constant 1 : index
    %c0_33 = arith.constant 0 : index
    %13 = vector.load %arg9[%c0_31, %c1, %c1_32, %c0_33] : memref<1x9x9x16xbf16, #tpu.memory_space<vmem>>, vector<1x8x8x16xbf16>
    tpu.vector_store %arg9[%c0_31, %c1, %c1_32, %c0_33], %12 {strides = array<i32>} : memref<1x9x9x16xbf16, #tpu.memory_space<vmem>>, vector<1x8x8x16xbf16>,
    %c0_34 = arith.constant 0 : index
    %c0_35 = arith.constant 0 : index
    %c0_36 = arith.constant 0 : index
    %c12 = arith.constant 12 : index
    %14 = vector.load %arg9[%c0_34, %c0_35, %c0_36, %c12] : memref<1x9x9x16xbf16, #tpu.memory_space<vmem>>, vector<1x8x8x4xbf16>
    %15 = vector.shape_cast %14 : vector<1x8x8x4xbf16> to vector<64x4xbf16>
    %c0_37 = arith.constant 0 : index
    %c0_38 = arith.constant 0 : index
    %c0_39 = arith.constant 0 : index
    %16 = vector.load %arg2[%c0_37, %c0_38, %c0_39] : memref<9x4x128xbf16, #tpu.memory_space<vmem>>, vector<1x4x128xbf16>
    %17 = vector.shape_cast %16 : vector<1x4x128xbf16> to vector<4x128xbf16>
    %cst_40 = arith.constant dense<0.000000e+00> : vector<64x128xf32>
    %18 = tpu.matmul %15, %17, %cst_40 {dimension_numbers = #tpu.dot_dimension_numbers<[1], [0], [0], [1], [0, 0, 1, 1], [], []>} : vector<64x4xbf16>, vector<4x128xbf16>, vector<64x128xf32> -> vector<64x128xf32>
    %c0_41 = arith.constant 0 : index
    %c0_42 = arith.constant 0 : index
    %c1_43 = arith.constant 1 : index
    %c8 = arith.constant 8 : index
    %19 = vector.load %arg9[%c0_41, %c0_42, %c1_43, %c8] : memref<1x9x9x16xbf16, #tpu.memory_space<vmem>>, vector<1x8x8x4xbf16>
    %20 = vector.shape_cast %19 : vector<1x8x8x4xbf16> to vector<64x4xbf16>
    %c1_44 = arith.constant 1 : index
    %c0_45 = arith.constant 0 : index
    %c0_46 = arith.constant 0 : index
    %21 = vector.load %arg2[%c1_44, %c0_45, %c0_46] : memref<9x4x128xbf16, #tpu.memory_space<vmem>>, vector<1x4x128xbf16>
    %22 = vector.shape_cast %21 : vector<1x4x128xbf16> to vector<4x128xbf16>
    %cst_47 = arith.constant dense<0.000000e+00> : vector<64x128xf32>
    %23 = tpu.matmul %20, %22, %cst_47 {dimension_numbers = #tpu.dot_dimension_numbers<[1], [0], [0], [1], [0, 0, 1, 1], [], []>} : vector<64x4xbf16>, vector<4x128xbf16>, vector<64x128xf32> -> vector<64x128xf32>
    %24 = arith.addf %18, %23 : vector<64x128xf32>
    %c0_48 = arith.constant 0 : index
    %c0_49 = arith.constant 0 : index
    %c1_50 = arith.constant 1 : index
    %c12_51 = arith.constant 12 : index
    %25 = vector.load %arg9[%c0_48, %c0_49, %c1_50, %c12_51] : memref<1x9x9x16xbf16, #tpu.memory_space<vmem>>, vector<1x8x8x4xbf16>
    %26 = vector.shape_cast %25 : vector<1x8x8x4xbf16> to vector<64x4xbf16>
    %c2 = arith.constant 2 : index
    %c0_52 = arith.constant 0 : index
    %c0_53 = arith.constant 0 : index
    %27 = vector.load %arg2[%c2, %c0_52, %c0_53] : memref<9x4x128xbf16, #tpu.memory_space<vmem>>, vector<1x4x128xbf16>
    %28 = vector.shape_cast %27 : vector<1x4x128xbf16> to vector<4x128xbf16>
    %cst_54 = arith.constant dense<0.000000e+00> : vector<64x128xf32>
    %29 = tpu.matmul %26, %28, %cst_54 {dimension_numbers = #tpu.dot_dimension_numbers<[1], [0], [0], [1], [0, 0, 1, 1], [], []>} : vector<64x4xbf16>, vector<4x128xbf16>, vector<64x128xf32> -> vector<64x128xf32>
    %30 = arith.addf %24, %29 : vector<64x128xf32>
    %c0_55 = arith.constant 0 : index
    %c1_56 = arith.constant 1 : index
    %c0_57 = arith.constant 0 : index
    %c4 = arith.constant 4 : index
    %31 = vector.load %arg9[%c0_55, %c1_56, %c0_57, %c4] : memref<1x9x9x16xbf16, #tpu.memory_space<vmem>>, vector<1x8x8x4xbf16>
    %32 = vector.shape_cast %31 : vector<1x8x8x4xbf16> to vector<64x4xbf16>
    %c3 = arith.constant 3 : index
    %c0_58 = arith.constant 0 : index
    %c0_59 = arith.constant 0 : index
    %33 = vector.load %arg2[%c3, %c0_58, %c0_59] : memref<9x4x128xbf16, #tpu.memory_space<vmem>>, vector<1x4x128xbf16>
    %34 = vector.shape_cast %33 : vector<1x4x128xbf16> to vector<4x128xbf16>
    %cst_60 = arith.constant dense<0.000000e+00> : vector<64x128xf32>
    %35 = tpu.matmul %32, %34, %cst_60 {dimension_numbers = #tpu.dot_dimension_numbers<[1], [0], [0], [1], [0, 0, 1, 1], [], []>} : vector<64x4xbf16>, vector<4x128xbf16>, vector<64x128xf32> -> vector<64x128xf32>
    %36 = arith.addf %30, %35 : vector<64x128xf32>
    %c0_61 = arith.constant 0 : index
    %c1_62 = arith.constant 1 : index
    %c1_63 = arith.constant 1 : index
    %c0_64 = arith.constant 0 : index
    %37 = vector.load %arg9[%c0_61, %c1_62, %c1_63, %c0_64] : memref<1x9x9x16xbf16, #tpu.memory_space<vmem>>, vector<1x8x8x4xbf16>
    %38 = vector.shape_cast %37 : vector<1x8x8x4xbf16> to vector<64x4xbf16>
    %c4_65 = arith.constant 4 : index
    %c0_66 = arith.constant 0 : index
    %c0_67 = arith.constant 0 : index
    %39 = vector.load %arg2[%c4_65, %c0_66, %c0_67] : memref<9x4x128xbf16, #tpu.memory_space<vmem>>, vector<1x4x128xbf16>
    %40 = vector.shape_cast %39 : vector<1x4x128xbf16> to vector<4x128xbf16>
    %cst_68 = arith.constant dense<0.000000e+00> : vector<64x128xf32>
    %41 = tpu.matmul %38, %40, %cst_68 {dimension_numbers = #tpu.dot_dimension_numbers<[1], [0], [0], [1], [0, 0, 1, 1], [], []>} : vector<64x4xbf16>, vector<4x128xbf16>, vector<64x128xf32> -> vector<64x128xf32>
    %42 = arith.addf %36, %41 : vector<64x128xf32>
    %c0_69 = arith.constant 0 : index
    %c1_70 = arith.constant 1 : index
    %c1_71 = arith.constant 1 : index
    %c4_72 = arith.constant 4 : index
    %43 = vector.load %arg9[%c0_69, %c1_70, %c1_71, %c4_72] : memref<1x9x9x16xbf16, #tpu.memory_space<vmem>>, vector<1x8x8x4xbf16>
    %44 = vector.shape_cast %43 : vector<1x8x8x4xbf16> to vector<64x4xbf16>
    %c5 = arith.constant 5 : index
    %c0_73 = arith.constant 0 : index
    %c0_74 = arith.constant 0 : index
    %45 = vector.load %arg2[%c5, %c0_73, %c0_74] : memref<9x4x128xbf16, #tpu.memory_space<vmem>>, vector<1x4x128xbf16>
    %46 = vector.shape_cast %45 : vector<1x4x128xbf16> to vector<4x128xbf16>
    %cst_75 = arith.constant dense<0.000000e+00> : vector<64x128xf32>
    %47 = tpu.matmul %44, %46, %cst_75 {dimension_numbers = #tpu.dot_dimension_numbers<[1], [0], [0], [1], [0, 0, 1, 1], [], []>} : vector<64x4xbf16>, vector<4x128xbf16>, vector<64x128xf32> -> vector<64x128xf32>
    %48 = arith.addf %42, %47 : vector<64x128xf32>
    %c0_76 = arith.constant 0 : index
    %c1_77 = arith.constant 1 : index
    %c0_78 = arith.constant 0 : index
    %c12_79 = arith.constant 12 : index
    %49 = vector.load %arg9[%c0_76, %c1_77, %c0_78, %c12_79] : memref<1x9x9x16xbf16, #tpu.memory_space<vmem>>, vector<1x8x8x4xbf16>
    %50 = vector.shape_cast %49 : vector<1x8x8x4xbf16> to vector<64x4xbf16>
    %c6 = arith.constant 6 : index
    %c0_80 = arith.constant 0 : index
    %c0_81 = arith.constant 0 : index
    %51 = vector.load %arg2[%c6, %c0_80, %c0_81] : memref<9x4x128xbf16, #tpu.memory_space<vmem>>, vector<1x4x128xbf16>
    %52 = vector.shape_cast %51 : vector<1x4x128xbf16> to vector<4x128xbf16>
    %cst_82 = arith.constant dense<0.000000e+00> : vector<64x128xf32>
    %53 = tpu.matmul %50, %52, %cst_82 {dimension_numbers = #tpu.dot_dimension_numbers<[1], [0], [0], [1], [0, 0, 1, 1], [], []>} : vector<64x4xbf16>, vector<4x128xbf16>, vector<64x128xf32> -> vector<64x128xf32>
    %54 = arith.addf %48, %53 : vector<64x128xf32>
    %c0_83 = arith.constant 0 : index
    %c1_84 = arith.constant 1 : index
    %c1_85 = arith.constant 1 : index
    %c8_86 = arith.constant 8 : index
    %55 = vector.load %arg9[%c0_83, %c1_84, %c1_85, %c8_86] : memref<1x9x9x16xbf16, #tpu.memory_space<vmem>>, vector<1x8x8x4xbf16>
    %56 = vector.shape_cast %55 : vector<1x8x8x4xbf16> to vector<64x4xbf16>
    %c7 = arith.constant 7 : index
    %c0_87 = arith.constant 0 : index
    %c0_88 = arith.constant 0 : index
    %57 = vector.load %arg2[%c7, %c0_87, %c0_88] : memref<9x4x128xbf16, #tpu.memory_space<vmem>>, vector<1x4x128xbf16>
    %58 = vector.shape_cast %57 : vector<1x4x128xbf16> to vector<4x128xbf16>
    %cst_89 = arith.constant dense<0.000000e+00> : vector<64x128xf32>
    %59 = tpu.matmul %56, %58, %cst_89 {dimension_numbers = #tpu.dot_dimension_numbers<[1], [0], [0], [1], [0, 0, 1, 1], [], []>} : vector<64x4xbf16>, vector<4x128xbf16>, vector<64x128xf32> -> vector<64x128xf32>
    %60 = arith.addf %54, %59 : vector<64x128xf32>
    %c0_90 = arith.constant 0 : index
    %c1_91 = arith.constant 1 : index
    %c1_92 = arith.constant 1 : index
    %c12_93 = arith.constant 12 : index
    %61 = vector.load %arg9[%c0_90, %c1_91, %c1_92, %c12_93] : memref<1x9x9x16xbf16, #tpu.memory_space<vmem>>, vector<1x8x8x4xbf16>
    %62 = vector.shape_cast %61 : vector<1x8x8x4xbf16> to vector<64x4xbf16>
    %c8_94 = arith.constant 8 : index
    %c0_95 = arith.constant 0 : index
    %c0_96 = arith.constant 0 : index
    %63 = vector.load %arg2[%c8_94, %c0_95, %c0_96] : memref<9x4x128xbf16, #tpu.memory_space<vmem>>, vector<1x4x128xbf16>
    %64 = vector.shape_cast %63 : vector<1x4x128xbf16> to vector<4x128xbf16>
    %cst_97 = arith.constant dense<0.000000e+00> : vector<64x128xf32>
    %65 = tpu.matmul %62, %64, %cst_97 {dimension_numbers = #tpu.dot_dimension_numbers<[1], [0], [0], [1], [0, 0, 1, 1], [], []>} : vector<64x4xbf16>, vector<4x128xbf16>, vector<64x128xf32> -> vector<64x128xf32>
    %66 = arith.addf %60, %65 : vector<64x128xf32>
    %c0_98 = arith.constant 0 : index
    %c0_99 = arith.constant 0 : index
    %67 = vector.load %arg3[%c0_98, %c0_99] : memref<1x128xf32, #tpu.memory_space<vmem>>, vector<1x128xf32>
    %68 = vector.broadcast %67 : vector<1x128xf32> to vector<64x128xf32>
    %69 = arith.addf %66, %68 : vector<64x128xf32>
    %cst_100 = arith.constant 0.000000e+00 : f32
    %70 = vector.broadcast %cst_100 : f32 to vector<64x128xf32>
    %71 = arith.maximumf %69, %70 : vector<64x128xf32>
    %72 = vector.shape_cast %71 : vector<64x128xf32> to vector<1x8x8x128xf32>
    %73 = arith.truncf %72 : vector<1x8x8x128xf32> to vector<1x8x8x128xbf16>
    %c0_101 = arith.constant 0 : index
    %c1_102 = arith.constant 1 : index
    %c1_103 = arith.constant 1 : index
    %c0_104 = arith.constant 0 : index
    %74 = vector.load %arg10[%c0_101, %c1_102, %c1_103, %c0_104] : memref<1x10x10x128xbf16, #tpu.memory_space<vmem>>, vector<1x8x8x128xbf16>
    tpu.vector_store %arg10[%c0_101, %c1_102, %c1_103, %c0_104], %73 {strides = array<i32>} : memref<1x10x10x128xbf16, #tpu.memory_space<vmem>>, vector<1x8x8x128xbf16>,
    %c0_105 = arith.constant 0 : index
    %c0_106 = arith.constant 0 : index
    %c0_107 = arith.constant 0 : index
    %c0_108 = arith.constant 0 : index
    %75 = vector.load %arg10[%c0_105, %c0_106, %c0_107, %c0_108] : memref<1x10x10x128xbf16, #tpu.memory_space<vmem>>, vector<1x8x8x128xbf16>
    %76 = vector.shape_cast %75 : vector<1x8x8x128xbf16> to vector<64x128xbf16>
    %c0_109 = arith.constant 0 : index
    %c0_110 = arith.constant 0 : index
    %c0_111 = arith.constant 0 : index
    %77 = vector.load %arg4[%c0_109, %c0_110, %c0_111] : memref<9x128x128xbf16, #tpu.memory_space<vmem>>, vector<1x128x128xbf16>
    %78 = vector.shape_cast %77 : vector<1x128x128xbf16> to vector<128x128xbf16>
    %cst_112 = arith.constant dense<0.000000e+00> : vector<64x128xf32>
    %79 = tpu.matmul %76, %78, %cst_112 {dimension_numbers = #tpu.dot_dimension_numbers<[1], [0], [0], [1], [0, 0, 1, 1], [], []>} : vector<64x128xbf16>, vector<128x128xbf16>, vector<64x128xf32> -> vector<64x128xf32>
    %c0_113 = arith.constant 0 : index
    %c0_114 = arith.constant 0 : index
    %c1_115 = arith.constant 1 : index
    %c0_116 = arith.constant 0 : index
    %80 = vector.load %arg10[%c0_113, %c0_114, %c1_115, %c0_116] : memref<1x10x10x128xbf16, #tpu.memory_space<vmem>>, vector<1x8x8x128xbf16>
    %81 = vector.shape_cast %80 : vector<1x8x8x128xbf16> to vector<64x128xbf16>
    %c1_117 = arith.constant 1 : index
    %c0_118 = arith.constant 0 : index
    %c0_119 = arith.constant 0 : index
    %82 = vector.load %arg4[%c1_117, %c0_118, %c0_119] : memref<9x128x128xbf16, #tpu.memory_space<vmem>>, vector<1x128x128xbf16>
    %83 = vector.shape_cast %82 : vector<1x128x128xbf16> to vector<128x128xbf16>
    %cst_120 = arith.constant dense<0.000000e+00> : vector<64x128xf32>
    %84 = tpu.matmul %81, %83, %cst_120 {dimension_numbers = #tpu.dot_dimension_numbers<[1], [0], [0], [1], [0, 0, 1, 1], [], []>} : vector<64x128xbf16>, vector<128x128xbf16>, vector<64x128xf32> -> vector<64x128xf32>
    %85 = arith.addf %79, %84 : vector<64x128xf32>
    %c0_121 = arith.constant 0 : index
    %c0_122 = arith.constant 0 : index
    %c2_123 = arith.constant 2 : index
    %c0_124 = arith.constant 0 : index
    %86 = vector.load %arg10[%c0_121, %c0_122, %c2_123, %c0_124] : memref<1x10x10x128xbf16, #tpu.memory_space<vmem>>, vector<1x8x8x128xbf16>
    %87 = vector.shape_cast %86 : vector<1x8x8x128xbf16> to vector<64x128xbf16>
    %c2_125 = arith.constant 2 : index
    %c0_126 = arith.constant 0 : index
    %c0_127 = arith.constant 0 : index
    %88 = vector.load %arg4[%c2_125, %c0_126, %c0_127] : memref<9x128x128xbf16, #tpu.memory_space<vmem>>, vector<1x128x128xbf16>
    %89 = vector.shape_cast %88 : vector<1x128x128xbf16> to vector<128x128xbf16>
    %cst_128 = arith.constant dense<0.000000e+00> : vector<64x128xf32>
    %90 = tpu.matmul %87, %89, %cst_128 {dimension_numbers = #tpu.dot_dimension_numbers<[1], [0], [0], [1], [0, 0, 1, 1], [], []>} : vector<64x128xbf16>, vector<128x128xbf16>, vector<64x128xf32> -> vector<64x128xf32>
    %91 = arith.addf %85, %90 : vector<64x128xf32>
    %c0_129 = arith.constant 0 : index
    %c1_130 = arith.constant 1 : index
    %c0_131 = arith.constant 0 : index
    %c0_132 = arith.constant 0 : index
    %92 = vector.load %arg10[%c0_129, %c1_130, %c0_131, %c0_132] : memref<1x10x10x128xbf16, #tpu.memory_space<vmem>>, vector<1x8x8x128xbf16>
    %93 = vector.shape_cast %92 : vector<1x8x8x128xbf16> to vector<64x128xbf16>
    %c3_133 = arith.constant 3 : index
    %c0_134 = arith.constant 0 : index
    %c0_135 = arith.constant 0 : index
    %94 = vector.load %arg4[%c3_133, %c0_134, %c0_135] : memref<9x128x128xbf16, #tpu.memory_space<vmem>>, vector<1x128x128xbf16>
    %95 = vector.shape_cast %94 : vector<1x128x128xbf16> to vector<128x128xbf16>
    %cst_136 = arith.constant dense<0.000000e+00> : vector<64x128xf32>
    %96 = tpu.matmul %93, %95, %cst_136 {dimension_numbers = #tpu.dot_dimension_numbers<[1], [0], [0], [1], [0, 0, 1, 1], [], []>} : vector<64x128xbf16>, vector<128x128xbf16>, vector<64x128xf32> -> vector<64x128xf32>
    %97 = arith.addf %91, %96 : vector<64x128xf32>
    %c0_137 = arith.constant 0 : index
    %c1_138 = arith.constant 1 : index
    %c1_139 = arith.constant 1 : index
    %c0_140 = arith.constant 0 : index
    %98 = vector.load %arg10[%c0_137, %c1_138, %c1_139, %c0_140] : memref<1x10x10x128xbf16, #tpu.memory_space<vmem>>, vector<1x8x8x128xbf16>
    %99 = vector.shape_cast %98 : vector<1x8x8x128xbf16> to vector<64x128xbf16>
    %c4_141 = arith.constant 4 : index
    %c0_142 = arith.constant 0 : index
    %c0_143 = arith.constant 0 : index
    %100 = vector.load %arg4[%c4_141, %c0_142, %c0_143] : memref<9x128x128xbf16, #tpu.memory_space<vmem>>, vector<1x128x128xbf16>
    %101 = vector.shape_cast %100 : vector<1x128x128xbf16> to vector<128x128xbf16>
    %cst_144 = arith.constant dense<0.000000e+00> : vector<64x128xf32>
    %102 = tpu.matmul %99, %101, %cst_144 {dimension_numbers = #tpu.dot_dimension_numbers<[1], [0], [0], [1], [0, 0, 1, 1], [], []>} : vector<64x128xbf16>, vector<128x128xbf16>, vector<64x128xf32> -> vector<64x128xf32>
    %103 = arith.addf %97, %102 : vector<64x128xf32>
    %c0_145 = arith.constant 0 : index
    %c1_146 = arith.constant 1 : index
    %c2_147 = arith.constant 2 : index
    %c0_148 = arith.constant 0 : index
    %104 = vector.load %arg10[%c0_145, %c1_146, %c2_147, %c0_148] : memref<1x10x10x128xbf16, #tpu.memory_space<vmem>>, vector<1x8x8x128xbf16>
    %105 = vector.shape_cast %104 : vector<1x8x8x128xbf16> to vector<64x128xbf16>
    %c5_149 = arith.constant 5 : index
    %c0_150 = arith.constant 0 : index
    %c0_151 = arith.constant 0 : index
    %106 = vector.load %arg4[%c5_149, %c0_150, %c0_151] : memref<9x128x128xbf16, #tpu.memory_space<vmem>>, vector<1x128x128xbf16>
    %107 = vector.shape_cast %106 : vector<1x128x128xbf16> to vector<128x128xbf16>
    %cst_152 = arith.constant dense<0.000000e+00> : vector<64x128xf32>
    %108 = tpu.matmul %105, %107, %cst_152 {dimension_numbers = #tpu.dot_dimension_numbers<[1], [0], [0], [1], [0, 0, 1, 1], [], []>} : vector<64x128xbf16>, vector<128x128xbf16>, vector<64x128xf32> -> vector<64x128xf32>
    %109 = arith.addf %103, %108 : vector<64x128xf32>
    %c0_153 = arith.constant 0 : index
    %c2_154 = arith.constant 2 : index
    %c0_155 = arith.constant 0 : index
    %c0_156 = arith.constant 0 : index
    %110 = vector.load %arg10[%c0_153, %c2_154, %c0_155, %c0_156] : memref<1x10x10x128xbf16, #tpu.memory_space<vmem>>, vector<1x8x8x128xbf16>
    %111 = vector.shape_cast %110 : vector<1x8x8x128xbf16> to vector<64x128xbf16>
    %c6_157 = arith.constant 6 : index
    %c0_158 = arith.constant 0 : index
    %c0_159 = arith.constant 0 : index
    %112 = vector.load %arg4[%c6_157, %c0_158, %c0_159] : memref<9x128x128xbf16, #tpu.memory_space<vmem>>, vector<1x128x128xbf16>
    %113 = vector.shape_cast %112 : vector<1x128x128xbf16> to vector<128x128xbf16>
    %cst_160 = arith.constant dense<0.000000e+00> : vector<64x128xf32>
    %114 = tpu.matmul %111, %113, %cst_160 {dimension_numbers = #tpu.dot_dimension_numbers<[1], [0], [0], [1], [0, 0, 1, 1], [], []>} : vector<64x128xbf16>, vector<128x128xbf16>, vector<64x128xf32> -> vector<64x128xf32>
    %115 = arith.addf %109, %114 : vector<64x128xf32>
    %c0_161 = arith.constant 0 : index
    %c2_162 = arith.constant 2 : index
    %c1_163 = arith.constant 1 : index
    %c0_164 = arith.constant 0 : index
    %116 = vector.load %arg10[%c0_161, %c2_162, %c1_163, %c0_164] : memref<1x10x10x128xbf16, #tpu.memory_space<vmem>>, vector<1x8x8x128xbf16>
    %117 = vector.shape_cast %116 : vector<1x8x8x128xbf16> to vector<64x128xbf16>
    %c7_165 = arith.constant 7 : index
    %c0_166 = arith.constant 0 : index
    %c0_167 = arith.constant 0 : index
    %118 = vector.load %arg4[%c7_165, %c0_166, %c0_167] : memref<9x128x128xbf16, #tpu.memory_space<vmem>>, vector<1x128x128xbf16>
    %119 = vector.shape_cast %118 : vector<1x128x128xbf16> to vector<128x128xbf16>
    %cst_168 = arith.constant dense<0.000000e+00> : vector<64x128xf32>
    %120 = tpu.matmul %117, %119, %cst_168 {dimension_numbers = #tpu.dot_dimension_numbers<[1], [0], [0], [1], [0, 0, 1, 1], [], []>} : vector<64x128xbf16>, vector<128x128xbf16>, vector<64x128xf32> -> vector<64x128xf32>
    %121 = arith.addf %115, %120 : vector<64x128xf32>
    %c0_169 = arith.constant 0 : index
    %c2_170 = arith.constant 2 : index
    %c2_171 = arith.constant 2 : index
    %c0_172 = arith.constant 0 : index
    %122 = vector.load %arg10[%c0_169, %c2_170, %c2_171, %c0_172] : memref<1x10x10x128xbf16, #tpu.memory_space<vmem>>, vector<1x8x8x128xbf16>
    %123 = vector.shape_cast %122 : vector<1x8x8x128xbf16> to vector<64x128xbf16>
    %c8_173 = arith.constant 8 : index
    %c0_174 = arith.constant 0 : index
    %c0_175 = arith.constant 0 : index
    %124 = vector.load %arg4[%c8_173, %c0_174, %c0_175] : memref<9x128x128xbf16, #tpu.memory_space<vmem>>, vector<1x128x128xbf16>
    %125 = vector.shape_cast %124 : vector<1x128x128xbf16> to vector<128x128xbf16>
    %cst_176 = arith.constant dense<0.000000e+00> : vector<64x128xf32>
    %126 = tpu.matmul %123, %125, %cst_176 {dimension_numbers = #tpu.dot_dimension_numbers<[1], [0], [0], [1], [0, 0, 1, 1], [], []>} : vector<64x128xbf16>, vector<128x128xbf16>, vector<64x128xf32> -> vector<64x128xf32>
    %127 = arith.addf %121, %126 : vector<64x128xf32>
    %c0_177 = arith.constant 0 : index
    %c0_178 = arith.constant 0 : index
    %128 = vector.load %arg5[%c0_177, %c0_178] : memref<1x128xf32, #tpu.memory_space<vmem>>, vector<1x128xf32>
    %129 = vector.broadcast %128 : vector<1x128xf32> to vector<64x128xf32>
    %130 = arith.addf %127, %129 : vector<64x128xf32>
    %131 = vector.extract_strided_slice %12 {offsets = [0, 0, 0, 0], sizes = [1, 8, 8, 4], strides = [1, 1, 1, 1]} : vector<1x8x8x16xbf16> to vector<1x8x8x4xbf16>
    %132 = vector.shape_cast %131 : vector<1x8x8x4xbf16> to vector<64x4xbf16>
    %c0_179 = arith.constant 0 : index
    %c0_180 = arith.constant 0 : index
    %133 = vector.load %arg6[%c0_179, %c0_180] : memref<4x128xbf16, #tpu.memory_space<vmem>>, vector<4x128xbf16>
    %cst_181 = arith.constant dense<0.000000e+00> : vector<64x128xf32>
    %134 = tpu.matmul %132, %133, %cst_181 {dimension_numbers = #tpu.dot_dimension_numbers<[1], [0], [0], [1], [0, 0, 1, 1], [], []>} : vector<64x4xbf16>, vector<4x128xbf16>, vector<64x128xf32> -> vector<64x128xf32>
    %c0_182 = arith.constant 0 : index
    %c0_183 = arith.constant 0 : index
    %135 = vector.load %arg7[%c0_182, %c0_183] : memref<1x128xf32, #tpu.memory_space<vmem>>, vector<1x128xf32>
    %136 = vector.broadcast %135 : vector<1x128xf32> to vector<64x128xf32>
    %137 = arith.addf %134, %136 : vector<64x128xf32>
    %138 = arith.addf %130, %137 : vector<64x128xf32>
    %cst_184 = arith.constant 0.000000e+00 : f32
    %139 = vector.broadcast %cst_184 : f32 to vector<64x128xf32>
    %140 = arith.maximumf %138, %139 : vector<64x128xf32>
    %141 = vector.shape_cast %140 : vector<64x128xf32> to vector<1x64x128xf32>
    %c0_185 = arith.constant 0 : index
    %c0_186 = arith.constant 0 : index
    %c0_187 = arith.constant 0 : index
    %142 = vector.load %arg8[%c0_185, %c0_186, %c0_187] : memref<1x64x128xf32, #tpu.memory_space<vmem>>, vector<1x64x128xf32>
    tpu.vector_store %arg8[%c0_185, %c0_186, %c0_187], %141 {strides = array<i32>} : memref<1x64x128xf32, #tpu.memory_space<vmem>>, vector<1x64x128xf32>,
    return
  }
  func.func @transform_0(%arg0: i32) -> (i32, i32, i32, i32) {
    %c0_i32 = arith.constant 0 : i32
    %c0_i32_0 = arith.constant 0 : i32
    %c0_i32_1 = arith.constant 0 : i32
    %c0_i32_2 = arith.constant 0 : i32
    return %arg0, %c0_i32, %c0_i32_0, %c0_i32_1 : i32, i32, i32, i32
  }
  func.func @transform_1(%arg0: i32) -> (i32, i32, i32) {
    %c0_i32 = arith.constant 0 : i32
    %c0_i32_0 = arith.constant 0 : i32
    %c0_i32_1 = arith.constant 0 : i32
    %c0_i32_2 = arith.constant 0 : i32
    return %c0_i32, %c0_i32_0, %c0_i32_1 : i32, i32, i32
  }
  func.func @transform_2(%arg0: i32) -> (i32, i32) {
    %c0_i32 = arith.constant 0 : i32
    %c0_i32_0 = arith.constant 0 : i32
    %c0_i32_1 = arith.constant 0 : i32
    return %c0_i32, %c0_i32_0 : i32, i32
  }
  func.func @transform_3(%arg0: i32) -> (i32, i32, i32) {
    %c0_i32 = arith.constant 0 : i32
    %c0_i32_0 = arith.constant 0 : i32
    %c0_i32_1 = arith.constant 0 : i32
    %c0_i32_2 = arith.constant 0 : i32
    return %c0_i32, %c0_i32_0, %c0_i32_1 : i32, i32, i32
  }
  func.func @transform_4(%arg0: i32) -> (i32, i32) {
    %c0_i32 = arith.constant 0 : i32
    %c0_i32_0 = arith.constant 0 : i32
    %c0_i32_1 = arith.constant 0 : i32
    return %c0_i32, %c0_i32_0 : i32, i32
  }
  func.func @transform_5(%arg0: i32) -> (i32, i32) {
    %c0_i32 = arith.constant 0 : i32
    %c0_i32_0 = arith.constant 0 : i32
    %c0_i32_1 = arith.constant 0 : i32
    return %c0_i32, %c0_i32_0 : i32, i32
  }
  func.func @transform_6(%arg0: i32) -> (i32, i32) {
    %c0_i32 = arith.constant 0 : i32
    %c0_i32_0 = arith.constant 0 : i32
    %c0_i32_1 = arith.constant 0 : i32
    return %c0_i32, %c0_i32_0 : i32, i32
  }
  func.func @transform_7(%arg0: i32) -> (i32, i32, i32) {
    %c0_i32 = arith.constant 0 : i32
    %c0_i32_0 = arith.constant 0 : i32
    %c0_i32_1 = arith.constant 0 : i32
    return %arg0, %c0_i32, %c0_i32_0 : i32, i32, i32
  }
}

</mosaic_0001>

<llo_original>
// kernel: tpu_custom_call.1
$region0: #{tpu_custom_call.1}
  #allocation0 [shape = 'u32[]', space=smem, size = 0x4, offset = 0x4, fixed_abs, tag = 'smem constant byte address 0x4 - core index']
  #allocation1 [shape = 'u32[144,128]{1,0:T(1,128)}', space=vmem, size = 0x12000, scoped, tag = 'internal scratch']
  #allocation2 [shape = 'bf16[1,9,9,16]{3,2,1,0:T(8,128)(2,1)}', space=vmem, size = 0x9000, scoped, tag = 'scratch operand']
  #allocation3 [shape = 'bf16[1,10,10,128]{3,2,1,0:T(8,128)(2,1)}', space=vmem, size = 0xa000, scoped, tag = 'scratch operand']
  %s0 = inlined_call_operand.hbm [shape: bf16[2,8,8,16], index: 0, kind: input, shape index: {}]
  %s1 = inlined_call_operand.hbm [shape: bf16[9,4,128], index: 1, kind: input, shape index: {}]
  %s2 = inlined_call_operand.vmem [shape: f32[1,128], index: 2, kind: input, shape index: {}]
  %s3 = inlined_call_operand.hbm [shape: bf16[9,128,128], index: 3, kind: input, shape index: {}]
  %s4 = inlined_call_operand.vmem [shape: f32[1,128], index: 4, kind: input, shape index: {}]
  %s5 = inlined_call_operand.vmem [shape: bf16[4,128], index: 5, kind: input, shape index: {}]
  %s6 = inlined_call_operand.vmem [shape: f32[1,128], index: 6, kind: input, shape index: {}]
  %s7 = inlined_call_operand.hbm [shape: f32[2,64,128], index: 7, kind: output, shape index: {}]
  %s8 = sld [smem:[#allocation0]]
  $region73: #{tpu_custom_call.1} parent=0
    _
  %s10 = ssub.s32 1, %s8
  %s11 = scalar_select 0, %s10, %s8
  $region1: #{tpu_custom_call.1} parent=0
    #allocation4 [shape = 'u8[32768]{0}', space=vmem, size = 0x8000, scoped, tag = 'input window, operand 0']
    #allocation5 [shape = 's32[2]{0}', space=sflag, size = 0x8, scoped, tag = 'scoped memory for tpu_custom_call.1']
    #allocation6 [shape = 's32[2]{0}', space=sflag, size = 0x8, scoped, tag = 'scoped memory for tpu_custom_call.1']
    #allocation7 [shape = 'u8[9216]{0}', space=vmem, size = 0x2400, scoped, tag = 'input window, operand 1, single buffered']
    #allocation8 [shape = 's32[1]{0}', space=sflag, size = 0x4, scoped, tag = 'scoped memory for tpu_custom_call.1']
    #allocation9 [shape = 'u8[294912]{0}', space=vmem, size = 0x48000, scoped, tag = 'input window, operand 3, single buffered']
    #allocation10 [shape = 'u8[65536]{0}', space=vmem, size = 0x10000, scoped, tag = 'output window, operand 0']
    %12 = vsyncpa [#allocation5], 0
    %s13 = scalar_lea.sflag [#allocation5], 1
    %14 = vsyncpa %s13, 0
    %15 = vsyncpa [#allocation8], 0
    %16 = vsyncpa [#allocation6], 0
    %s17 = scalar_lea.sflag [#allocation6], 1
    %18 = vsyncpa %s17, 0
    loop: start=0, step=1, limit=4
    $region2: #{tpu_custom_call.1} parent=1 // loop_pre_header
      _
    $region3: #{tpu_custom_call.1} parent=1 // loop_header
      %s20 = sphi 0, %s24
      %p21 = scmp.ge.s32.totalorder %s20, 4
      %s30 = sphi 0, %s32
      %s33 = sphi 0, %s30
      %s34 = sphi 0, %s33
      %s50 = sphi 0, %s34
      %s54 = sphi 0, %s54
      %s56 = sphi 0, %s54
      %s57 = sphi 0, %s56
      %s71 = sphi 0, %s57
      %s75 = sphi 0, %s75
      %s77 = sphi 0, %s75
      %s78 = sphi 0, %s77
      %s92 = sphi 0, %s78
      %s96 = sphi 0, %s96
      %s98 = sphi 0, %s96
      %s99 = sphi 0, %s98
      %s113 = sphi 0, %s99
      %s117 = sphi 0, %s117
      %s119 = sphi 0, %s117
      %s120 = sphi 0, %s119
      %s134 = sphi 0, %s120
      %s138 = sphi 0, %s138
      %s140 = sphi 0, %s138
      %s141 = sphi 0, %s140
      %s155 = sphi 0, %s141
      %s159 = sphi 0, %s159
      %s161 = sphi 0, %s159
      %s162 = sphi 0, %s161
      %s176 = sphi 0, %s162
      %s182 = sphi 0, %s184
      %s185 = sphi 0, %s182
      %s186 = sphi 0, %s185
      %s202 = sphi 0, %s186
    $region4: #{tpu_custom_call.1} parent=1 // loop_header_branch
      %23 = sbr.rel (%p21) target = $region8
    $region5: #{tpu_custom_call.1} parent=1 // loop_body
      %s25 = ssub.s32 %s20, 1
      %s26 = ssub.s32 %s20, 2
      %s27 = sadd.s32 %s20, 1
      %s28 = ssub.s32 %s20, %s27
      %p29 = scmp.eq.s32.totalorder %s28, 0
      %s31 = sadd.s32 %s30, 1
      %s32 = scalar_select %p29, %s30, %s31
      %p35 = pneg %p29
      %p36 = scmp.eq.s32.totalorder %s20, 1
      %p37 = por %p35, %p36
      %p38 = scmp.ne.s32.totalorder %s30, %s33
      %p39 = scmp.eq.s32.totalorder %s20, 0
      %p40 = por %p38, %p39
      %p41 = scmp.ne.s32.totalorder %s30, %s33
      %p42 = scmp.eq.s32.totalorder %s25, 1
      %p43 = por %p41, %p42
      %p44 = scmp.ne.s32.totalorder %s33, %s34
      %p45 = scmp.eq.s32.totalorder %s25, 0
      %p46 = por %p44, %p45
      %p47 = scmp.ne.s32.totalorder %s33, %s34
      %p48 = scmp.eq.s32.totalorder %s26, 1
      %p49 = por %p47, %p48
      %p51 = scmp.ne.s32.totalorder %s34, %s50
      %p52 = scmp.eq.s32.totalorder %s26, 0
      %p53 = por %p51, %p52
      %s55 = sadd.s32 %s54, 1
      %p58 = scmp.eq.s32.totalorder %s20, 1
      %p59 = scmp.ne.s32.totalorder %s54, %s56
      %p60 = scmp.eq.s32.totalorder %s20, 0
      %p61 = por %p59, %p60
      %p62 = scmp.ne.s32.totalorder %s54, %s56
      %p63 = scmp.eq.s32.totalorder %s25, 1
      %p64 = por %p62, %p63
      %p65 = scmp.ne.s32.totalorder %s56, %s57
      %p66 = scmp.eq.s32.totalorder %s25, 0
      %p67 = por %p65, %p66
      %p68 = scmp.ne.s32.totalorder %s56, %s57
      %p69 = scmp.eq.s32.totalorder %s26, 1
      %p70 = por %p68, %p69
      %p72 = scmp.ne.s32.totalorder %s57, %s71
      %p73 = scmp.eq.s32.totalorder %s26, 0
      %p74 = por %p72, %p73
      %s76 = sadd.s32 %s75, 1
      %p79 = scmp.eq.s32.totalorder %s20, 1
      %p80 = scmp.ne.s32.totalorder %s75, %s77
      %p81 = scmp.eq.s32.totalorder %s20, 0
      %p82 = por %p80, %p81
      %p83 = scmp.ne.s32.totalorder %s75, %s77
      %p84 = scmp.eq.s32.totalorder %s25, 1
      %p85 = por %p83, %p84
      %p86 = scmp.ne.s32.totalorder %s77, %s78
      %p87 = scmp.eq.s32.totalorder %s25, 0
      %p88 = por %p86, %p87
      %p89 = scmp.ne.s32.totalorder %s77, %s78
      %p90 = scmp.eq.s32.totalorder %s26, 1
      %p91 = por %p89, %p90
      %p93 = scmp.ne.s32.totalorder %s78, %s92
      %p94 = scmp.eq.s32.totalorder %s26, 0
      %p95 = por %p93, %p94
      %s97 = sadd.s32 %s96, 1
      %p100 = scmp.eq.s32.totalorder %s20, 1
      %p101 = scmp.ne.s32.totalorder %s96, %s98
      %p102 = scmp.eq.s32.totalorder %s20, 0
      %p103 = por %p101, %p102
      %p104 = scmp.ne.s32.totalorder %s96, %s98
      %p105 = scmp.eq.s32.totalorder %s25, 1
      %p106 = por %p104, %p105
      %p107 = scmp.ne.s32.totalorder %s98, %s99
      %p108 = scmp.eq.s32.totalorder %s25, 0
      %p109 = por %p107, %p108
      %p110 = scmp.ne.s32.totalorder %s98, %s99
      %p111 = scmp.eq.s32.totalorder %s26, 1
      %p112 = por %p110, %p111
      %p114 = scmp.ne.s32.totalorder %s99, %s113
      %p115 = scmp.eq.s32.totalorder %s26, 0
      %p116 = por %p114, %p115
      %s118 = sadd.s32 %s117, 1
      %p121 = scmp.eq.s32.totalorder %s20, 1
      %p122 = scmp.ne.s32.totalorder %s117, %s119
      %p123 = scmp.eq.s32.totalorder %s20, 0
      %p124 = por %p122, %p123
      %p125 = scmp.ne.s32.totalorder %s117, %s119
      %p126 = scmp.eq.s32.totalorder %s25, 1
      %p127 = por %p125, %p126
      %p128 = scmp.ne.s32.totalorder %s119, %s120
      %p129 = scmp.eq.s32.totalorder %s25, 0
      %p130 = por %p128, %p129
      %p131 = scmp.ne.s32.totalorder %s119, %s120
      %p132 = scmp.eq.s32.totalorder %s26, 1
      %p133 = por %p131, %p132
      %p135 = scmp.ne.s32.totalorder %s120, %s134
      %p136 = scmp.eq.s32.totalorder %s26, 0
      %p137 = por %p135, %p136
      %s139 = sadd.s32 %s138, 1
      %p142 = scmp.eq.s32.totalorder %s20, 1
      %p143 = scmp.ne.s32.totalorder %s138, %s140
      %p144 = scmp.eq.s32.totalorder %s20, 0
      %p145 = por %p143, %p144
      %p146 = scmp.ne.s32.totalorder %s138, %s140
      %p147 = scmp.eq.s32.totalorder %s25, 1
      %p148 = por %p146, %p147
      %p149 = scmp.ne.s32.totalorder %s140, %s141
      %p150 = scmp.eq.s32.totalorder %s25, 0
      %p151 = por %p149, %p150
      %p152 = scmp.ne.s32.totalorder %s140, %s141
      %p153 = scmp.eq.s32.totalorder %s26, 1
      %p154 = por %p152, %p153
      %p156 = scmp.ne.s32.totalorder %s141, %s155
      %p157 = scmp.eq.s32.totalorder %s26, 0
      %p158 = por %p156, %p157
      %s160 = sadd.s32 %s159, 1
      %p163 = scmp.eq.s32.totalorder %s20, 1
      %p164 = scmp.ne.s32.totalorder %s159, %s161
      %p165 = scmp.eq.s32.totalorder %s20, 0
      %p166 = por %p164, %p165
      %p167 = scmp.ne.s32.totalorder %s159, %s161
      %p168 = scmp.eq.s32.totalorder %s25, 1
      %p169 = por %p167, %p168
      %p170 = scmp.ne.s32.totalorder %s161, %s162
      %p171 = scmp.eq.s32.totalorder %s25, 0
      %p172 = por %p170, %p171
      %p173 = scmp.ne.s32.totalorder %s161, %s162
      %p174 = scmp.eq.s32.totalorder %s26, 1
      %p175 = por %p173, %p174
      %p177 = scmp.ne.s32.totalorder %s162, %s176
      %p178 = scmp.eq.s32.totalorder %s26, 0
      %p179 = por %p177, %p178
      %s180 = ssub.s32 %s20, %s27
      %p181 = scmp.eq.s32.totalorder %s180, 0
      %s183 = sadd.s32 %s182, 1
      %s184 = scalar_select %p181, %s182, %s183
      %p187 = pneg %p181
      %p188 = scmp.eq.s32.totalorder %s20, 1
      %p189 = por %p187, %p188
      %p190 = scmp.ne.s32.totalorder %s182, %s185
      %p191 = scmp.eq.s32.totalorder %s20, 0
      %p192 = por %p190, %p191
      %p193 = scmp.ne.s32.totalorder %s182, %s185
      %p194 = scmp.eq.s32.totalorder %s25, 1
      %p195 = por %p193, %p194
      %p196 = scmp.ne.s32.totalorder %s185, %s186
      %p197 = scmp.eq.s32.totalorder %s25, 0
      %p198 = por %p196, %p197
      %p199 = scmp.ne.s32.totalorder %s185, %s186
      %p200 = scmp.eq.s32.totalorder %s26, 1
      %p201 = por %p199, %p200
      %p203 = scmp.ne.s32.totalorder %s186, %s202
      %p204 = scmp.eq.s32.totalorder %s26, 0
      %p205 = por %p203, %p204
      %p206 = scmp.le.s32.totalorder 1, %s20
      %p207 = scmp.lt.s32.totalorder %s20, 3
      %p208 = pnand %p206, %p207
      %p209 = pneg %p208
      // Predicated region
      $region9: #{tpu_custom_call.1} parent=5 // pred_check
        _
      $region10: #{tpu_custom_call.1} parent=5 // pred_check_branch
        %211 = sbr.rel (%p208) target = $region12
      $region11: #{tpu_custom_call.1} parent=5 // pred_region
        %s212 = ssub.s32 %s20, 1
        // Predicated region
        $region13: #{tpu_custom_call.1} parent=11 // pred_check
          %p213 = pneg %p67
        $region14: #{tpu_custom_call.1} parent=11 // pred_check_branch
          %215 = sbr.rel (%p213) target = $region16
        $region15: #{tpu_custom_call.1} parent=11 // pred_region
          %s217 = ssub.s32 288, 288
          %218 = vsyncadd [#allocation8], %s217
          %s219 = sshll.u32 [#allocation7], 4
          %s220 = int_to_ptr.vmem [resolvable:$true] %s219
          %225 = dma.hbm_to_vmem [thread:$0]  %s1, 288, %s220, [#allocation8], 32, 32, 2
        $region16: #{tpu_custom_call.1} parent=11 // pred_fallthru
          _
        // Predicated region
        $region17: #{tpu_custom_call.1} parent=11 // pred_check
          %p226 = pneg %p88
        $region18: #{tpu_custom_call.1} parent=11 // pred_check_branch
          %228 = sbr.rel (%p226) target = $region20
        $region19: #{tpu_custom_call.1} parent=11 // pred_region
          _
        $region20: #{tpu_custom_call.1} parent=11 // pred_fallthru
          _
        // Predicated region
        $region21: #{tpu_custom_call.1} parent=11 // pred_check
          %p229 = pneg %p109
        $region22: #{tpu_custom_call.1} parent=11 // pred_check_branch
          %231 = sbr.rel (%p229) target = $region24
        $region23: #{tpu_custom_call.1} parent=11 // pred_region
          %s233 = ssub.s32 9216, 9216
          %234 = vsyncadd [#allocation8], %s233
          %s235 = sshll.u32 [#allocation9], 4
          %s236 = int_to_ptr.vmem [resolvable:$true] %s235
          %241 = dma.hbm_to_vmem [thread:$0]  %s3, 9216, %s236, [#allocation8], 64, 64, 4
        $region24: #{tpu_custom_call.1} parent=11 // pred_fallthru
          _
        // Predicated region
        $region25: #{tpu_custom_call.1} parent=11 // pred_check
          %p242 = pneg %p130
        $region26: #{tpu_custom_call.1} parent=11 // pred_check_branch
          %244 = sbr.rel (%p242) target = $region28
        $region27: #{tpu_custom_call.1} parent=11 // pred_region
          _
        $region28: #{tpu_custom_call.1} parent=11 // pred_fallthru
          _
        // Predicated region
        $region29: #{tpu_custom_call.1} parent=11 // pred_check
          %p245 = pneg %p151
        $region30: #{tpu_custom_call.1} parent=11 // pred_check_branch
          %247 = sbr.rel (%p245) target = $region32
        $region31: #{tpu_custom_call.1} parent=11 // pred_region
          _
        $region32: #{tpu_custom_call.1} parent=11 // pred_fallthru
          _
        // Predicated region
        $region33: #{tpu_custom_call.1} parent=11 // pred_check
          %p248 = pneg %p172
        $region34: #{tpu_custom_call.1} parent=11 // pred_check_branch
          %250 = sbr.rel (%p248) target = $region36
        $region35: #{tpu_custom_call.1} parent=11 // pred_region
          _
        $region36: #{tpu_custom_call.1} parent=11 // pred_fallthru
          _
      $region12: #{tpu_custom_call.1} parent=5 // pred_fallthru
        _
      %p251 = scmp.lt.s32.totalorder %s20, 2
      // Predicated region
      $region37: #{tpu_custom_call.1} parent=5 // pred_check
        %p252 = pneg %p251
      $region38: #{tpu_custom_call.1} parent=5 // pred_check_branch
        %254 = sbr.rel (%p252) target = $region40
      $region39: #{tpu_custom_call.1} parent=5 // pred_region
        // Predicated region
        $region41: #{tpu_custom_call.1} parent=39 // pred_check
          %p255 = pneg %p40
        $region42: #{tpu_custom_call.1} parent=39 // pred_check_branch
          %257 = sbr.rel (%p255) target = $region44
        $region43: #{tpu_custom_call.1} parent=39 // pred_region
          %s258 = sand.u32 %s30, 1
          %s259 = scalar_lea.sflag [#allocation5], %s258
          %s260 = sand.u32 %s30, 1
          %s261 = smul.addr %s260, 32
          %s262 = scalar_lea.vmem [#allocation4], %s261
          %s264 = ssub.s32 512, 512
          %265 = vsyncadd %s259, %s264
          %s266 = smul.addr %s20, 8
          %s267 = smul.addr %s266, 64
          %s268 = scalar_lea.hbm %s0, %s267
          %s269 = sshll.u32 %s262, 4
          %s270 = int_to_ptr.vmem [resolvable:$true] %s269
          %275 = dma.hbm_to_vmem [thread:$0]  %s268, 512, %s270, %s259, 64, 64, 4
        $region44: #{tpu_custom_call.1} parent=39 // pred_fallthru
          _
      $region40: #{tpu_custom_call.1} parent=5 // pred_fallthru
        _
      %p276 = scmp.le.s32.totalorder 1, %s20
      %p277 = scmp.lt.s32.totalorder %s20, 3
      %p278 = pnand %p276, %p277
      %p279 = pneg %p278
      // Predicated region
      $region45: #{tpu_custom_call.1} parent=5 // pred_check
        _
      $region46: #{tpu_custom_call.1} parent=5 // pred_check_branch
        %281 = sbr.rel (%p278) target = $region48
      $region47: #{tpu_custom_call.1} parent=5 // pred_region
        %s282 = ssub.s32 %s20, 1
        %s283 = sand.u32 %s33, 1
        %s284 = scalar_lea.sflag [#allocation5], %s283
        %s285 = sand.u32 %s33, 1
        %s286 = smul.addr %s285, 32
        %s287 = scalar_lea.vmem [#allocation4], %s286
        // Predicated region
        $region49: #{tpu_custom_call.1} parent=47 // pred_check
          %p288 = pneg %p46
        $region50: #{tpu_custom_call.1} parent=47 // pred_check_branch
          %290 = sbr.rel (%p288) target = $region52
        $region51: #{tpu_custom_call.1} parent=47 // pred_region
          %291 = dma.done %s284, 512
        $region52: #{tpu_custom_call.1} parent=47 // pred_fallthru
          _
        // Predicated region
        $region53: #{tpu_custom_call.1} parent=47 // pred_check
          %p292 = pneg %p67
        $region54: #{tpu_custom_call.1} parent=47 // pred_check_branch
          %294 = sbr.rel (%p292) target = $region56
        $region55: #{tpu_custom_call.1} parent=47 // pred_region
          %295 = dma.done [#allocation8], 288
        $region56: #{tpu_custom_call.1} parent=47 // pred_fallthru
          _
        // Predicated region
        $region57: #{tpu_custom_call.1} parent=47 // pred_check
          %p296 = pneg %p109
        $region58: #{tpu_custom_call.1} parent=47 // pred_check_branch
          %298 = sbr.rel (%p296) target = $region60
        $region59: #{tpu_custom_call.1} parent=47 // pred_region
          %299 = dma.done [#allocation8], 9216
        $region60: #{tpu_custom_call.1} parent=47 // pred_fallthru
          _
        %s300 = sand.u32 %s33, 1
        %s301 = scalar_lea.sflag [#allocation5], %s300
        %s302 = sand.u32 %s33, 1
        %s303 = smul.addr %s302, 32
        %s304 = scalar_lea.vmem [#allocation4], %s303
        %p305 = pneg %p46
        %p306 = pneg %p43
        %p307 = pneg %p67
        %p308 = pneg %p64
        %p309 = pneg %p88
        %p310 = pneg %p85
        %p311 = pneg %p109
        %p312 = pneg %p106
        %p313 = pneg %p130
        %p314 = pneg %p127
        %p315 = pneg %p151
        %p316 = pneg %p148
        %p317 = pneg %p172
        %p318 = pneg %p169
        %p319 = pneg %p198
        %p320 = pneg %p195
        %s321 = sand.u32 %s185, 1
        %s322 = scalar_lea.sflag [#allocation6], %s321
        %s323 = sand.u32 %s185, 1
        %s324 = smul.addr %s323, 64
        %s325 = scalar_lea.vmem [#allocation10], %s324
        %vm327 = vcmask 125952
        %328 = vst.msk [vmem:[#allocation2] sm:$0xf] %vm327, 0
        %vm329 = vcmask 122880
        %vm330 = vsmask.f32 256
        %vm331 = vmand %vm329, %vm330
        %v332 = vld [vmem:[#allocation2 + $0x4] sm:$0x1]
        %v333 = vsel %vm331, 0, %v332
        %334 = vst [vmem:[#allocation2 + $0x4] sm:$0x1] %v333
        %v335 = vld [vmem:[#allocation2] sm:$0x1]
        %v336 = vsel %vm331, 0, %v335
        %337 = vst [vmem:[#allocation2] sm:$0x1] %v336
        %v338 = vld [vmem:[#allocation2 + $0x8] sm:$0x1]
        %v339 = vsel %vm331, 0, %v338
        %340 = vst [vmem:[#allocation2 + $0x8] sm:$0x1] %v339
        %v341 = vld [vmem:[#allocation2 + $0x10] sm:$0x1]
        %v342 = vsel %vm331, 0, %v341
        %343 = vst [vmem:[#allocation2 + $0x10] sm:$0x1] %v342
        %v344 = vld [vmem:[#allocation2 + $0x18] sm:$0x1]
        %v345 = vsel %vm331, 0, %v344
        %346 = vst [vmem:[#allocation2 + $0x18] sm:$0x1] %v345
        %v347 = vld [vmem:[#allocation2 + $0x20] sm:$0x1]
        %v348 = vsel %vm331, 0, %v347
        %349 = vst [vmem:[#allocation2 + $0x20] sm:$0x1] %v348
        %v350 = vld [vmem:[#allocation2 + $0x28] sm:$0x1]
        %v351 = vsel %vm331, 0, %v350
        %352 = vst [vmem:[#allocation2 + $0x28] sm:$0x1] %v351
        %v353 = vld [vmem:[#allocation2 + $0x30] sm:$0x1]
        %v354 = vsel %vm331, 0, %v353
        %355 = vst [vmem:[#allocation2 + $0x30] sm:$0x1] %v354
        %v356 = vld [vmem:[#allocation2 + $0x38] sm:$0x1]
        %v357 = vsel %vm331, 0, %v356
        %358 = vst [vmem:[#allocation2 + $0x38] sm:$0x1] %v357
        %v359 = vld [vmem:[#allocation2 + $0x40] sm:$0x1]
        %v360 = vsel %vm331, 0, %v359
        %361 = vst [vmem:[#allocation2 + $0x40] sm:$0x1] %v360
        %362 = vst [vmem:[#allocation3] sm:$0xf] 0
        %363 = vst [vmem:[#allocation3 + $0x4] sm:$0x1] 0
        %s364 = scalar_lea.vmem [#allocation3], 72
        %365 = vst [vmem:[%s364] sm:$0xf] 0
        %366 = vst [vmem:[%s364 + $0x4] sm:$0x1] 0
        %vm367 = vcmask 1040384
        %vm368 = vmand %vm367, %vm330
        %v369 = vld [vmem:[#allocation3] sm:$0x1]
        %v370 = vsel %vm368, 0, %v369
        %371 = vst [vmem:[#allocation3] sm:$0x1] %v370
        %v372 = vld [vmem:[#allocation3 + $0x8] sm:$0x1]
        %v373 = vsel %vm368, 0, %v372
        %374 = vst [vmem:[#allocation3 + $0x8] sm:$0x1] %v373
        %v375 = vld [vmem:[#allocation3 + $0x10] sm:$0x1]
        %v376 = vsel %vm368, 0, %v375
        %377 = vst [vmem:[#allocation3 + $0x10] sm:$0x1] %v376
        %v378 = vld [vmem:[#allocation3 + $0x18] sm:$0x1]
        %v379 = vsel %vm368, 0, %v378
        %380 = vst [vmem:[#allocation3 + $0x18] sm:$0x1] %v379
        %v381 = vld [vmem:[#allocation3 + $0x20] sm:$0x1]
        %v382 = vsel %vm368, 0, %v381
        %383 = vst [vmem:[#allocation3 + $0x20] sm:$0x1] %v382
        %v384 = vld [vmem:[#allocation3 + $0x28] sm:$0x1]
        %v385 = vsel %vm368, 0, %v384
        %386 = vst [vmem:[#allocation3 + $0x28] sm:$0x1] %v385
        %v387 = vld [vmem:[#allocation3 + $0x30] sm:$0x1]
        %v388 = vsel %vm368, 0, %v387
        %389 = vst [vmem:[#allocation3 + $0x30] sm:$0x1] %v388
        %v390 = vld [vmem:[#allocation3 + $0x38] sm:$0x1]
        %v391 = vsel %vm368, 0, %v390
        %392 = vst [vmem:[#allocation3 + $0x38] sm:$0x1] %v391
        %v393 = vld [vmem:[#allocation3 + $0x40] sm:$0x1]
        %v394 = vsel %vm368, 0, %v393
        %395 = vst [vmem:[#allocation3 + $0x40] sm:$0x1] %v394
        %v396 = vld [vmem:[#allocation3 + $0x48] sm:$0x1]
        %v397 = vsel %vm368, 0, %v396
        %398 = vst [vmem:[#allocation3 + $0x48] sm:$0x1] %v397
        %vm399 = vsmask.f32 7938
        %vm400 = vmand %vm367, %vm399
        %v401 = vld [vmem:[#allocation3 + $0x4] sm:$0x1]
        %v402 = vsel %vm400, 0, %v401
        %403 = vst [vmem:[#allocation3 + $0x4] sm:$0x1] %v402
        %v404 = vld [vmem:[#allocation3 + $0xc] sm:$0x1]
        %v405 = vsel %vm400, 0, %v404
        %406 = vst [vmem:[#allocation3 + $0xc] sm:$0x1] %v405
        %v407 = vld [vmem:[#allocation3 + $0x14] sm:$0x1]
        %v408 = vsel %vm400, 0, %v407
        %409 = vst [vmem:[#allocation3 + $0x14] sm:$0x1] %v408
        %v410 = vld [vmem:[#allocation3 + $0x1c] sm:$0x1]
        %v411 = vsel %vm400, 0, %v410
        %412 = vst [vmem:[#allocation3 + $0x1c] sm:$0x1] %v411
        %v413 = vld [vmem:[#allocation3 + $0x24] sm:$0x1]
        %v414 = vsel %vm400, 0, %v413
        %415 = vst [vmem:[#allocation3 + $0x24] sm:$0x1] %v414
        %v416 = vld [vmem:[#allocation3 + $0x2c] sm:$0x1]
        %v417 = vsel %vm400, 0, %v416
        %418 = vst [vmem:[#allocation3 + $0x2c] sm:$0x1] %v417
        %v419 = vld [vmem:[#allocation3 + $0x34] sm:$0x1]
        %v420 = vsel %vm400, 0, %v419
        %421 = vst [vmem:[#allocation3 + $0x34] sm:$0x1] %v420
        %v422 = vld [vmem:[#allocation3 + $0x3c] sm:$0x1]
        %v423 = vsel %vm400, 0, %v422
        %424 = vst [vmem:[#allocation3 + $0x3c] sm:$0x1] %v423
        %v425 = vld [vmem:[#allocation3 + $0x44] sm:$0x1]
        %v426 = vsel %vm400, 0, %v425
        %427 = vst [vmem:[#allocation3 + $0x44] sm:$0x1] %v426
        %v428 = vld [vmem:[#allocation3 + $0x4c] sm:$0x1]
        %v429 = vsel %vm400, 0, %v428
        %430 = vst [vmem:[#allocation3 + $0x4c] sm:$0x1] %v429
        %v431 = vld [vmem:[%s287] sm:$0xf]
        %v432 = vld [vmem:[%s287 + $0x4] sm:$0xf]
        %v433 = vld [vmem:[%s287 + $0x8] sm:$0xf]
        %v434 = vld [vmem:[%s287 + $0xc] sm:$0xf]
        %v435 = vld [vmem:[%s287 + $0x10] sm:$0xf]
        %v436 = vld [vmem:[%s287 + $0x14] sm:$0xf]
        %v437 = vld [vmem:[%s287 + $0x18] sm:$0xf]
        %v438 = vld [vmem:[%s287 + $0x1c] sm:$0xf]
        %v440 = vshrl.u32 %v431, 16
        %v442 = vrot.slane %v440, 7
        %v443 = vshll.u32 %v431, 16
        %v445 = vor.u32 %v442, %v443
        %v446 = vrot.slane %v442, 4
        %v448 = vshrl.u32 %v432, 16
        %v450 = vrot.slane %v448, 7
        %v451 = vshll.u32 %v432, 16
        %v453 = vor.u32 %v450, %v451
        %v454 = vrot.slane %v450, 4
        %v456 = vshrl.u32 %v433, 16
        %v458 = vrot.slane %v456, 7
        %v459 = vshll.u32 %v433, 16
        %v461 = vor.u32 %v458, %v459
        %v462 = vrot.slane %v458, 4
        %v464 = vshrl.u32 %v434, 16
        %v466 = vrot.slane %v464, 7
        %v467 = vshll.u32 %v434, 16
        %v469 = vor.u32 %v466, %v467
        %v470 = vrot.slane %v466, 4
        %v472 = vshrl.u32 %v435, 16
        %v474 = vrot.slane %v472, 7
        %v475 = vshll.u32 %v435, 16
        %v477 = vor.u32 %v474, %v475
        %v478 = vrot.slane %v474, 4
        %v480 = vshrl.u32 %v436, 16
        %v482 = vrot.slane %v480, 7
        %v483 = vshll.u32 %v436, 16
        %v485 = vor.u32 %v482, %v483
        %v486 = vrot.slane %v482, 4
        %v488 = vshrl.u32 %v437, 16
        %v490 = vrot.slane %v488, 7
        %v491 = vshll.u32 %v437, 16
        %v493 = vor.u32 %v490, %v491
        %v494 = vrot.slane %v490, 4
        %v496 = vshrl.u32 %v438, 16
        %v498 = vrot.slane %v496, 7
        %v499 = vshll.u32 %v438, 16
        %v501 = vor.u32 %v498, %v499
        %v502 = vrot.slane %v498, 4
        %s519 = scalar_lea.vmem [#allocation2], 8
        %vm520 = vcmask 125952
        %vm521 = vmand %vm520, %vm399
        %v522 = vld [vmem:[%s519] sm:$0xf]
        %v523 = vsel %vm521, %v445, %v522
        %524 = vst [vmem:[%s519] sm:$0xf] %v523
        %v525 = vld [vmem:[%s519 + $0x4] sm:$0x1]
        %v526 = vsel %vm331, %v446, %v525
        %527 = vst [vmem:[%s519 + $0x4] sm:$0x1] %v526
        %v528 = vld [vmem:[%s519 + $0x8] sm:$0xf]
        %v529 = vsel %vm521, %v453, %v528
        %530 = vst [vmem:[%s519 + $0x8] sm:$0xf] %v529
        %v531 = vld [vmem:[%s519 + $0xc] sm:$0x1]
        %v532 = vsel %vm331, %v454, %v531
        %533 = vst [vmem:[%s519 + $0xc] sm:$0x1] %v532
        %v534 = vld [vmem:[%s519 + $0x10] sm:$0xf]
        %v535 = vsel %vm521, %v461, %v534
        %536 = vst [vmem:[%s519 + $0x10] sm:$0xf] %v535
        %v537 = vld [vmem:[%s519 + $0x14] sm:$0x1]
        %v538 = vsel %vm331, %v462, %v537
        %539 = vst [vmem:[%s519 + $0x14] sm:$0x1] %v538
        %v540 = vld [vmem:[%s519 + $0x18] sm:$0xf]
        %v541 = vsel %vm521, %v469, %v540
        %542 = vst [vmem:[%s519 + $0x18] sm:$0xf] %v541
        %v543 = vld [vmem:[%s519 + $0x1c] sm:$0x1]
        %v544 = vsel %vm331, %v470, %v543
        %545 = vst [vmem:[%s519 + $0x1c] sm:$0x1] %v544
        %v546 = vld [vmem:[%s519 + $0x20] sm:$0xf]
        %v547 = vsel %vm521, %v477, %v546
        %548 = vst [vmem:[%s519 + $0x20] sm:$0xf] %v547
        %v549 = vld [vmem:[%s519 + $0x24] sm:$0x1]
        %v550 = vsel %vm331, %v478, %v549
        %551 = vst [vmem:[%s519 + $0x24] sm:$0x1] %v550
        %v552 = vld [vmem:[%s519 + $0x28] sm:$0xf]
        %v553 = vsel %vm521, %v485, %v552
        %554 = vst [vmem:[%s519 + $0x28] sm:$0xf] %v553
        %v555 = vld [vmem:[%s519 + $0x2c] sm:$0x1]
        %v556 = vsel %vm331, %v486, %v555
        %557 = vst [vmem:[%s519 + $0x2c] sm:$0x1] %v556
        %v558 = vld [vmem:[%s519 + $0x30] sm:$0xf]
        %v559 = vsel %vm521, %v493, %v558
        %560 = vst [vmem:[%s519 + $0x30] sm:$0xf] %v559
        %v561 = vld [vmem:[%s519 + $0x34] sm:$0x1]
        %v562 = vsel %vm331, %v494, %v561
        %563 = vst [vmem:[%s519 + $0x34] sm:$0x1] %v562
        %v564 = vld [vmem:[%s519 + $0x38] sm:$0xf]
        %v565 = vsel %vm521, %v501, %v564
        %566 = vst [vmem:[%s519 + $0x38] sm:$0xf] %v565
        %v567 = vld [vmem:[%s519 + $0x3c] sm:$0x1]
        %v568 = vsel %vm331, %v502, %v567
        %569 = vst [vmem:[%s519 + $0x3c] sm:$0x1] %v568
        %v570 = vld [vmem:[#allocation2] sm:$0xf]
        %v571 = vld [vmem:[#allocation2 + $0x8] sm:$0xf]
        %v572 = vld [vmem:[#allocation2 + $0x10] sm:$0xf]
        %v573 = vld [vmem:[#allocation2 + $0x18] sm:$0xf]
        %v574 = vld [vmem:[#allocation2 + $0x20] sm:$0xf]
        %v575 = vld [vmem:[#allocation2 + $0x28] sm:$0xf]
        %v576 = vld [vmem:[#allocation2 + $0x30] sm:$0xf]
        %v577 = vld [vmem:[#allocation2 + $0x38] sm:$0xf]
        %v578 = vld [vmem:[#allocation7] sm:$0x3]
        %v579 = vld [vmem:[#allocation2 + $0x4] sm:$0x1]
        %v580 = vld [vmem:[#allocation2 + $0xc] sm:$0x1]
        %v581 = vld [vmem:[#allocation2 + $0x14] sm:$0x1]
        %v582 = vld [vmem:[#allocation2 + $0x1c] sm:$0x1]
        %v583 = vld [vmem:[#allocation2 + $0x24] sm:$0x1]
        %v584 = vld [vmem:[#allocation2 + $0x2c] sm:$0x1]
        %v585 = vld [vmem:[#allocation2 + $0x34] sm:$0x1]
        %v586 = vld [vmem:[#allocation2 + $0x3c] sm:$0x1]
        %vm587 = vsmask.f32 3328
        %vm588 = vsmask.f32 7440
        %vm589 = vmor %vm587, %vm588
        %v591 = vshrl.u32 %v570, 16
        %v593 = vrot.slane %v591, 4
        %v594 = vshll.u32 %v570, 16
        %v596 = vrot.slane %v594, 5
        %v597 = vor.u32 %v593, %v596
        %v598 = vrot.slane %v597, 4
        %v600 = vshll.u32 %v579, 16
        %v602 = vrot.slane %v600, 5
        %v603 = vsel %vm589, %v598, %v602
        %v605 = vshrl.u32 %v571, 16
        %v607 = vrot.slane %v605, 4
        %v608 = vshll.u32 %v571, 16
        %v610 = vrot.slane %v608, 5
        %v611 = vor.u32 %v607, %v610
        %v612 = vrot.slane %v611, 4
        %v614 = vshll.u32 %v580, 16
        %v616 = vrot.slane %v614, 5
        %v617 = vsel %vm589, %v612, %v616
        %v619 = vshrl.u32 %v572, 16
        %v621 = vrot.slane %v619, 4
        %v622 = vshll.u32 %v572, 16
        %v624 = vrot.slane %v622, 5
        %v625 = vor.u32 %v621, %v624
        %v626 = vrot.slane %v625, 4
        %v628 = vshll.u32 %v581, 16
        %v630 = vrot.slane %v628, 5
        %v631 = vsel %vm589, %v626, %v630
        %v633 = vshrl.u32 %v573, 16
        %v635 = vrot.slane %v633, 4
        %v636 = vshll.u32 %v573, 16
        %v638 = vrot.slane %v636, 5
        %v639 = vor.u32 %v635, %v638
        %v640 = vrot.slane %v639, 4
        %v642 = vshll.u32 %v582, 16
        %v644 = vrot.slane %v642, 5
        %v645 = vsel %vm589, %v640, %v644
        %v647 = vshrl.u32 %v574, 16
        %v649 = vrot.slane %v647, 4
        %v650 = vshll.u32 %v574, 16
        %v652 = vrot.slane %v650, 5
        %v653 = vor.u32 %v649, %v652
        %v654 = vrot.slane %v653, 4
        %v656 = vshll.u32 %v583, 16
        %v658 = vrot.slane %v656, 5
        %v659 = vsel %vm589, %v654, %v658
        %v661 = vshrl.u32 %v575, 16
        %v663 = vrot.slane %v661, 4
        %v664 = vshll.u32 %v575, 16
        %v666 = vrot.slane %v664, 5
        %v667 = vor.u32 %v663, %v666
        %v668 = vrot.slane %v667, 4
        %v670 = vshll.u32 %v584, 16
        %v672 = vrot.slane %v670, 5
        %v673 = vsel %vm589, %v668, %v672
        %v675 = vshrl.u32 %v576, 16
        %v677 = vrot.slane %v675, 4
        %v678 = vshll.u32 %v576, 16
        %v680 = vrot.slane %v678, 5
        %v681 = vor.u32 %v677, %v680
        %v682 = vrot.slane %v681, 4
        %v684 = vshll.u32 %v585, 16
        %v686 = vrot.slane %v684, 5
        %v687 = vsel %vm589, %v682, %v686
        %v689 = vshrl.u32 %v577, 16
        %v691 = vrot.slane %v689, 4
        %v692 = vshll.u32 %v577, 16
        %v694 = vrot.slane %v692, 5
        %v695 = vor.u32 %v691, %v694
        %v696 = vrot.slane %v695, 4
        %v698 = vshll.u32 %v586, 16
        %v700 = vrot.slane %v698, 5
        %v701 = vsel %vm589, %v696, %v700
        %s702 = scalar_lea.vmem [#allocation7], 2
        %v703 = vld [vmem:[%s702] sm:$0x3]
        %v704 = vunpack.c.l.b16 %v603
        %v705 = vunpack.c.l.b16 %v617
        %v706 = vunpack.c.l.b16 %v631
        %v707 = vunpack.c.l.b16 %v645
        %v708 = vunpack.c.l.b16 %v659
        %v709 = vunpack.c.l.b16 %v673
        %v710 = vunpack.c.l.b16 %v687
        %v711 = vunpack.c.l.b16 %v701
        %v712 = vpack.c.b16 %v705, %v704
        %v713 = vpack.c.b16 %v707, %v706
        %v714 = vpack.c.b16 %v709, %v708
        %v715 = vpack.c.b16 %v711, %v710
        %716 = vrot.lane.b32.xlu0 %v712, 120
        %v717 = vpop.permute.xlu0 %716
        %718 = vrot.lane.b32.xlu0 %v713, 120
        %v719 = vpop.permute.xlu0 %718
        %720 = vrot.lane.b32.xlu0 %v714, 120
        %v721 = vpop.permute.xlu0 %720
        %722 = vrot.lane.b32.xlu0 %v715, 120
        %v723 = vpop.permute.xlu0 %722
        %vm724 = vcmask 31744
        %v726 = vsel %vm724, %v717, 0
        %v729 = vsel %vm724, %v719, 0
        %v732 = vsel %vm724, %v721, 0
        %v735 = vsel %vm724, %v723, 0
        %vm737 = vcmask 1041408
        %v739 = vsel %vm737, %v703, 0
        %741 = vmatprep.subr.bf16.mxu0 0
        %742 = vmatpush1.bf16.msra.mxu0 0
        %743 = vmatprep.subr.bf16.mxu0 0
        %744 = vmatpush1.bf16.msra.mxu0 0
        %745 = vmatprep.subr.bf16.mxu0 0
        %746 = vmatpush1.bf16.msra.mxu0 0
        %747 = vmatprep.subr.bf16.mxu0 0
        %748 = vmatpush1.bf16.msra.mxu0 0
        %749 = vmatprep.subr.bf16.mxu0 0
        %750 = vmatpush1.bf16.msra.mxu0 0
        %751 = vmatprep.subr.bf16.mxu0 0
        %752 = vmatpush1.bf16.msra.mxu0 0
        %753 = vmatprep.subr.bf16.mxu0 0
        %754 = vmatpush1.bf16.msra.mxu0 0
        %755 = vmatprep.subr.bf16.mxu0 0
        %756 = vmatpush1.bf16.msra.mxu0 %v739
        %757 = vmatprep.subr.bf16.mxu0 0
        %758 = vmatpush2.bf16.msra.mxu0 0
        %759 = vmatprep.subr.bf16.mxu0 0
        %760 = vmatpush2.bf16.msra.mxu0 0
        %761 = vmatprep.subr.bf16.mxu0 0
        %762 = vmatpush2.bf16.msra.mxu0 0
        %763 = vmatprep.subr.bf16.mxu0 0
        %764 = vmatpush2.bf16.msra.mxu0 0
        %765 = vmatprep.subr.bf16.mxu0 0
        %766 = vmatpush2.bf16.msra.mxu0 0
        %767 = vmatprep.subr.bf16.mxu0 0
        %768 = vmatpush2.bf16.msra.mxu0 0
        %769 = vmatprep.subr.bf16.mxu0 0
        %770 = vmatpush2.bf16.msra.mxu0 0
        %771 = vmatprep.subr.bf16.mxu0 0
        %772 = vmatpush2.bf16.msra.mxu0 0
        %773 = vmatprep.mubr.bf16.mxu0 0
        %774 = vmatmul.mubr.bf16.gmra.mxu0 %v726
        %v775 = vpop.f32.mrf.mxu0
        %v776 = vadd.f32 0.0, %v775
        %v777 = vpop.f32.mrf.mxu0
        %v778 = vpop.f32.mrf.mxu0
        %v779 = vadd.f32 0.0, %v778
        %v780 = vpop.f32.mrf.mxu0
        %781 = vmatprep.mubr.bf16.mxu0 0
        %782 = vmatmul.mubr.bf16.gmra.mxu0 %v729
        %v783 = vpop.f32.mrf.mxu0
        %v784 = vadd.f32 0.0, %v783
        %v785 = vpop.f32.mrf.mxu0
        %v786 = vpop.f32.mrf.mxu0
        %v787 = vadd.f32 0.0, %v786
        %v788 = vpop.f32.mrf.mxu0
        %789 = vmatprep.mubr.bf16.mxu0 0
        %790 = vmatmul.mubr.bf16.gmra.mxu0 %v732
        %v791 = vpop.f32.mrf.mxu0
        %v792 = vadd.f32 0.0, %v791
        %v793 = vpop.f32.mrf.mxu0
        %v794 = vpop.f32.mrf.mxu0
        %v795 = vadd.f32 0.0, %v794
        %v796 = vpop.f32.mrf.mxu0
        %797 = vmatprep.mubr.bf16.mxu0 0
        %798 = vmatmul.mubr.bf16.gmra.mxu0 %v735
        %v799 = vpop.f32.mrf.mxu0
        %v800 = vadd.f32 0.0, %v799
        %v801 = vpop.f32.mrf.mxu0
        %v802 = vpop.f32.mrf.mxu0
        %v803 = vadd.f32 0.0, %v802
        %v804 = vpop.f32.mrf.mxu0
        %805 = vdwg.mxu0
        %v814 = vunpack.c.l.b16 %v570
        %v815 = vunpack.c.l.b16 %v571
        %v816 = vunpack.c.l.b16 %v572
        %v817 = vunpack.c.l.b16 %v573
        %v818 = vunpack.c.l.b16 %v574
        %v819 = vunpack.c.l.b16 %v575
        %v820 = vunpack.c.l.b16 %v576
        %v821 = vunpack.c.l.b16 %v577
        %v822 = vpack.c.b16 %v815, %v814
        %v823 = vpack.c.b16 %v817, %v816
        %v824 = vpack.c.b16 %v819, %v818
        %v825 = vpack.c.b16 %v821, %v820
        %826 = vrot.lane.b32.xlu0 %v822, 116
        %v827 = vpop.permute.xlu0 %826
        %828 = vrot.lane.b32.xlu0 %v823, 116
        %v829 = vpop.permute.xlu0 %828
        %830 = vrot.lane.b32.xlu0 %v824, 116
        %v831 = vpop.permute.xlu0 %830
        %832 = vrot.lane.b32.xlu0 %v825, 116
        %v833 = vpop.permute.xlu0 %832
        %v835 = vsel %vm724, %v827, 0
        %v838 = vsel %vm724, %v829, 0
        %v841 = vsel %vm724, %v831, 0
        %v844 = vsel %vm724, %v833, 0
        %v847 = vsel %vm737, %v578, 0
        %849 = vmatprep.subr.bf16.mxu0 0
        %850 = vmatpush1.bf16.msra.mxu0 0
        %851 = vmatprep.subr.bf16.mxu0 0
        %852 = vmatpush1.bf16.msra.mxu0 0
        %853 = vmatprep.subr.bf16.mxu0 0
        %854 = vmatpush1.bf16.msra.mxu0 0
        %855 = vmatprep.subr.bf16.mxu0 0
        %856 = vmatpush1.bf16.msra.mxu0 0
        %857 = vmatprep.subr.bf16.mxu0 0
        %858 = vmatpush1.bf16.msra.mxu0 0
        %859 = vmatprep.subr.bf16.mxu0 0
        %860 = vmatpush1.bf16.msra.mxu0 0
        %861 = vmatprep.subr.bf16.mxu0 0
        %862 = vmatpush1.bf16.msra.mxu0 0
        %863 = vmatprep.subr.bf16.mxu0 0
        %864 = vmatpush1.bf16.msra.mxu0 %v847
        %865 = vmatprep.subr.bf16.mxu0 0
        %866 = vmatpush2.bf16.msra.mxu0 0
        %867 = vmatprep.subr.bf16.mxu0 0
        %868 = vmatpush2.bf16.msra.mxu0 0
        %869 = vmatprep.subr.bf16.mxu0 0
        %870 = vmatpush2.bf16.msra.mxu0 0
        %871 = vmatprep.subr.bf16.mxu0 0
        %872 = vmatpush2.bf16.msra.mxu0 0
        %873 = vmatprep.subr.bf16.mxu0 0
        %874 = vmatpush2.bf16.msra.mxu0 0
        %875 = vmatprep.subr.bf16.mxu0 0
        %876 = vmatpush2.bf16.msra.mxu0 0
        %877 = vmatprep.subr.bf16.mxu0 0
        %878 = vmatpush2.bf16.msra.mxu0 0
        %879 = vmatprep.subr.bf16.mxu0 0
        %880 = vmatpush2.bf16.msra.mxu0 0
        %881 = vmatprep.mubr.bf16.mxu0 0
        %882 = vmatmul.mubr.bf16.gmra.mxu0 %v835
        %v883 = vpop.f32.mrf.mxu0
        %v884 = vadd.f32 %v776, %v883
        %v885 = vpop.f32.mrf.mxu0
        %v886 = vpop.f32.mrf.mxu0
        %v887 = vadd.f32 %v779, %v886
        %v888 = vpop.f32.mrf.mxu0
        %889 = vmatprep.mubr.bf16.mxu0 0
        %890 = vmatmul.mubr.bf16.gmra.mxu0 %v838
        %v891 = vpop.f32.mrf.mxu0
        %v892 = vadd.f32 %v784, %v891
        %v893 = vpop.f32.mrf.mxu0
        %v894 = vpop.f32.mrf.mxu0
        %v895 = vadd.f32 %v787, %v894
        %v896 = vpop.f32.mrf.mxu0
        %897 = vmatprep.mubr.bf16.mxu0 0
        %898 = vmatmul.mubr.bf16.gmra.mxu0 %v841
        %v899 = vpop.f32.mrf.mxu0
        %v900 = vadd.f32 %v792, %v899
        %v901 = vpop.f32.mrf.mxu0
        %v902 = vpop.f32.mrf.mxu0
        %v903 = vadd.f32 %v795, %v902
        %v904 = vpop.f32.mrf.mxu0
        %905 = vmatprep.mubr.bf16.mxu0 0
        %906 = vmatmul.mubr.bf16.gmra.mxu0 %v844
        %v907 = vpop.f32.mrf.mxu0
        %v908 = vadd.f32 %v800, %v907
        %v909 = vpop.f32.mrf.mxu0
        %v910 = vpop.f32.mrf.mxu0
        %v911 = vadd.f32 %v803, %v910
        %v912 = vpop.f32.mrf.mxu0
        %913 = vdwg.mxu0
        %s914 = scalar_lea.vmem [#allocation7], 4
        %v915 = vld [vmem:[%s914] sm:$0x3]
        %916 = vrot.lane.b32.xlu0 %v712, 116
        %v917 = vpop.permute.xlu0 %916
        %918 = vrot.lane.b32.xlu0 %v713, 116
        %v919 = vpop.permute.xlu0 %918
        %920 = vrot.lane.b32.xlu0 %v714, 116
        %v921 = vpop.permute.xlu0 %920
        %922 = vrot.lane.b32.xlu0 %v715, 116
        %v923 = vpop.permute.xlu0 %922
        %v925 = vsel %vm724, %v917, 0
        %v928 = vsel %vm724, %v919, 0
        %v931 = vsel %vm724, %v921, 0
        %v934 = vsel %vm724, %v923, 0
        %v937 = vsel %vm737, %v915, 0
        %939 = vmatprep.subr.bf16.mxu0 0
        %940 = vmatpush1.bf16.msra.mxu0 0
        %941 = vmatprep.subr.bf16.mxu0 0
        %942 = vmatpush1.bf16.msra.mxu0 0
        %943 = vmatprep.subr.bf16.mxu0 0
        %944 = vmatpush1.bf16.msra.mxu0 0
        %945 = vmatprep.subr.bf16.mxu0 0
        %946 = vmatpush1.bf16.msra.mxu0 0
        %947 = vmatprep.subr.bf16.mxu0 0
        %948 = vmatpush1.bf16.msra.mxu0 0
        %949 = vmatprep.subr.bf16.mxu0 0
        %950 = vmatpush1.bf16.msra.mxu0 0
        %951 = vmatprep.subr.bf16.mxu0 0
        %952 = vmatpush1.bf16.msra.mxu0 0
        %953 = vmatprep.subr.bf16.mxu0 0
        %954 = vmatpush1.bf16.msra.mxu0 %v937
        %955 = vmatprep.subr.bf16.mxu0 0
        %956 = vmatpush2.bf16.msra.mxu0 0
        %957 = vmatprep.subr.bf16.mxu0 0
        %958 = vmatpush2.bf16.msra.mxu0 0
        %959 = vmatprep.subr.bf16.mxu0 0
        %960 = vmatpush2.bf16.msra.mxu0 0
        %961 = vmatprep.subr.bf16.mxu0 0
        %962 = vmatpush2.bf16.msra.mxu0 0
        %963 = vmatprep.subr.bf16.mxu0 0
        %964 = vmatpush2.bf16.msra.mxu0 0
        %965 = vmatprep.subr.bf16.mxu0 0
        %966 = vmatpush2.bf16.msra.mxu0 0
        %967 = vmatprep.subr.bf16.mxu0 0
        %968 = vmatpush2.bf16.msra.mxu0 0
        %969 = vmatprep.subr.bf16.mxu0 0
        %970 = vmatpush2.bf16.msra.mxu0 0
        %971 = vmatprep.mubr.bf16.mxu0 0
        %972 = vmatmul.mubr.bf16.gmra.mxu0 %v925
        %v973 = vpop.f32.mrf.mxu0
        %v974 = vadd.f32 0.0, %v973
        %v975 = vpop.f32.mrf.mxu0
        %v976 = vpop.f32.mrf.mxu0
        %v977 = vadd.f32 0.0, %v976
        %v978 = vpop.f32.mrf.mxu0
        %979 = vmatprep.mubr.bf16.mxu0 0
        %980 = vmatmul.mubr.bf16.gmra.mxu0 %v928
        %v981 = vpop.f32.mrf.mxu0
        %v982 = vadd.f32 0.0, %v981
        %v983 = vpop.f32.mrf.mxu0
        %v984 = vpop.f32.mrf.mxu0
        %v985 = vadd.f32 0.0, %v984
        %v986 = vpop.f32.mrf.mxu0
        %987 = vmatprep.mubr.bf16.mxu0 0
        %988 = vmatmul.mubr.bf16.gmra.mxu0 %v931
        %v989 = vpop.f32.mrf.mxu0
        %v990 = vadd.f32 0.0, %v989
        %v991 = vpop.f32.mrf.mxu0
        %v992 = vpop.f32.mrf.mxu0
        %v993 = vadd.f32 0.0, %v992
        %v994 = vpop.f32.mrf.mxu0
        %995 = vmatprep.mubr.bf16.mxu0 0
        %996 = vmatmul.mubr.bf16.gmra.mxu0 %v934
        %v997 = vpop.f32.mrf.mxu0
        %v998 = vadd.f32 0.0, %v997
        %v999 = vpop.f32.mrf.mxu0
        %v1000 = vpop.f32.mrf.mxu0
        %v1001 = vadd.f32 0.0, %v1000
        %v1002 = vpop.f32.mrf.mxu0
        %1003 = vdwg.mxu0
        %v1004 = vadd.f32 %v884, %v974
        %v1005 = vadd.f32 %v887, %v977
        %v1006 = vadd.f32 %v892, %v982
        %v1007 = vadd.f32 %v895, %v985
        %v1008 = vadd.f32 %v900, %v990
        %v1009 = vadd.f32 %v903, %v993
        %v1010 = vadd.f32 %v908, %v998
        %v1011 = vadd.f32 %v911, %v1001
        %v1012 = vld [vmem:[%s519] sm:$0xf]
        %v1013 = vld [vmem:[%s519 + $0x8] sm:$0xf]
        %v1014 = vld [vmem:[%s519 + $0x10] sm:$0xf]
        %v1015 = vld [vmem:[%s519 + $0x18] sm:$0xf]
        %v1016 = vld [vmem:[%s519 + $0x20] sm:$0xf]
        %v1017 = vld [vmem:[%s519 + $0x28] sm:$0xf]
        %v1018 = vld [vmem:[%s519 + $0x30] sm:$0xf]
        %v1019 = vld [vmem:[%s519 + $0x38] sm:$0xf]
        %s1020 = scalar_lea.vmem [#allocation7], 6
        %v1021 = vld [vmem:[%s1020] sm:$0x3]
        %v1030 = vunpack.c.l.b16 %v1012
        %v1031 = vunpack.c.l.b16 %v1013
        %v1032 = vunpack.c.l.b16 %v1014
        %v1033 = vunpack.c.l.b16 %v1015
        %v1034 = vunpack.c.l.b16 %v1016
        %v1035 = vunpack.c.l.b16 %v1017
        %v1036 = vunpack.c.l.b16 %v1018
        %v1037 = vunpack.c.l.b16 %v1019
        %v1038 = vpack.c.b16 %v1031, %v1030
        %v1039 = vpack.c.b16 %v1033, %v1032
        %v1040 = vpack.c.b16 %v1035, %v1034
        %v1041 = vpack.c.b16 %v1037, %v1036
        %1042 = vrot.lane.b32.xlu0 %v1038, 124
        %v1043 = vpop.permute.xlu0 %1042
        %1044 = vrot.lane.b32.xlu0 %v1039, 124
        %v1045 = vpop.permute.xlu0 %1044
        %1046 = vrot.lane.b32.xlu0 %v1040, 124
        %v1047 = vpop.permute.xlu0 %1046
        %1048 = vrot.lane.b32.xlu0 %v1041, 124
        %v1049 = vpop.permute.xlu0 %1048
        %v1051 = vsel %vm724, %v1043, 0
        %v1054 = vsel %vm724, %v1045, 0
        %v1057 = vsel %vm724, %v1047, 0
        %v1060 = vsel %vm724, %v1049, 0
        %v1063 = vsel %vm737, %v1021, 0
        %1065 = vmatprep.subr.bf16.mxu0 0
        %1066 = vmatpush1.bf16.msra.mxu0 0
        %1067 = vmatprep.subr.bf16.mxu0 0
        %1068 = vmatpush1.bf16.msra.mxu0 0
        %1069 = vmatprep.subr.bf16.mxu0 0
        %1070 = vmatpush1.bf16.msra.mxu0 0
        %1071 = vmatprep.subr.bf16.mxu0 0
        %1072 = vmatpush1.bf16.msra.mxu0 0
        %1073 = vmatprep.subr.bf16.mxu0 0
        %1074 = vmatpush1.bf16.msra.mxu0 0
        %1075 = vmatprep.subr.bf16.mxu0 0
        %1076 = vmatpush1.bf16.msra.mxu0 0
        %1077 = vmatprep.subr.bf16.mxu0 0
        %1078 = vmatpush1.bf16.msra.mxu0 0
        %1079 = vmatprep.subr.bf16.mxu0 0
        %1080 = vmatpush1.bf16.msra.mxu0 %v1063
        %1081 = vmatprep.subr.bf16.mxu0 0
        %1082 = vmatpush2.bf16.msra.mxu0 0
        %1083 = vmatprep.subr.bf16.mxu0 0
        %1084 = vmatpush2.bf16.msra.mxu0 0
        %1085 = vmatprep.subr.bf16.mxu0 0
        %1086 = vmatpush2.bf16.msra.mxu0 0
        %1087 = vmatprep.subr.bf16.mxu0 0
        %1088 = vmatpush2.bf16.msra.mxu0 0
        %1089 = vmatprep.subr.bf16.mxu0 0
        %1090 = vmatpush2.bf16.msra.mxu0 0
        %1091 = vmatprep.subr.bf16.mxu0 0
        %1092 = vmatpush2.bf16.msra.mxu0 0
        %1093 = vmatprep.subr.bf16.mxu0 0
        %1094 = vmatpush2.bf16.msra.mxu0 0
        %1095 = vmatprep.subr.bf16.mxu0 0
        %1096 = vmatpush2.bf16.msra.mxu0 0
        %1097 = vmatprep.mubr.bf16.mxu0 0
        %1098 = vmatmul.mubr.bf16.gmra.mxu0 %v1051
        %v1099 = vpop.f32.mrf.mxu0
        %v1100 = vadd.f32 0.0, %v1099
        %v1101 = vpop.f32.mrf.mxu0
        %v1102 = vpop.f32.mrf.mxu0
        %v1103 = vadd.f32 0.0, %v1102
        %v1104 = vpop.f32.mrf.mxu0
        %1105 = vmatprep.mubr.bf16.mxu0 0
        %1106 = vmatmul.mubr.bf16.gmra.mxu0 %v1054
        %v1107 = vpop.f32.mrf.mxu0
        %v1108 = vadd.f32 0.0, %v1107
        %v1109 = vpop.f32.mrf.mxu0
        %v1110 = vpop.f32.mrf.mxu0
        %v1111 = vadd.f32 0.0, %v1110
        %v1112 = vpop.f32.mrf.mxu0
        %1113 = vmatprep.mubr.bf16.mxu0 0
        %1114 = vmatmul.mubr.bf16.gmra.mxu0 %v1057
        %v1115 = vpop.f32.mrf.mxu0
        %v1116 = vadd.f32 0.0, %v1115
        %v1117 = vpop.f32.mrf.mxu0
        %v1118 = vpop.f32.mrf.mxu0
        %v1119 = vadd.f32 0.0, %v1118
        %v1120 = vpop.f32.mrf.mxu0
        %1121 = vmatprep.mubr.bf16.mxu0 0
        %1122 = vmatmul.mubr.bf16.gmra.mxu0 %v1060
        %v1123 = vpop.f32.mrf.mxu0
        %v1124 = vadd.f32 0.0, %v1123
        %v1125 = vpop.f32.mrf.mxu0
        %v1126 = vpop.f32.mrf.mxu0
        %v1127 = vadd.f32 0.0, %v1126
        %v1128 = vpop.f32.mrf.mxu0
        %1129 = vdwg.mxu0
        %v1130 = vadd.f32 %v1004, %v1100
        %v1131 = vadd.f32 %v1005, %v1103
        %v1132 = vadd.f32 %v1006, %v1108
        %v1133 = vadd.f32 %v1007, %v1111
        %v1134 = vadd.f32 %v1008, %v1116
        %v1135 = vadd.f32 %v1009, %v1119
        %v1136 = vadd.f32 %v1010, %v1124
        %v1137 = vadd.f32 %v1011, %v1127
        %v1138 = vld [vmem:[%s519] sm:$0xf]
        %v1139 = vld [vmem:[%s519 + $0x4] sm:$0x1]
        %v1140 = vld [vmem:[%s519 + $0x8] sm:$0xf]
        %v1141 = vld [vmem:[%s519 + $0xc] sm:$0x1]
        %v1142 = vld [vmem:[%s519 + $0x10] sm:$0xf]
        %v1143 = vld [vmem:[%s519 + $0x14] sm:$0x1]
        %v1144 = vld [vmem:[%s519 + $0x18] sm:$0xf]
        %v1145 = vld [vmem:[%s519 + $0x1c] sm:$0x1]
        %v1146 = vld [vmem:[%s519 + $0x20] sm:$0xf]
        %v1147 = vld [vmem:[%s519 + $0x24] sm:$0x1]
        %v1148 = vld [vmem:[%s519 + $0x28] sm:$0xf]
        %v1149 = vld [vmem:[%s519 + $0x2c] sm:$0x1]
        %v1150 = vld [vmem:[%s519 + $0x30] sm:$0xf]
        %v1151 = vld [vmem:[%s519 + $0x34] sm:$0x1]
        %v1152 = vld [vmem:[%s519 + $0x38] sm:$0xf]
        %v1153 = vld [vmem:[%s519 + $0x3c] sm:$0x1]
        %v1155 = vshrl.u32 %v1138, 16
        %v1157 = vrot.slane %v1155, 4
        %v1158 = vshll.u32 %v1138, 16
        %v1160 = vrot.slane %v1158, 5
        %v1161 = vor.u32 %v1157, %v1160
        %v1162 = vrot.slane %v1161, 4
        %v1164 = vshll.u32 %v1139, 16
        %v1166 = vrot.slane %v1164, 5
        %v1167 = vsel %vm589, %v1162, %v1166
        %v1169 = vshrl.u32 %v1140, 16
        %v1171 = vrot.slane %v1169, 4
        %v1172 = vshll.u32 %v1140, 16
        %v1174 = vrot.slane %v1172, 5
        %v1175 = vor.u32 %v1171, %v1174
        %v1176 = vrot.slane %v1175, 4
        %v1178 = vshll.u32 %v1141, 16
        %v1180 = vrot.slane %v1178, 5
        %v1181 = vsel %vm589, %v1176, %v1180
        %v1183 = vshrl.u32 %v1142, 16
        %v1185 = vrot.slane %v1183, 4
        %v1186 = vshll.u32 %v1142, 16
        %v1188 = vrot.slane %v1186, 5
        %v1189 = vor.u32 %v1185, %v1188
        %v1190 = vrot.slane %v1189, 4
        %v1192 = vshll.u32 %v1143, 16
        %v1194 = vrot.slane %v1192, 5
        %v1195 = vsel %vm589, %v1190, %v1194
        %v1197 = vshrl.u32 %v1144, 16
        %v1199 = vrot.slane %v1197, 4
        %v1200 = vshll.u32 %v1144, 16
        %v1202 = vrot.slane %v1200, 5
        %v1203 = vor.u32 %v1199, %v1202
        %v1204 = vrot.slane %v1203, 4
        %v1206 = vshll.u32 %v1145, 16
        %v1208 = vrot.slane %v1206, 5
        %v1209 = vsel %vm589, %v1204, %v1208
        %v1211 = vshrl.u32 %v1146, 16
        %v1213 = vrot.slane %v1211, 4
        %v1214 = vshll.u32 %v1146, 16
        %v1216 = vrot.slane %v1214, 5
        %v1217 = vor.u32 %v1213, %v1216
        %v1218 = vrot.slane %v1217, 4
        %v1220 = vshll.u32 %v1147, 16
        %v1222 = vrot.slane %v1220, 5
        %v1223 = vsel %vm589, %v1218, %v1222
        %v1225 = vshrl.u32 %v1148, 16
        %v1227 = vrot.slane %v1225, 4
        %v1228 = vshll.u32 %v1148, 16
        %v1230 = vrot.slane %v1228, 5
        %v1231 = vor.u32 %v1227, %v1230
        %v1232 = vrot.slane %v1231, 4
        %v1234 = vshll.u32 %v1149, 16
        %v1236 = vrot.slane %v1234, 5
        %v1237 = vsel %vm589, %v1232, %v1236
        %v1239 = vshrl.u32 %v1150, 16
        %v1241 = vrot.slane %v1239, 4
        %v1242 = vshll.u32 %v1150, 16
        %v1244 = vrot.slane %v1242, 5
        %v1245 = vor.u32 %v1241, %v1244
        %v1246 = vrot.slane %v1245, 4
        %v1248 = vshll.u32 %v1151, 16
        %v1250 = vrot.slane %v1248, 5
        %v1251 = vsel %vm589, %v1246, %v1250
        %v1253 = vshrl.u32 %v1152, 16
        %v1255 = vrot.slane %v1253, 4
        %v1256 = vshll.u32 %v1152, 16
        %v1258 = vrot.slane %v1256, 5
        %v1259 = vor.u32 %v1255, %v1258
        %v1260 = vrot.slane %v1259, 4
        %v1262 = vshll.u32 %v1153, 16
        %v1264 = vrot.slane %v1262, 5
        %v1265 = vsel %vm589, %v1260, %v1264
        %s1266 = scalar_lea.vmem [#allocation7], 8
        %v1267 = vld [vmem:[%s1266] sm:$0x3]
        %v1268 = vunpack.c.l.b16 %v1167
        %v1269 = vunpack.c.l.b16 %v1181
        %v1270 = vunpack.c.l.b16 %v1195
        %v1271 = vunpack.c.l.b16 %v1209
        %v1272 = vunpack.c.l.b16 %v1223
        %v1273 = vunpack.c.l.b16 %v1237
        %v1274 = vunpack.c.l.b16 %v1251
        %v1275 = vunpack.c.l.b16 %v1265
        %v1276 = vpack.c.b16 %v1269, %v1268
        %v1277 = vpack.c.b16 %v1271, %v1270
        %v1278 = vpack.c.b16 %v1273, %v1272
        %v1279 = vpack.c.b16 %v1275, %v1274
        %v1281 = vsel %vm724, %v1276, 0
        %v1284 = vsel %vm724, %v1277, 0
        %v1287 = vsel %vm724, %v1278, 0
        %v1290 = vsel %vm724, %v1279, 0
        %v1293 = vsel %vm737, %v1267, 0
        %1295 = vmatprep.subr.bf16.mxu0 0
        %1296 = vmatpush1.bf16.msra.mxu0 0
        %1297 = vmatprep.subr.bf16.mxu0 0
        %1298 = vmatpush1.bf16.msra.mxu0 0
        %1299 = vmatprep.subr.bf16.mxu0 0
        %1300 = vmatpush1.bf16.msra.mxu0 0
        %1301 = vmatprep.subr.bf16.mxu0 0
        %1302 = vmatpush1.bf16.msra.mxu0 0
        %1303 = vmatprep.subr.bf16.mxu0 0
        %1304 = vmatpush1.bf16.msra.mxu0 0
        %1305 = vmatprep.subr.bf16.mxu0 0
        %1306 = vmatpush1.bf16.msra.mxu0 0
        %1307 = vmatprep.subr.bf16.mxu0 0
        %1308 = vmatpush1.bf16.msra.mxu0 0
        %1309 = vmatprep.subr.bf16.mxu0 0
        %1310 = vmatpush1.bf16.msra.mxu0 %v1293
        %1311 = vmatprep.subr.bf16.mxu0 0
        %1312 = vmatpush2.bf16.msra.mxu0 0
        %1313 = vmatprep.subr.bf16.mxu0 0
        %1314 = vmatpush2.bf16.msra.mxu0 0
        %1315 = vmatprep.subr.bf16.mxu0 0
        %1316 = vmatpush2.bf16.msra.mxu0 0
        %1317 = vmatprep.subr.bf16.mxu0 0
        %1318 = vmatpush2.bf16.msra.mxu0 0
        %1319 = vmatprep.subr.bf16.mxu0 0
        %1320 = vmatpush2.bf16.msra.mxu0 0
        %1321 = vmatprep.subr.bf16.mxu0 0
        %1322 = vmatpush2.bf16.msra.mxu0 0
        %1323 = vmatprep.subr.bf16.mxu0 0
        %1324 = vmatpush2.bf16.msra.mxu0 0
        %1325 = vmatprep.subr.bf16.mxu0 0
        %1326 = vmatpush2.bf16.msra.mxu0 0
        %1327 = vmatprep.mubr.bf16.mxu0 0
        %1328 = vmatmul.mubr.bf16.gmra.mxu0 %v1281
        %v1329 = vpop.f32.mrf.mxu0
        %v1330 = vadd.f32 0.0, %v1329
        %v1331 = vpop.f32.mrf.mxu0
        %v1332 = vpop.f32.mrf.mxu0
        %v1333 = vadd.f32 0.0, %v1332
        %v1334 = vpop.f32.mrf.mxu0
        %1335 = vmatprep.mubr.bf16.mxu0 0
        %1336 = vmatmul.mubr.bf16.gmra.mxu0 %v1284
        %v1337 = vpop.f32.mrf.mxu0
        %v1338 = vadd.f32 0.0, %v1337
        %v1339 = vpop.f32.mrf.mxu0
        %v1340 = vpop.f32.mrf.mxu0
        %v1341 = vadd.f32 0.0, %v1340
        %v1342 = vpop.f32.mrf.mxu0
        %1343 = vmatprep.mubr.bf16.mxu0 0
        %1344 = vmatmul.mubr.bf16.gmra.mxu0 %v1287
        %v1345 = vpop.f32.mrf.mxu0
        %v1346 = vadd.f32 0.0, %v1345
        %v1347 = vpop.f32.mrf.mxu0
        %v1348 = vpop.f32.mrf.mxu0
        %v1349 = vadd.f32 0.0, %v1348
        %v1350 = vpop.f32.mrf.mxu0
        %1351 = vmatprep.mubr.bf16.mxu0 0
        %1352 = vmatmul.mubr.bf16.gmra.mxu0 %v1290
        %v1353 = vpop.f32.mrf.mxu0
        %v1354 = vadd.f32 0.0, %v1353
        %v1355 = vpop.f32.mrf.mxu0
        %v1356 = vpop.f32.mrf.mxu0
        %v1357 = vadd.f32 0.0, %v1356
        %v1358 = vpop.f32.mrf.mxu0
        %1359 = vdwg.mxu0
        %v1360 = vadd.f32 %v1130, %v1330
        %v1361 = vadd.f32 %v1131, %v1333
        %v1362 = vadd.f32 %v1132, %v1338
        %v1363 = vadd.f32 %v1133, %v1341
        %v1364 = vadd.f32 %v1134, %v1346
        %v1365 = vadd.f32 %v1135, %v1349
        %v1366 = vadd.f32 %v1136, %v1354
        %v1367 = vadd.f32 %v1137, %v1357
        %s1368 = scalar_lea.vmem [#allocation7], 10
        %v1369 = vld [vmem:[%s1368] sm:$0x3]
        %1370 = vrot.lane.b32.xlu0 %v1276, 124
        %v1371 = vpop.permute.xlu0 %1370
        %1372 = vrot.lane.b32.xlu0 %v1277, 124
        %v1373 = vpop.permute.xlu0 %1372
        %1374 = vrot.lane.b32.xlu0 %v1278, 124
        %v1375 = vpop.permute.xlu0 %1374
        %1376 = vrot.lane.b32.xlu0 %v1279, 124
        %v1377 = vpop.permute.xlu0 %1376
        %v1379 = vsel %vm724, %v1371, 0
        %v1382 = vsel %vm724, %v1373, 0
        %v1385 = vsel %vm724, %v1375, 0
        %v1388 = vsel %vm724, %v1377, 0
        %v1391 = vsel %vm737, %v1369, 0
        %1393 = vmatprep.subr.bf16.mxu0 0
        %1394 = vmatpush1.bf16.msra.mxu0 0
        %1395 = vmatprep.subr.bf16.mxu0 0
        %1396 = vmatpush1.bf16.msra.mxu0 0
        %1397 = vmatprep.subr.bf16.mxu0 0
        %1398 = vmatpush1.bf16.msra.mxu0 0
        %1399 = vmatprep.subr.bf16.mxu0 0
        %1400 = vmatpush1.bf16.msra.mxu0 0
        %1401 = vmatprep.subr.bf16.mxu0 0
        %1402 = vmatpush1.bf16.msra.mxu0 0
        %1403 = vmatprep.subr.bf16.mxu0 0
        %1404 = vmatpush1.bf16.msra.mxu0 0
        %1405 = vmatprep.subr.bf16.mxu0 0
        %1406 = vmatpush1.bf16.msra.mxu0 0
        %1407 = vmatprep.subr.bf16.mxu0 0
        %1408 = vmatpush1.bf16.msra.mxu0 %v1391
        %1409 = vmatprep.subr.bf16.mxu0 0
        %1410 = vmatpush2.bf16.msra.mxu0 0
        %1411 = vmatprep.subr.bf16.mxu0 0
        %1412 = vmatpush2.bf16.msra.mxu0 0
        %1413 = vmatprep.subr.bf16.mxu0 0
        %1414 = vmatpush2.bf16.msra.mxu0 0
        %1415 = vmatprep.subr.bf16.mxu0 0
        %1416 = vmatpush2.bf16.msra.mxu0 0
        %1417 = vmatprep.subr.bf16.mxu0 0
        %1418 = vmatpush2.bf16.msra.mxu0 0
        %1419 = vmatprep.subr.bf16.mxu0 0
        %1420 = vmatpush2.bf16.msra.mxu0 0
        %1421 = vmatprep.subr.bf16.mxu0 0
        %1422 = vmatpush2.bf16.msra.mxu0 0
        %1423 = vmatprep.subr.bf16.mxu0 0
        %1424 = vmatpush2.bf16.msra.mxu0 0
        %1425 = vmatprep.mubr.bf16.mxu0 0
        %1426 = vmatmul.mubr.bf16.gmra.mxu0 %v1379
        %v1427 = vpop.f32.mrf.mxu0
        %v1428 = vadd.f32 0.0, %v1427
        %v1429 = vpop.f32.mrf.mxu0
        %v1430 = vpop.f32.mrf.mxu0
        %v1431 = vadd.f32 0.0, %v1430
        %v1432 = vpop.f32.mrf.mxu0
        %1433 = vmatprep.mubr.bf16.mxu0 0
        %1434 = vmatmul.mubr.bf16.gmra.mxu0 %v1382
        %v1435 = vpop.f32.mrf.mxu0
        %v1436 = vadd.f32 0.0, %v1435
        %v1437 = vpop.f32.mrf.mxu0
        %v1438 = vpop.f32.mrf.mxu0
        %v1439 = vadd.f32 0.0, %v1438
        %v1440 = vpop.f32.mrf.mxu0
        %1441 = vmatprep.mubr.bf16.mxu0 0
        %1442 = vmatmul.mubr.bf16.gmra.mxu0 %v1385
        %v1443 = vpop.f32.mrf.mxu0
        %v1444 = vadd.f32 0.0, %v1443
        %v1445 = vpop.f32.mrf.mxu0
        %v1446 = vpop.f32.mrf.mxu0
        %v1447 = vadd.f32 0.0, %v1446
        %v1448 = vpop.f32.mrf.mxu0
        %1449 = vmatprep.mubr.bf16.mxu0 0
        %1450 = vmatmul.mubr.bf16.gmra.mxu0 %v1388
        %v1451 = vpop.f32.mrf.mxu0
        %v1452 = vadd.f32 0.0, %v1451
        %v1453 = vpop.f32.mrf.mxu0
        %v1454 = vpop.f32.mrf.mxu0
        %v1455 = vadd.f32 0.0, %v1454
        %v1456 = vpop.f32.mrf.mxu0
        %1457 = vdwg.mxu0
        %v1458 = vadd.f32 %v1360, %v1428
        %v1459 = vadd.f32 %v1361, %v1431
        %v1460 = vadd.f32 %v1362, %v1436
        %v1461 = vadd.f32 %v1363, %v1439
        %v1462 = vadd.f32 %v1364, %v1444
        %v1463 = vadd.f32 %v1365, %v1447
        %v1464 = vadd.f32 %v1366, %v1452
        %v1465 = vadd.f32 %v1367, %v1455
        %s1466 = scalar_lea.vmem [#allocation7], 12
        %v1467 = vld [vmem:[%s1466] sm:$0x3]
        %1468 = vrot.lane.b32.xlu0 %v1038, 116
        %v1469 = vpop.permute.xlu0 %1468
        %1470 = vrot.lane.b32.xlu0 %v1039, 116
        %v1471 = vpop.permute.xlu0 %1470
        %1472 = vrot.lane.b32.xlu0 %v1040, 116
        %v1473 = vpop.permute.xlu0 %1472
        %1474 = vrot.lane.b32.xlu0 %v1041, 116
        %v1475 = vpop.permute.xlu0 %1474
        %v1477 = vsel %vm724, %v1469, 0
        %v1480 = vsel %vm724, %v1471, 0
        %v1483 = vsel %vm724, %v1473, 0
        %v1486 = vsel %vm724, %v1475, 0
        %v1489 = vsel %vm737, %v1467, 0
        %1491 = vmatprep.subr.bf16.mxu0 0
        %1492 = vmatpush1.bf16.msra.mxu0 0
        %1493 = vmatprep.subr.bf16.mxu0 0
        %1494 = vmatpush1.bf16.msra.mxu0 0
        %1495 = vmatprep.subr.bf16.mxu0 0
        %1496 = vmatpush1.bf16.msra.mxu0 0
        %1497 = vmatprep.subr.bf16.mxu0 0
        %1498 = vmatpush1.bf16.msra.mxu0 0
        %1499 = vmatprep.subr.bf16.mxu0 0
        %1500 = vmatpush1.bf16.msra.mxu0 0
        %1501 = vmatprep.subr.bf16.mxu0 0
        %1502 = vmatpush1.bf16.msra.mxu0 0
        %1503 = vmatprep.subr.bf16.mxu0 0
        %1504 = vmatpush1.bf16.msra.mxu0 0
        %1505 = vmatprep.subr.bf16.mxu0 0
        %1506 = vmatpush1.bf16.msra.mxu0 %v1489
        %1507 = vmatprep.subr.bf16.mxu0 0
        %1508 = vmatpush2.bf16.msra.mxu0 0
        %1509 = vmatprep.subr.bf16.mxu0 0
        %1510 = vmatpush2.bf16.msra.mxu0 0
        %1511 = vmatprep.subr.bf16.mxu0 0
        %1512 = vmatpush2.bf16.msra.mxu0 0
        %1513 = vmatprep.subr.bf16.mxu0 0
        %1514 = vmatpush2.bf16.msra.mxu0 0
        %1515 = vmatprep.subr.bf16.mxu0 0
        %1516 = vmatpush2.bf16.msra.mxu0 0
        %1517 = vmatprep.subr.bf16.mxu0 0
        %1518 = vmatpush2.bf16.msra.mxu0 0
        %1519 = vmatprep.subr.bf16.mxu0 0
        %1520 = vmatpush2.bf16.msra.mxu0 0
        %1521 = vmatprep.subr.bf16.mxu0 0
        %1522 = vmatpush2.bf16.msra.mxu0 0
        %1523 = vmatprep.mubr.bf16.mxu0 0
        %1524 = vmatmul.mubr.bf16.gmra.mxu0 %v1477
        %v1525 = vpop.f32.mrf.mxu0
        %v1526 = vadd.f32 0.0, %v1525
        %v1527 = vpop.f32.mrf.mxu0
        %v1528 = vpop.f32.mrf.mxu0
        %v1529 = vadd.f32 0.0, %v1528
        %v1530 = vpop.f32.mrf.mxu0
        %1531 = vmatprep.mubr.bf16.mxu0 0
        %1532 = vmatmul.mubr.bf16.gmra.mxu0 %v1480
        %v1533 = vpop.f32.mrf.mxu0
        %v1534 = vadd.f32 0.0, %v1533
        %v1535 = vpop.f32.mrf.mxu0
        %v1536 = vpop.f32.mrf.mxu0
        %v1537 = vadd.f32 0.0, %v1536
        %v1538 = vpop.f32.mrf.mxu0
        %1539 = vmatprep.mubr.bf16.mxu0 0
        %1540 = vmatmul.mubr.bf16.gmra.mxu0 %v1483
        %v1541 = vpop.f32.mrf.mxu0
        %v1542 = vadd.f32 0.0, %v1541
        %v1543 = vpop.f32.mrf.mxu0
        %v1544 = vpop.f32.mrf.mxu0
        %v1545 = vadd.f32 0.0, %v1544
        %v1546 = vpop.f32.mrf.mxu0
        %1547 = vmatprep.mubr.bf16.mxu0 0
        %1548 = vmatmul.mubr.bf16.gmra.mxu0 %v1486
        %v1549 = vpop.f32.mrf.mxu0
        %v1550 = vadd.f32 0.0, %v1549
        %v1551 = vpop.f32.mrf.mxu0
        %v1552 = vpop.f32.mrf.mxu0
        %v1553 = vadd.f32 0.0, %v1552
        %v1554 = vpop.f32.mrf.mxu0
        %1555 = vdwg.mxu0
        %v1556 = vadd.f32 %v1458, %v1526
        %v1557 = vadd.f32 %v1459, %v1529
        %v1558 = vadd.f32 %v1460, %v1534
        %v1559 = vadd.f32 %v1461, %v1537
        %v1560 = vadd.f32 %v1462, %v1542
        %v1561 = vadd.f32 %v1463, %v1545
        %v1562 = vadd.f32 %v1464, %v1550
        %v1563 = vadd.f32 %v1465, %v1553
        %s1564 = scalar_lea.vmem [#allocation7], 14
        %v1565 = vld [vmem:[%s1564] sm:$0x3]
        %1566 = vrot.lane.b32.xlu0 %v1276, 120
        %v1567 = vpop.permute.xlu0 %1566
        %1568 = vrot.lane.b32.xlu0 %v1277, 120
        %v1569 = vpop.permute.xlu0 %1568
        %1570 = vrot.lane.b32.xlu0 %v1278, 120
        %v1571 = vpop.permute.xlu0 %1570
        %1572 = vrot.lane.b32.xlu0 %v1279, 120
        %v1573 = vpop.permute.xlu0 %1572
        %v1575 = vsel %vm724, %v1567, 0
        %v1578 = vsel %vm724, %v1569, 0
        %v1581 = vsel %vm724, %v1571, 0
        %v1584 = vsel %vm724, %v1573, 0
        %v1587 = vsel %vm737, %v1565, 0
        %1589 = vmatprep.subr.bf16.mxu0 0
        %1590 = vmatpush1.bf16.msra.mxu0 0
        %1591 = vmatprep.subr.bf16.mxu0 0
        %1592 = vmatpush1.bf16.msra.mxu0 0
        %1593 = vmatprep.subr.bf16.mxu0 0
        %1594 = vmatpush1.bf16.msra.mxu0 0
        %1595 = vmatprep.subr.bf16.mxu0 0
        %1596 = vmatpush1.bf16.msra.mxu0 0
        %1597 = vmatprep.subr.bf16.mxu0 0
        %1598 = vmatpush1.bf16.msra.mxu0 0
        %1599 = vmatprep.subr.bf16.mxu0 0
        %1600 = vmatpush1.bf16.msra.mxu0 0
        %1601 = vmatprep.subr.bf16.mxu0 0
        %1602 = vmatpush1.bf16.msra.mxu0 0
        %1603 = vmatprep.subr.bf16.mxu0 0
        %1604 = vmatpush1.bf16.msra.mxu0 %v1587
        %1605 = vmatprep.subr.bf16.mxu0 0
        %1606 = vmatpush2.bf16.msra.mxu0 0
        %1607 = vmatprep.subr.bf16.mxu0 0
        %1608 = vmatpush2.bf16.msra.mxu0 0
        %1609 = vmatprep.subr.bf16.mxu0 0
        %1610 = vmatpush2.bf16.msra.mxu0 0
        %1611 = vmatprep.subr.bf16.mxu0 0
        %1612 = vmatpush2.bf16.msra.mxu0 0
        %1613 = vmatprep.subr.bf16.mxu0 0
        %1614 = vmatpush2.bf16.msra.mxu0 0
        %1615 = vmatprep.subr.bf16.mxu0 0
        %1616 = vmatpush2.bf16.msra.mxu0 0
        %1617 = vmatprep.subr.bf16.mxu0 0
        %1618 = vmatpush2.bf16.msra.mxu0 0
        %1619 = vmatprep.subr.bf16.mxu0 0
        %1620 = vmatpush2.bf16.msra.mxu0 0
        %1621 = vmatprep.mubr.bf16.mxu0 0
        %1622 = vmatmul.mubr.bf16.gmra.mxu0 %v1575
        %v1623 = vpop.f32.mrf.mxu0
        %v1624 = vadd.f32 0.0, %v1623
        %v1625 = vpop.f32.mrf.mxu0
        %v1626 = vpop.f32.mrf.mxu0
        %v1627 = vadd.f32 0.0, %v1626
        %v1628 = vpop.f32.mrf.mxu0
        %1629 = vmatprep.mubr.bf16.mxu0 0
        %1630 = vmatmul.mubr.bf16.gmra.mxu0 %v1578
        %v1631 = vpop.f32.mrf.mxu0
        %v1632 = vadd.f32 0.0, %v1631
        %v1633 = vpop.f32.mrf.mxu0
        %v1634 = vpop.f32.mrf.mxu0
        %v1635 = vadd.f32 0.0, %v1634
        %v1636 = vpop.f32.mrf.mxu0
        %1637 = vmatprep.mubr.bf16.mxu0 0
        %1638 = vmatmul.mubr.bf16.gmra.mxu0 %v1581
        %v1639 = vpop.f32.mrf.mxu0
        %v1640 = vadd.f32 0.0, %v1639
        %v1641 = vpop.f32.mrf.mxu0
        %v1642 = vpop.f32.mrf.mxu0
        %v1643 = vadd.f32 0.0, %v1642
        %v1644 = vpop.f32.mrf.mxu0
        %1645 = vmatprep.mubr.bf16.mxu0 0
        %1646 = vmatmul.mubr.bf16.gmra.mxu0 %v1584
        %v1647 = vpop.f32.mrf.mxu0
        %v1648 = vadd.f32 0.0, %v1647
        %v1649 = vpop.f32.mrf.mxu0
        %v1650 = vpop.f32.mrf.mxu0
        %v1651 = vadd.f32 0.0, %v1650
        %v1652 = vpop.f32.mrf.mxu0
        %1653 = vdwg.mxu0
        %v1654 = vadd.f32 %v1556, %v1624
        %v1655 = vadd.f32 %v1557, %v1627
        %v1656 = vadd.f32 %v1558, %v1632
        %v1657 = vadd.f32 %v1559, %v1635
        %v1658 = vadd.f32 %v1560, %v1640
        %v1659 = vadd.f32 %v1561, %v1643
        %v1660 = vadd.f32 %v1562, %v1648
        %v1661 = vadd.f32 %v1563, %v1651
        %s1662 = scalar_lea.vmem [#allocation7], 16
        %v1663 = vld [vmem:[%s1662] sm:$0x3]
        %1664 = vrot.lane.b32.xlu0 %v1276, 116
        %v1665 = vpop.permute.xlu0 %1664
        %1666 = vrot.lane.b32.xlu0 %v1277, 116
        %v1667 = vpop.permute.xlu0 %1666
        %1668 = vrot.lane.b32.xlu0 %v1278, 116
        %v1669 = vpop.permute.xlu0 %1668
        %1670 = vrot.lane.b32.xlu0 %v1279, 116
        %v1671 = vpop.permute.xlu0 %1670
        %v1673 = vsel %vm724, %v1665, 0
        %v1676 = vsel %vm724, %v1667, 0
        %v1679 = vsel %vm724, %v1669, 0
        %v1682 = vsel %vm724, %v1671, 0
        %v1685 = vsel %vm737, %v1663, 0
        %1687 = vmatprep.subr.bf16.mxu0 0
        %1688 = vmatpush1.bf16.msra.mxu0 0
        %1689 = vmatprep.subr.bf16.mxu0 0
        %1690 = vmatpush1.bf16.msra.mxu0 0
        %1691 = vmatprep.subr.bf16.mxu0 0
        %1692 = vmatpush1.bf16.msra.mxu0 0
        %1693 = vmatprep.subr.bf16.mxu0 0
        %1694 = vmatpush1.bf16.msra.mxu0 0
        %1695 = vmatprep.subr.bf16.mxu0 0
        %1696 = vmatpush1.bf16.msra.mxu0 0
        %1697 = vmatprep.subr.bf16.mxu0 0
        %1698 = vmatpush1.bf16.msra.mxu0 0
        %1699 = vmatprep.subr.bf16.mxu0 0
        %1700 = vmatpush1.bf16.msra.mxu0 0
        %1701 = vmatprep.subr.bf16.mxu0 0
        %1702 = vmatpush1.bf16.msra.mxu0 %v1685
        %1703 = vmatprep.subr.bf16.mxu0 0
        %1704 = vmatpush2.bf16.msra.mxu0 0
        %1705 = vmatprep.subr.bf16.mxu0 0
        %1706 = vmatpush2.bf16.msra.mxu0 0
        %1707 = vmatprep.subr.bf16.mxu0 0
        %1708 = vmatpush2.bf16.msra.mxu0 0
        %1709 = vmatprep.subr.bf16.mxu0 0
        %1710 = vmatpush2.bf16.msra.mxu0 0
        %1711 = vmatprep.subr.bf16.mxu0 0
        %1712 = vmatpush2.bf16.msra.mxu0 0
        %1713 = vmatprep.subr.bf16.mxu0 0
        %1714 = vmatpush2.bf16.msra.mxu0 0
        %1715 = vmatprep.subr.bf16.mxu0 0
        %1716 = vmatpush2.bf16.msra.mxu0 0
        %1717 = vmatprep.subr.bf16.mxu0 0
        %1718 = vmatpush2.bf16.msra.mxu0 0
        %1719 = vmatprep.mubr.bf16.mxu0 0
        %1720 = vmatmul.mubr.bf16.gmra.mxu0 %v1673
        %v1721 = vpop.f32.mrf.mxu0
        %v1722 = vadd.f32 0.0, %v1721
        %v1723 = vpop.f32.mrf.mxu0
        %v1724 = vpop.f32.mrf.mxu0
        %v1725 = vadd.f32 0.0, %v1724
        %v1726 = vpop.f32.mrf.mxu0
        %1727 = vmatprep.mubr.bf16.mxu0 0
        %1728 = vmatmul.mubr.bf16.gmra.mxu0 %v1676
        %v1729 = vpop.f32.mrf.mxu0
        %v1730 = vadd.f32 0.0, %v1729
        %v1731 = vpop.f32.mrf.mxu0
        %v1732 = vpop.f32.mrf.mxu0
        %v1733 = vadd.f32 0.0, %v1732
        %v1734 = vpop.f32.mrf.mxu0
        %1735 = vmatprep.mubr.bf16.mxu0 0
        %1736 = vmatmul.mubr.bf16.gmra.mxu0 %v1679
        %v1737 = vpop.f32.mrf.mxu0
        %v1738 = vadd.f32 0.0, %v1737
        %v1739 = vpop.f32.mrf.mxu0
        %v1740 = vpop.f32.mrf.mxu0
        %v1741 = vadd.f32 0.0, %v1740
        %v1742 = vpop.f32.mrf.mxu0
        %1743 = vmatprep.mubr.bf16.mxu0 0
        %1744 = vmatmul.mubr.bf16.gmra.mxu0 %v1682
        %v1745 = vpop.f32.mrf.mxu0
        %v1746 = vadd.f32 0.0, %v1745
        %v1747 = vpop.f32.mrf.mxu0
        %v1748 = vpop.f32.mrf.mxu0
        %v1749 = vadd.f32 0.0, %v1748
        %v1750 = vpop.f32.mrf.mxu0
        %1751 = vdwg.mxu0
        %v1752 = vadd.f32 %v1654, %v1722
        %v1753 = vadd.f32 %v1655, %v1725
        %v1754 = vadd.f32 %v1656, %v1730
        %v1755 = vadd.f32 %v1657, %v1733
        %v1756 = vadd.f32 %v1658, %v1738
        %v1757 = vadd.f32 %v1659, %v1741
        %v1758 = vadd.f32 %v1660, %v1746
        %v1759 = vadd.f32 %v1661, %v1749
        %v1760 = vld [vmem:[%s2] sm:$0x1]
        %v1762 = vlaneseq
        %v1763 = vshrl.u32 %v1762, 7
        %v1764 = vsub.s32 0, %v1763
        %v1765 = vrot.slane %v1760, %v1764
        %v1767 = vadd.f32 %v1752, %v1765
        %v1768 = vadd.f32 %v1753, %v1765
        %v1769 = vadd.f32 %v1754, %v1765
        %v1770 = vadd.f32 %v1755, %v1765
        %v1771 = vadd.f32 %v1756, %v1765
        %v1772 = vadd.f32 %v1757, %v1765
        %v1773 = vadd.f32 %v1758, %v1765
        %v1774 = vadd.f32 %v1759, %v1765
        %v1775 = vmax.f32 %v1767, 0.0
        %v1776 = vmax.f32 %v1768, 0.0
        %v1777 = vmax.f32 %v1769, 0.0
        %v1778 = vmax.f32 %v1770, 0.0
        %v1779 = vmax.f32 %v1771, 0.0
        %v1780 = vmax.f32 %v1772, 0.0
        %v1781 = vmax.f32 %v1773, 0.0
        %v1782 = vmax.f32 %v1774, 0.0
        %v1783 = vpack.c.bf16 %v1775, %v1775
        %v1784 = vpack.c.bf16 %v1776, %v1776
        %v1785 = vpack.c.bf16 %v1777, %v1777
        %v1786 = vpack.c.bf16 %v1778, %v1778
        %v1787 = vpack.c.bf16 %v1779, %v1779
        %v1788 = vpack.c.bf16 %v1780, %v1780
        %v1789 = vpack.c.bf16 %v1781, %v1781
        %v1790 = vpack.c.bf16 %v1782, %v1782
        %v1799 = vunpack.c.l.b16 %v1783
        %v1800 = vunpack.c.l.b16 %v1784
        %v1801 = vunpack.c.l.b16 %v1785
        %v1802 = vunpack.c.l.b16 %v1786
        %v1803 = vunpack.c.l.b16 %v1787
        %v1804 = vunpack.c.l.b16 %v1788
        %v1805 = vunpack.c.l.b16 %v1789
        %v1806 = vunpack.c.l.b16 %v1790
        %v1807 = vpack.c.b16 %v1799, %v1799
        %v1808 = vpack.c.b16 %v1800, %v1800
        %v1809 = vpack.c.b16 %v1801, %v1801
        %v1810 = vpack.c.b16 %v1802, %v1802
        %v1811 = vpack.c.b16 %v1803, %v1803
        %v1812 = vpack.c.b16 %v1804, %v1804
        %v1813 = vpack.c.b16 %v1805, %v1805
        %v1814 = vpack.c.b16 %v1806, %v1806
        %v1816 = vshrl.u32 %v1807, 16
        %v1818 = vrot.slane %v1816, 7
        %v1819 = vshll.u32 %v1807, 16
        %v1821 = vor.u32 %v1818, %v1819
        %v1822 = vrot.slane %v1818, 4
        %v1824 = vshrl.u32 %v1808, 16
        %v1826 = vrot.slane %v1824, 7
        %v1827 = vshll.u32 %v1808, 16
        %v1829 = vor.u32 %v1826, %v1827
        %v1830 = vrot.slane %v1826, 4
        %v1832 = vshrl.u32 %v1809, 16
        %v1834 = vrot.slane %v1832, 7
        %v1835 = vshll.u32 %v1809, 16
        %v1837 = vor.u32 %v1834, %v1835
        %v1838 = vrot.slane %v1834, 4
        %v1840 = vshrl.u32 %v1810, 16
        %v1842 = vrot.slane %v1840, 7
        %v1843 = vshll.u32 %v1810, 16
        %v1845 = vor.u32 %v1842, %v1843
        %v1846 = vrot.slane %v1842, 4
        %v1848 = vshrl.u32 %v1811, 16
        %v1850 = vrot.slane %v1848, 7
        %v1851 = vshll.u32 %v1811, 16
        %v1853 = vor.u32 %v1850, %v1851
        %v1854 = vrot.slane %v1850, 4
        %v1856 = vshrl.u32 %v1812, 16
        %v1858 = vrot.slane %v1856, 7
        %v1859 = vshll.u32 %v1812, 16
        %v1861 = vor.u32 %v1858, %v1859
        %v1862 = vrot.slane %v1858, 4
        %v1864 = vshrl.u32 %v1813, 16
        %v1866 = vrot.slane %v1864, 7
        %v1867 = vshll.u32 %v1813, 16
        %v1869 = vor.u32 %v1866, %v1867
        %v1870 = vrot.slane %v1866, 4
        %v1872 = vshrl.u32 %v1814, 16
        %v1874 = vrot.slane %v1872, 7
        %v1875 = vshll.u32 %v1814, 16
        %v1877 = vor.u32 %v1874, %v1875
        %v1878 = vrot.slane %v1874, 4
        %s1895 = scalar_lea.vmem [#allocation3], 8
        %vm1896 = vcmask 1043456
        %vm1897 = vmand %vm1896, %vm399
        %v1898 = vld [vmem:[%s1895] sm:$0xf]
        %v1899 = vsel %vm1897, %v1821, %v1898
        %1900 = vst [vmem:[%s1895] sm:$0xf] %v1899
        %v1901 = vld [vmem:[%s1895 + $0x4] sm:$0x1]
        %v1902 = vsel %vm368, %v1822, %v1901
        %1903 = vst [vmem:[%s1895 + $0x4] sm:$0x1] %v1902
        %v1904 = vld [vmem:[%s1895 + $0x8] sm:$0xf]
        %v1905 = vsel %vm1897, %v1829, %v1904
        %1906 = vst [vmem:[%s1895 + $0x8] sm:$0xf] %v1905
        %v1907 = vld [vmem:[%s1895 + $0xc] sm:$0x1]
        %v1908 = vsel %vm368, %v1830, %v1907
        %1909 = vst [vmem:[%s1895 + $0xc] sm:$0x1] %v1908
        %v1910 = vld [vmem:[%s1895 + $0x10] sm:$0xf]
        %v1911 = vsel %vm1897, %v1837, %v1910
        %1912 = vst [vmem:[%s1895 + $0x10] sm:$0xf] %v1911
        %v1913 = vld [vmem:[%s1895 + $0x14] sm:$0x1]
        %v1914 = vsel %vm368, %v1838, %v1913
        %1915 = vst [vmem:[%s1895 + $0x14] sm:$0x1] %v1914
        %v1916 = vld [vmem:[%s1895 + $0x18] sm:$0xf]
        %v1917 = vsel %vm1897, %v1845, %v1916
        %1918 = vst [vmem:[%s1895 + $0x18] sm:$0xf] %v1917
        %v1919 = vld [vmem:[%s1895 + $0x1c] sm:$0x1]
        %v1920 = vsel %vm368, %v1846, %v1919
        %1921 = vst [vmem:[%s1895 + $0x1c] sm:$0x1] %v1920
        %v1922 = vld [vmem:[%s1895 + $0x20] sm:$0xf]
        %v1923 = vsel %vm1897, %v1853, %v1922
        %1924 = vst [vmem:[%s1895 + $0x20] sm:$0xf] %v1923
        %v1925 = vld [vmem:[%s1895 + $0x24] sm:$0x1]
        %v1926 = vsel %vm368, %v1854, %v1925
        %1927 = vst [vmem:[%s1895 + $0x24] sm:$0x1] %v1926
        %v1928 = vld [vmem:[%s1895 + $0x28] sm:$0xf]
        %v1929 = vsel %vm1897, %v1861, %v1928
        %1930 = vst [vmem:[%s1895 + $0x28] sm:$0xf] %v1929
        %v1931 = vld [vmem:[%s1895 + $0x2c] sm:$0x1]
        %v1932 = vsel %vm368, %v1862, %v1931
        %1933 = vst [vmem:[%s1895 + $0x2c] sm:$0x1] %v1932
        %v1934 = vld [vmem:[%s1895 + $0x30] sm:$0xf]
        %v1935 = vsel %vm1897, %v1869, %v1934
        %1936 = vst [vmem:[%s1895 + $0x30] sm:$0xf] %v1935
        %v1937 = vld [vmem:[%s1895 + $0x34] sm:$0x1]
        %v1938 = vsel %vm368, %v1870, %v1937
        %1939 = vst [vmem:[%s1895 + $0x34] sm:$0x1] %v1938
        %v1940 = vld [vmem:[%s1895 + $0x38] sm:$0xf]
        %v1941 = vsel %vm1897, %v1877, %v1940
        %1942 = vst [vmem:[%s1895 + $0x38] sm:$0xf] %v1941
        %v1943 = vld [vmem:[%s1895 + $0x3c] sm:$0x1]
        %v1944 = vsel %vm368, %v1878, %v1943
        %1945 = vst [vmem:[%s1895 + $0x3c] sm:$0x1] %v1944
        %v1946 = vld [vmem:[#allocation3] sm:$0xf]
        %v1947 = vld [vmem:[#allocation3 + $0x8] sm:$0xf]
        %v1948 = vld [vmem:[#allocation3 + $0x10] sm:$0xf]
        %v1949 = vld [vmem:[#allocation3 + $0x18] sm:$0xf]
        %v1950 = vld [vmem:[#allocation3 + $0x20] sm:$0xf]
        %v1951 = vld [vmem:[#allocation3 + $0x28] sm:$0xf]
        %v1952 = vld [vmem:[#allocation3 + $0x30] sm:$0xf]
        %v1953 = vld [vmem:[#allocation3 + $0x38] sm:$0xf]
        %v1954 = vld [vmem:[#allocation9] sm:$0xf]
        %v1955 = vld [vmem:[#allocation9 + $0x4] sm:$0xf]
        %v1956 = vld [vmem:[#allocation9 + $0x8] sm:$0xf]
        %v1957 = vld [vmem:[#allocation9 + $0xc] sm:$0xf]
        %v1958 = vld [vmem:[#allocation9 + $0x10] sm:$0xf]
        %v1959 = vld [vmem:[#allocation9 + $0x14] sm:$0xf]
        %v1960 = vld [vmem:[#allocation9 + $0x18] sm:$0xf]
        %v1961 = vld [vmem:[#allocation9 + $0x1c] sm:$0xf]
        %v1962 = vld [vmem:[#allocation9 + $0x20] sm:$0xf]
        %v1963 = vld [vmem:[#allocation9 + $0x24] sm:$0xf]
        %v1964 = vld [vmem:[#allocation9 + $0x28] sm:$0xf]
        %v1965 = vld [vmem:[#allocation9 + $0x2c] sm:$0xf]
        %v1966 = vld [vmem:[#allocation9 + $0x30] sm:$0xf]
        %v1967 = vld [vmem:[#allocation9 + $0x34] sm:$0xf]
        %v1968 = vld [vmem:[#allocation9 + $0x38] sm:$0xf]
        %v1969 = vld [vmem:[#allocation9 + $0x3c] sm:$0xf]
        %v1970 = vld [vmem:[#allocation3 + $0x4] sm:$0x1]
        %v1971 = vld [vmem:[#allocation3 + $0xc] sm:$0x1]
        %v1972 = vld [vmem:[#allocation3 + $0x14] sm:$0x1]
        %v1973 = vld [vmem:[#allocation3 + $0x1c] sm:$0x1]
        %v1974 = vld [vmem:[#allocation3 + $0x24] sm:$0x1]
        %v1975 = vld [vmem:[#allocation3 + $0x2c] sm:$0x1]
        %v1976 = vld [vmem:[#allocation3 + $0x34] sm:$0x1]
        %v1977 = vld [vmem:[#allocation3 + $0x3c] sm:$0x1]
        %v1979 = vshrl.u32 %v1946, 16
        %v1981 = vrot.slane %v1979, 4
        %v1982 = vshll.u32 %v1946, 16
        %v1984 = vrot.slane %v1982, 5
        %v1985 = vor.u32 %v1981, %v1984
        %v1986 = vrot.slane %v1985, 4
        %v1988 = vshll.u32 %v1970, 16
        %v1990 = vrot.slane %v1988, 5
        %v1991 = vsel %vm589, %v1986, %v1990
        %v1993 = vshrl.u32 %v1947, 16
        %v1995 = vrot.slane %v1993, 4
        %v1996 = vshll.u32 %v1947, 16
        %v1998 = vrot.slane %v1996, 5
        %v1999 = vor.u32 %v1995, %v1998
        %v2000 = vrot.slane %v1999, 4
        %v2002 = vshll.u32 %v1971, 16
        %v2004 = vrot.slane %v2002, 5
        %v2005 = vsel %vm589, %v2000, %v2004
        %v2007 = vshrl.u32 %v1948, 16
        %v2009 = vrot.slane %v2007, 4
        %v2010 = vshll.u32 %v1948, 16
        %v2012 = vrot.slane %v2010, 5
        %v2013 = vor.u32 %v2009, %v2012
        %v2014 = vrot.slane %v2013, 4
        %v2016 = vshll.u32 %v1972, 16
        %v2018 = vrot.slane %v2016, 5
        %v2019 = vsel %vm589, %v2014, %v2018
        %v2021 = vshrl.u32 %v1949, 16
        %v2023 = vrot.slane %v2021, 4
        %v2024 = vshll.u32 %v1949, 16
        %v2026 = vrot.slane %v2024, 5
        %v2027 = vor.u32 %v2023, %v2026
        %v2028 = vrot.slane %v2027, 4
        %v2030 = vshll.u32 %v1973, 16
        %v2032 = vrot.slane %v2030, 5
        %v2033 = vsel %vm589, %v2028, %v2032
        %v2035 = vshrl.u32 %v1950, 16
        %v2037 = vrot.slane %v2035, 4
        %v2038 = vshll.u32 %v1950, 16
        %v2040 = vrot.slane %v2038, 5
        %v2041 = vor.u32 %v2037, %v2040
        %v2042 = vrot.slane %v2041, 4
        %v2044 = vshll.u32 %v1974, 16
        %v2046 = vrot.slane %v2044, 5
        %v2047 = vsel %vm589, %v2042, %v2046
        %v2049 = vshrl.u32 %v1951, 16
        %v2051 = vrot.slane %v2049, 4
        %v2052 = vshll.u32 %v1951, 16
        %v2054 = vrot.slane %v2052, 5
        %v2055 = vor.u32 %v2051, %v2054
        %v2056 = vrot.slane %v2055, 4
        %v2058 = vshll.u32 %v1975, 16
        %v2060 = vrot.slane %v2058, 5
        %v2061 = vsel %vm589, %v2056, %v2060
        %v2063 = vshrl.u32 %v1952, 16
        %v2065 = vrot.slane %v2063, 4
        %v2066 = vshll.u32 %v1952, 16
        %v2068 = vrot.slane %v2066, 5
        %v2069 = vor.u32 %v2065, %v2068
        %v2070 = vrot.slane %v2069, 4
        %v2072 = vshll.u32 %v1976, 16
        %v2074 = vrot.slane %v2072, 5
        %v2075 = vsel %vm589, %v2070, %v2074
        %v2077 = vshrl.u32 %v1953, 16
        %v2079 = vrot.slane %v2077, 4
        %v2080 = vshll.u32 %v1953, 16
        %v2082 = vrot.slane %v2080, 5
        %v2083 = vor.u32 %v2079, %v2082
        %v2084 = vrot.slane %v2083, 4
        %v2086 = vshll.u32 %v1977, 16
        %v2088 = vrot.slane %v2086, 5
        %v2089 = vsel %vm589, %v2084, %v2088
        %s2090 = scalar_lea.vmem [#allocation9], 64
        %v2091 = vld [vmem:[%s2090] sm:$0xf]
        %v2092 = vld [vmem:[%s2090 + $0x4] sm:$0xf]
        %v2093 = vld [vmem:[%s2090 + $0x8] sm:$0xf]
        %v2094 = vld [vmem:[%s2090 + $0xc] sm:$0xf]
        %v2095 = vld [vmem:[%s2090 + $0x10] sm:$0xf]
        %v2096 = vld [vmem:[%s2090 + $0x14] sm:$0xf]
        %v2097 = vld [vmem:[%s2090 + $0x18] sm:$0xf]
        %v2098 = vld [vmem:[%s2090 + $0x1c] sm:$0xf]
        %v2099 = vld [vmem:[%s2090 + $0x20] sm:$0xf]
        %v2100 = vld [vmem:[%s2090 + $0x24] sm:$0xf]
        %v2101 = vld [vmem:[%s2090 + $0x28] sm:$0xf]
        %v2102 = vld [vmem:[%s2090 + $0x2c] sm:$0xf]
        %v2103 = vld [vmem:[%s2090 + $0x30] sm:$0xf]
        %v2104 = vld [vmem:[%s2090 + $0x34] sm:$0xf]
        %v2105 = vld [vmem:[%s2090 + $0x38] sm:$0xf]
        %v2106 = vld [vmem:[%s2090 + $0x3c] sm:$0xf]
        %v2107 = vunpack.c.l.b16 %v1991
        %v2108 = vunpack.c.l.b16 %v2005
        %v2109 = vunpack.c.l.b16 %v2019
        %v2110 = vunpack.c.l.b16 %v2033
        %v2111 = vunpack.c.l.b16 %v2047
        %v2112 = vunpack.c.l.b16 %v2061
        %v2113 = vunpack.c.l.b16 %v2075
        %v2114 = vunpack.c.l.b16 %v2089
        %v2115 = vpack.c.b16 %v2108, %v2107
        %v2116 = vpack.c.b16 %v2110, %v2109
        %v2117 = vpack.c.b16 %v2112, %v2111
        %v2118 = vpack.c.b16 %v2114, %v2113
        %v2139 = vunpack.c.l.b16 %v2091
        %v2140 = vunpack.c.l.b16 %v2092
        %v2141 = vunpack.c.l.b16 %v2093
        %v2142 = vunpack.c.l.b16 %v2094
        %v2143 = vunpack.c.l.b16 %v2095
        %v2144 = vunpack.c.l.b16 %v2096
        %v2145 = vunpack.c.l.b16 %v2097
        %v2146 = vunpack.c.l.b16 %v2098
        %v2147 = vunpack.c.l.b16 %v2099
        %v2148 = vunpack.c.l.b16 %v2100
        %v2149 = vunpack.c.l.b16 %v2101
        %v2150 = vunpack.c.l.b16 %v2102
        %v2151 = vunpack.c.l.b16 %v2103
        %v2152 = vunpack.c.l.b16 %v2104
        %v2153 = vunpack.c.l.b16 %v2105
        %v2154 = vunpack.c.l.b16 %v2106
        %v2155 = vpack.c.b16 %v2140, %v2139
        %v2156 = vpack.c.b16 %v2142, %v2141
        %v2157 = vpack.c.b16 %v2144, %v2143
        %v2158 = vpack.c.b16 %v2146, %v2145
        %v2159 = vpack.c.b16 %v2148, %v2147
        %v2160 = vpack.c.b16 %v2150, %v2149
        %v2161 = vpack.c.b16 %v2152, %v2151
        %v2162 = vpack.c.b16 %v2154, %v2153
        %2171 = vmatprep.subr.bf16.mxu0 0
        %2172 = vmatpush1.bf16.msra.mxu0 %v2162
        %2173 = vmatprep.subr.bf16.mxu0 0
        %2174 = vmatpush1.bf16.msra.mxu0 %v2161
        %2175 = vmatprep.subr.bf16.mxu0 0
        %2176 = vmatpush1.bf16.msra.mxu0 %v2160
        %2177 = vmatprep.subr.bf16.mxu0 0
        %2178 = vmatpush1.bf16.msra.mxu0 %v2159
        %2179 = vmatprep.subr.bf16.mxu0 0
        %2180 = vmatpush1.bf16.msra.mxu0 %v2158
        %2181 = vmatprep.subr.bf16.mxu0 0
        %2182 = vmatpush1.bf16.msra.mxu0 %v2157
        %2183 = vmatprep.subr.bf16.mxu0 0
        %2184 = vmatpush1.bf16.msra.mxu0 %v2156
        %2185 = vmatprep.subr.bf16.mxu0 0
        %2186 = vmatpush1.bf16.msra.mxu0 %v2155
        %2187 = vmatprep.subr.bf16.mxu0 0
        %2188 = vmatpush2.bf16.msra.mxu0 0
        %2189 = vmatprep.subr.bf16.mxu0 0
        %2190 = vmatpush2.bf16.msra.mxu0 0
        %2191 = vmatprep.subr.bf16.mxu0 0
        %2192 = vmatpush2.bf16.msra.mxu0 0
        %2193 = vmatprep.subr.bf16.mxu0 0
        %2194 = vmatpush2.bf16.msra.mxu0 0
        %2195 = vmatprep.subr.bf16.mxu0 0
        %2196 = vmatpush2.bf16.msra.mxu0 0
        %2197 = vmatprep.subr.bf16.mxu0 0
        %2198 = vmatpush2.bf16.msra.mxu0 0
        %2199 = vmatprep.subr.bf16.mxu0 0
        %2200 = vmatpush2.bf16.msra.mxu0 0
        %2201 = vmatprep.subr.bf16.mxu0 0
        %2202 = vmatpush2.bf16.msra.mxu0 0
        %2203 = vmatprep.mubr.bf16.mxu0 0
        %2204 = vmatmul.mubr.bf16.gmra.mxu0 %v2115
        %v2205 = vpop.f32.mrf.mxu0
        %v2206 = vadd.f32 0.0, %v2205
        %v2207 = vpop.f32.mrf.mxu0
        %v2208 = vpop.f32.mrf.mxu0
        %v2209 = vadd.f32 0.0, %v2208
        %v2210 = vpop.f32.mrf.mxu0
        %2211 = vmatprep.mubr.bf16.mxu0 0
        %2212 = vmatmul.mubr.bf16.gmra.mxu0 %v2116
        %v2213 = vpop.f32.mrf.mxu0
        %v2214 = vadd.f32 0.0, %v2213
        %v2215 = vpop.f32.mrf.mxu0
        %v2216 = vpop.f32.mrf.mxu0
        %v2217 = vadd.f32 0.0, %v2216
        %v2218 = vpop.f32.mrf.mxu0
        %2219 = vmatprep.mubr.bf16.mxu0 0
        %2220 = vmatmul.mubr.bf16.gmra.mxu0 %v2117
        %v2221 = vpop.f32.mrf.mxu0
        %v2222 = vadd.f32 0.0, %v2221
        %v2223 = vpop.f32.mrf.mxu0
        %v2224 = vpop.f32.mrf.mxu0
        %v2225 = vadd.f32 0.0, %v2224
        %v2226 = vpop.f32.mrf.mxu0
        %2227 = vmatprep.mubr.bf16.mxu0 0
        %2228 = vmatmul.mubr.bf16.gmra.mxu0 %v2118
        %v2229 = vpop.f32.mrf.mxu0
        %v2230 = vadd.f32 0.0, %v2229
        %v2231 = vpop.f32.mrf.mxu0
        %v2232 = vpop.f32.mrf.mxu0
        %v2233 = vadd.f32 0.0, %v2232
        %v2234 = vpop.f32.mrf.mxu0
        %2235 = vdwg.mxu0
        %v2244 = vunpack.c.l.b16 %v1946
        %v2245 = vunpack.c.l.b16 %v1947
        %v2246 = vunpack.c.l.b16 %v1948
        %v2247 = vunpack.c.l.b16 %v1949
        %v2248 = vunpack.c.l.b16 %v1950
        %v2249 = vunpack.c.l.b16 %v1951
        %v2250 = vunpack.c.l.b16 %v1952
        %v2251 = vunpack.c.l.b16 %v1953
        %v2252 = vpack.c.b16 %v2245, %v2244
        %v2253 = vpack.c.b16 %v2247, %v2246
        %v2254 = vpack.c.b16 %v2249, %v2248
        %v2255 = vpack.c.b16 %v2251, %v2250
        %v2276 = vunpack.c.l.b16 %v1954
        %v2277 = vunpack.c.l.b16 %v1955
        %v2278 = vunpack.c.l.b16 %v1956
        %v2279 = vunpack.c.l.b16 %v1957
        %v2280 = vunpack.c.l.b16 %v1958
        %v2281 = vunpack.c.l.b16 %v1959
        %v2282 = vunpack.c.l.b16 %v1960
        %v2283 = vunpack.c.l.b16 %v1961
        %v2284 = vunpack.c.l.b16 %v1962
        %v2285 = vunpack.c.l.b16 %v1963
        %v2286 = vunpack.c.l.b16 %v1964
        %v2287 = vunpack.c.l.b16 %v1965
        %v2288 = vunpack.c.l.b16 %v1966
        %v2289 = vunpack.c.l.b16 %v1967
        %v2290 = vunpack.c.l.b16 %v1968
        %v2291 = vunpack.c.l.b16 %v1969
        %v2292 = vpack.c.b16 %v2277, %v2276
        %v2293 = vpack.c.b16 %v2279, %v2278
        %v2294 = vpack.c.b16 %v2281, %v2280
        %v2295 = vpack.c.b16 %v2283, %v2282
        %v2296 = vpack.c.b16 %v2285, %v2284
        %v2297 = vpack.c.b16 %v2287, %v2286
        %v2298 = vpack.c.b16 %v2289, %v2288
        %v2299 = vpack.c.b16 %v2291, %v2290
        %2308 = vmatprep.subr.bf16.mxu0 0
        %2309 = vmatpush1.bf16.msra.mxu0 %v2299
        %2310 = vmatprep.subr.bf16.mxu0 0
        %2311 = vmatpush1.bf16.msra.mxu0 %v2298
        %2312 = vmatprep.subr.bf16.mxu0 0
        %2313 = vmatpush1.bf16.msra.mxu0 %v2297
        %2314 = vmatprep.subr.bf16.mxu0 0
        %2315 = vmatpush1.bf16.msra.mxu0 %v2296
        %2316 = vmatprep.subr.bf16.mxu0 0
        %2317 = vmatpush1.bf16.msra.mxu0 %v2295
        %2318 = vmatprep.subr.bf16.mxu0 0
        %2319 = vmatpush1.bf16.msra.mxu0 %v2294
        %2320 = vmatprep.subr.bf16.mxu0 0
        %2321 = vmatpush1.bf16.msra.mxu0 %v2293
        %2322 = vmatprep.subr.bf16.mxu0 0
        %2323 = vmatpush1.bf16.msra.mxu0 %v2292
        %2324 = vmatprep.subr.bf16.mxu0 0
        %2325 = vmatpush2.bf16.msra.mxu0 0
        %2326 = vmatprep.subr.bf16.mxu0 0
        %2327 = vmatpush2.bf16.msra.mxu0 0
        %2328 = vmatprep.subr.bf16.mxu0 0
        %2329 = vmatpush2.bf16.msra.mxu0 0
        %2330 = vmatprep.subr.bf16.mxu0 0
        %2331 = vmatpush2.bf16.msra.mxu0 0
        %2332 = vmatprep.subr.bf16.mxu0 0
        %2333 = vmatpush2.bf16.msra.mxu0 0
        %2334 = vmatprep.subr.bf16.mxu0 0
        %2335 = vmatpush2.bf16.msra.mxu0 0
        %2336 = vmatprep.subr.bf16.mxu0 0
        %2337 = vmatpush2.bf16.msra.mxu0 0
        %2338 = vmatprep.subr.bf16.mxu0 0
        %2339 = vmatpush2.bf16.msra.mxu0 0
        %2340 = vmatprep.mubr.bf16.mxu0 0
        %2341 = vmatmul.mubr.bf16.gmra.mxu0 %v2252
        %v2342 = vpop.f32.mrf.mxu0
        %v2343 = vadd.f32 %v2206, %v2342
        %v2344 = vpop.f32.mrf.mxu0
        %v2345 = vpop.f32.mrf.mxu0
        %v2346 = vadd.f32 %v2209, %v2345
        %v2347 = vpop.f32.mrf.mxu0
        %2348 = vmatprep.mubr.bf16.mxu0 0
        %2349 = vmatmul.mubr.bf16.gmra.mxu0 %v2253
        %v2350 = vpop.f32.mrf.mxu0
        %v2351 = vadd.f32 %v2214, %v2350
        %v2352 = vpop.f32.mrf.mxu0
        %v2353 = vpop.f32.mrf.mxu0
        %v2354 = vadd.f32 %v2217, %v2353
        %v2355 = vpop.f32.mrf.mxu0
        %2356 = vmatprep.mubr.bf16.mxu0 0
        %2357 = vmatmul.mubr.bf16.gmra.mxu0 %v2254
        %v2358 = vpop.f32.mrf.mxu0
        %v2359 = vadd.f32 %v2222, %v2358
        %v2360 = vpop.f32.mrf.mxu0
        %v2361 = vpop.f32.mrf.mxu0
        %v2362 = vadd.f32 %v2225, %v2361
        %v2363 = vpop.f32.mrf.mxu0
        %2364 = vmatprep.mubr.bf16.mxu0 0
        %2365 = vmatmul.mubr.bf16.gmra.mxu0 %v2255
        %v2366 = vpop.f32.mrf.mxu0
        %v2367 = vadd.f32 %v2230, %v2366
        %v2368 = vpop.f32.mrf.mxu0
        %v2369 = vpop.f32.mrf.mxu0
        %v2370 = vadd.f32 %v2233, %v2369
        %v2371 = vpop.f32.mrf.mxu0
        %2372 = vdwg.mxu0
        %v2373 = vld [vmem:[#allocation3] sm:$0xe]
        %v2374 = vld [vmem:[#allocation3 + $0x8] sm:$0xe]
        %v2375 = vld [vmem:[#allocation3 + $0x10] sm:$0xe]
        %v2376 = vld [vmem:[#allocation3 + $0x18] sm:$0xe]
        %v2377 = vld [vmem:[#allocation3 + $0x20] sm:$0xe]
        %v2378 = vld [vmem:[#allocation3 + $0x28] sm:$0xe]
        %v2379 = vld [vmem:[#allocation3 + $0x30] sm:$0xe]
        %v2380 = vld [vmem:[#allocation3 + $0x38] sm:$0xe]
        %vm2397 = vcmask 1042432
        %vm2398 = vcmask 1046532
        %vm2399 = vmor %vm2397, %vm2398
        %v2400 = vrot.slane %v2373, 5
        %v2401 = vrot.slane %v2400, 4
        %v2402 = vrot.slane %v1970, 5
        %v2403 = vsel %vm2399, %v2401, %v2402
        %v2404 = vrot.slane %v2374, 5
        %v2405 = vrot.slane %v2404, 4
        %v2406 = vrot.slane %v1971, 5
        %v2407 = vsel %vm2399, %v2405, %v2406
        %v2408 = vrot.slane %v2375, 5
        %v2409 = vrot.slane %v2408, 4
        %v2410 = vrot.slane %v1972, 5
        %v2411 = vsel %vm2399, %v2409, %v2410
        %v2412 = vrot.slane %v2376, 5
        %v2413 = vrot.slane %v2412, 4
        %v2414 = vrot.slane %v1973, 5
        %v2415 = vsel %vm2399, %v2413, %v2414
        %v2416 = vrot.slane %v2377, 5
        %v2417 = vrot.slane %v2416, 4
        %v2418 = vrot.slane %v1974, 5
        %v2419 = vsel %vm2399, %v2417, %v2418
        %v2420 = vrot.slane %v2378, 5
        %v2421 = vrot.slane %v2420, 4
        %v2422 = vrot.slane %v1975, 5
        %v2423 = vsel %vm2399, %v2421, %v2422
        %v2424 = vrot.slane %v2379, 5
        %v2425 = vrot.slane %v2424, 4
        %v2426 = vrot.slane %v1976, 5
        %v2427 = vsel %vm2399, %v2425, %v2426
        %v2428 = vrot.slane %v2380, 5
        %v2429 = vrot.slane %v2428, 4
        %v2430 = vrot.slane %v1977, 5
        %v2431 = vsel %vm2399, %v2429, %v2430
        %s2432 = scalar_lea.vmem [#allocation9], 128
        %v2433 = vld [vmem:[%s2432] sm:$0xf]
        %v2434 = vld [vmem:[%s2432 + $0x4] sm:$0xf]
        %v2435 = vld [vmem:[%s2432 + $0x8] sm:$0xf]
        %v2436 = vld [vmem:[%s2432 + $0xc] sm:$0xf]
        %v2437 = vld [vmem:[%s2432 + $0x10] sm:$0xf]
        %v2438 = vld [vmem:[%s2432 + $0x14] sm:$0xf]
        %v2439 = vld [vmem:[%s2432 + $0x18] sm:$0xf]
        %v2440 = vld [vmem:[%s2432 + $0x1c] sm:$0xf]
        %v2441 = vld [vmem:[%s2432 + $0x20] sm:$0xf]
        %v2442 = vld [vmem:[%s2432 + $0x24] sm:$0xf]
        %v2443 = vld [vmem:[%s2432 + $0x28] sm:$0xf]
        %v2444 = vld [vmem:[%s2432 + $0x2c] sm:$0xf]
        %v2445 = vld [vmem:[%s2432 + $0x30] sm:$0xf]
        %v2446 = vld [vmem:[%s2432 + $0x34] sm:$0xf]
        %v2447 = vld [vmem:[%s2432 + $0x38] sm:$0xf]
        %v2448 = vld [vmem:[%s2432 + $0x3c] sm:$0xf]
        %v2449 = vunpack.c.l.b16 %v2403
        %v2450 = vunpack.c.l.b16 %v2407
        %v2451 = vunpack.c.l.b16 %v2411
        %v2452 = vunpack.c.l.b16 %v2415
        %v2453 = vunpack.c.l.b16 %v2419
        %v2454 = vunpack.c.l.b16 %v2423
        %v2455 = vunpack.c.l.b16 %v2427
        %v2456 = vunpack.c.l.b16 %v2431
        %v2457 = vpack.c.b16 %v2450, %v2449
        %v2458 = vpack.c.b16 %v2452, %v2451
        %v2459 = vpack.c.b16 %v2454, %v2453
        %v2460 = vpack.c.b16 %v2456, %v2455
        %v2481 = vunpack.c.l.b16 %v2433
        %v2482 = vunpack.c.l.b16 %v2434
        %v2483 = vunpack.c.l.b16 %v2435
        %v2484 = vunpack.c.l.b16 %v2436
        %v2485 = vunpack.c.l.b16 %v2437
        %v2486 = vunpack.c.l.b16 %v2438
        %v2487 = vunpack.c.l.b16 %v2439
        %v2488 = vunpack.c.l.b16 %v2440
        %v2489 = vunpack.c.l.b16 %v2441
        %v2490 = vunpack.c.l.b16 %v2442
        %v2491 = vunpack.c.l.b16 %v2443
        %v2492 = vunpack.c.l.b16 %v2444
        %v2493 = vunpack.c.l.b16 %v2445
        %v2494 = vunpack.c.l.b16 %v2446
        %v2495 = vunpack.c.l.b16 %v2447
        %v2496 = vunpack.c.l.b16 %v2448
        %v2497 = vpack.c.b16 %v2482, %v2481
        %v2498 = vpack.c.b16 %v2484, %v2483
        %v2499 = vpack.c.b16 %v2486, %v2485
        %v2500 = vpack.c.b16 %v2488, %v2487
        %v2501 = vpack.c.b16 %v2490, %v2489
        %v2502 = vpack.c.b16 %v2492, %v2491
        %v2503 = vpack.c.b16 %v2494, %v2493
        %v2504 = vpack.c.b16 %v2496, %v2495
        %2513 = vmatprep.subr.bf16.mxu0 0
        %2514 = vmatpush1.bf16.msra.mxu0 %v2504
        %2515 = vmatprep.subr.bf16.mxu0 0
        %2516 = vmatpush1.bf16.msra.mxu0 %v2503
        %2517 = vmatprep.subr.bf16.mxu0 0
        %2518 = vmatpush1.bf16.msra.mxu0 %v2502
        %2519 = vmatprep.subr.bf16.mxu0 0
        %2520 = vmatpush1.bf16.msra.mxu0 %v2501
        %2521 = vmatprep.subr.bf16.mxu0 0
        %2522 = vmatpush1.bf16.msra.mxu0 %v2500
        %2523 = vmatprep.subr.bf16.mxu0 0
        %2524 = vmatpush1.bf16.msra.mxu0 %v2499
        %2525 = vmatprep.subr.bf16.mxu0 0
        %2526 = vmatpush1.bf16.msra.mxu0 %v2498
        %2527 = vmatprep.subr.bf16.mxu0 0
        %2528 = vmatpush1.bf16.msra.mxu0 %v2497
        %2529 = vmatprep.subr.bf16.mxu0 0
        %2530 = vmatpush2.bf16.msra.mxu0 0
        %2531 = vmatprep.subr.bf16.mxu0 0
        %2532 = vmatpush2.bf16.msra.mxu0 0
        %2533 = vmatprep.subr.bf16.mxu0 0
        %2534 = vmatpush2.bf16.msra.mxu0 0
        %2535 = vmatprep.subr.bf16.mxu0 0
        %2536 = vmatpush2.bf16.msra.mxu0 0
        %2537 = vmatprep.subr.bf16.mxu0 0
        %2538 = vmatpush2.bf16.msra.mxu0 0
        %2539 = vmatprep.subr.bf16.mxu0 0
        %2540 = vmatpush2.bf16.msra.mxu0 0
        %2541 = vmatprep.subr.bf16.mxu0 0
        %2542 = vmatpush2.bf16.msra.mxu0 0
        %2543 = vmatprep.subr.bf16.mxu0 0
        %2544 = vmatpush2.bf16.msra.mxu0 0
        %2545 = vmatprep.mubr.bf16.mxu0 0
        %2546 = vmatmul.mubr.bf16.gmra.mxu0 %v2457
        %v2547 = vpop.f32.mrf.mxu0
        %v2548 = vadd.f32 0.0, %v2547
        %v2549 = vpop.f32.mrf.mxu0
        %v2550 = vpop.f32.mrf.mxu0
        %v2551 = vadd.f32 0.0, %v2550
        %v2552 = vpop.f32.mrf.mxu0
        %2553 = vmatprep.mubr.bf16.mxu0 0
        %2554 = vmatmul.mubr.bf16.gmra.mxu0 %v2458
        %v2555 = vpop.f32.mrf.mxu0
        %v2556 = vadd.f32 0.0, %v2555
        %v2557 = vpop.f32.mrf.mxu0
        %v2558 = vpop.f32.mrf.mxu0
        %v2559 = vadd.f32 0.0, %v2558
        %v2560 = vpop.f32.mrf.mxu0
        %2561 = vmatprep.mubr.bf16.mxu0 0
        %2562 = vmatmul.mubr.bf16.gmra.mxu0 %v2459
        %v2563 = vpop.f32.mrf.mxu0
        %v2564 = vadd.f32 0.0, %v2563
        %v2565 = vpop.f32.mrf.mxu0
        %v2566 = vpop.f32.mrf.mxu0
        %v2567 = vadd.f32 0.0, %v2566
        %v2568 = vpop.f32.mrf.mxu0
        %2569 = vmatprep.mubr.bf16.mxu0 0
        %2570 = vmatmul.mubr.bf16.gmra.mxu0 %v2460
        %v2571 = vpop.f32.mrf.mxu0
        %v2572 = vadd.f32 0.0, %v2571
        %v2573 = vpop.f32.mrf.mxu0
        %v2574 = vpop.f32.mrf.mxu0
        %v2575 = vadd.f32 0.0, %v2574
        %v2576 = vpop.f32.mrf.mxu0
        %2577 = vdwg.mxu0
        %v2578 = vadd.f32 %v2343, %v2548
        %v2579 = vadd.f32 %v2346, %v2551
        %v2580 = vadd.f32 %v2351, %v2556
        %v2581 = vadd.f32 %v2354, %v2559
        %v2582 = vadd.f32 %v2359, %v2564
        %v2583 = vadd.f32 %v2362, %v2567
        %v2584 = vadd.f32 %v2367, %v2572
        %v2585 = vadd.f32 %v2370, %v2575
        %v2586 = vld [vmem:[%s1895] sm:$0xf]
        %v2587 = vld [vmem:[%s1895 + $0x8] sm:$0xf]
        %v2588 = vld [vmem:[%s1895 + $0x10] sm:$0xf]
        %v2589 = vld [vmem:[%s1895 + $0x18] sm:$0xf]
        %v2590 = vld [vmem:[%s1895 + $0x20] sm:$0xf]
        %v2591 = vld [vmem:[%s1895 + $0x28] sm:$0xf]
        %v2592 = vld [vmem:[%s1895 + $0x30] sm:$0xf]
        %v2593 = vld [vmem:[%s1895 + $0x38] sm:$0xf]
        %s2594 = scalar_lea.vmem [#allocation9], 192
        %v2595 = vld [vmem:[%s2594] sm:$0xf]
        %v2596 = vld [vmem:[%s2594 + $0x4] sm:$0xf]
        %v2597 = vld [vmem:[%s2594 + $0x8] sm:$0xf]
        %v2598 = vld [vmem:[%s2594 + $0xc] sm:$0xf]
        %v2599 = vld [vmem:[%s2594 + $0x10] sm:$0xf]
        %v2600 = vld [vmem:[%s2594 + $0x14] sm:$0xf]
        %v2601 = vld [vmem:[%s2594 + $0x18] sm:$0xf]
        %v2602 = vld [vmem:[%s2594 + $0x1c] sm:$0xf]
        %v2603 = vld [vmem:[%s2594 + $0x20] sm:$0xf]
        %v2604 = vld [vmem:[%s2594 + $0x24] sm:$0xf]
        %v2605 = vld [vmem:[%s2594 + $0x28] sm:$0xf]
        %v2606 = vld [vmem:[%s2594 + $0x2c] sm:$0xf]
        %v2607 = vld [vmem:[%s2594 + $0x30] sm:$0xf]
        %v2608 = vld [vmem:[%s2594 + $0x34] sm:$0xf]
        %v2609 = vld [vmem:[%s2594 + $0x38] sm:$0xf]
        %v2610 = vld [vmem:[%s2594 + $0x3c] sm:$0xf]
        %v2619 = vunpack.c.l.b16 %v2586
        %v2620 = vunpack.c.l.b16 %v2587
        %v2621 = vunpack.c.l.b16 %v2588
        %v2622 = vunpack.c.l.b16 %v2589
        %v2623 = vunpack.c.l.b16 %v2590
        %v2624 = vunpack.c.l.b16 %v2591
        %v2625 = vunpack.c.l.b16 %v2592
        %v2626 = vunpack.c.l.b16 %v2593
        %v2627 = vpack.c.b16 %v2620, %v2619
        %v2628 = vpack.c.b16 %v2622, %v2621
        %v2629 = vpack.c.b16 %v2624, %v2623
        %v2630 = vpack.c.b16 %v2626, %v2625
        %v2651 = vunpack.c.l.b16 %v2595
        %v2652 = vunpack.c.l.b16 %v2596
        %v2653 = vunpack.c.l.b16 %v2597
        %v2654 = vunpack.c.l.b16 %v2598
        %v2655 = vunpack.c.l.b16 %v2599
        %v2656 = vunpack.c.l.b16 %v2600
        %v2657 = vunpack.c.l.b16 %v2601
        %v2658 = vunpack.c.l.b16 %v2602
        %v2659 = vunpack.c.l.b16 %v2603
        %v2660 = vunpack.c.l.b16 %v2604
        %v2661 = vunpack.c.l.b16 %v2605
        %v2662 = vunpack.c.l.b16 %v2606
        %v2663 = vunpack.c.l.b16 %v2607
        %v2664 = vunpack.c.l.b16 %v2608
        %v2665 = vunpack.c.l.b16 %v2609
        %v2666 = vunpack.c.l.b16 %v2610
        %v2667 = vpack.c.b16 %v2652, %v2651
        %v2668 = vpack.c.b16 %v2654, %v2653
        %v2669 = vpack.c.b16 %v2656, %v2655
        %v2670 = vpack.c.b16 %v2658, %v2657
        %v2671 = vpack.c.b16 %v2660, %v2659
        %v2672 = vpack.c.b16 %v2662, %v2661
        %v2673 = vpack.c.b16 %v2664, %v2663
        %v2674 = vpack.c.b16 %v2666, %v2665
        %2683 = vmatprep.subr.bf16.mxu0 0
        %2684 = vmatpush1.bf16.msra.mxu0 %v2674
        %2685 = vmatprep.subr.bf16.mxu0 0
        %2686 = vmatpush1.bf16.msra.mxu0 %v2673
        %2687 = vmatprep.subr.bf16.mxu0 0
        %2688 = vmatpush1.bf16.msra.mxu0 %v2672
        %2689 = vmatprep.subr.bf16.mxu0 0
        %2690 = vmatpush1.bf16.msra.mxu0 %v2671
        %2691 = vmatprep.subr.bf16.mxu0 0
        %2692 = vmatpush1.bf16.msra.mxu0 %v2670
        %2693 = vmatprep.subr.bf16.mxu0 0
        %2694 = vmatpush1.bf16.msra.mxu0 %v2669
        %2695 = vmatprep.subr.bf16.mxu0 0
        %2696 = vmatpush1.bf16.msra.mxu0 %v2668
        %2697 = vmatprep.subr.bf16.mxu0 0
        %2698 = vmatpush1.bf16.msra.mxu0 %v2667
        %2699 = vmatprep.subr.bf16.mxu0 0
        %2700 = vmatpush2.bf16.msra.mxu0 0
        %2701 = vmatprep.subr.bf16.mxu0 0
        %2702 = vmatpush2.bf16.msra.mxu0 0
        %2703 = vmatprep.subr.bf16.mxu0 0
        %2704 = vmatpush2.bf16.msra.mxu0 0
        %2705 = vmatprep.subr.bf16.mxu0 0
        %2706 = vmatpush2.bf16.msra.mxu0 0
        %2707 = vmatprep.subr.bf16.mxu0 0
        %2708 = vmatpush2.bf16.msra.mxu0 0
        %2709 = vmatprep.subr.bf16.mxu0 0
        %2710 = vmatpush2.bf16.msra.mxu0 0
        %2711 = vmatprep.subr.bf16.mxu0 0
        %2712 = vmatpush2.bf16.msra.mxu0 0
        %2713 = vmatprep.subr.bf16.mxu0 0
        %2714 = vmatpush2.bf16.msra.mxu0 0
        %2715 = vmatprep.mubr.bf16.mxu0 0
        %2716 = vmatmul.mubr.bf16.gmra.mxu0 %v2627
        %v2717 = vpop.f32.mrf.mxu0
        %v2718 = vadd.f32 0.0, %v2717
        %v2719 = vpop.f32.mrf.mxu0
        %v2720 = vpop.f32.mrf.mxu0
        %v2721 = vadd.f32 0.0, %v2720
        %v2722 = vpop.f32.mrf.mxu0
        %2723 = vmatprep.mubr.bf16.mxu0 0
        %2724 = vmatmul.mubr.bf16.gmra.mxu0 %v2628
        %v2725 = vpop.f32.mrf.mxu0
        %v2726 = vadd.f32 0.0, %v2725
        %v2727 = vpop.f32.mrf.mxu0
        %v2728 = vpop.f32.mrf.mxu0
        %v2729 = vadd.f32 0.0, %v2728
        %v2730 = vpop.f32.mrf.mxu0
        %2731 = vmatprep.mubr.bf16.mxu0 0
        %2732 = vmatmul.mubr.bf16.gmra.mxu0 %v2629
        %v2733 = vpop.f32.mrf.mxu0
        %v2734 = vadd.f32 0.0, %v2733
        %v2735 = vpop.f32.mrf.mxu0
        %v2736 = vpop.f32.mrf.mxu0
        %v2737 = vadd.f32 0.0, %v2736
        %v2738 = vpop.f32.mrf.mxu0
        %2739 = vmatprep.mubr.bf16.mxu0 0
        %2740 = vmatmul.mubr.bf16.gmra.mxu0 %v2630
        %v2741 = vpop.f32.mrf.mxu0
        %v2742 = vadd.f32 0.0, %v2741
        %v2743 = vpop.f32.mrf.mxu0
        %v2744 = vpop.f32.mrf.mxu0
        %v2745 = vadd.f32 0.0, %v2744
        %v2746 = vpop.f32.mrf.mxu0
        %2747 = vdwg.mxu0
        %v2748 = vadd.f32 %v2578, %v2718
        %v2749 = vadd.f32 %v2579, %v2721
        %v2750 = vadd.f32 %v2580, %v2726
        %v2751 = vadd.f32 %v2581, %v2729
        %v2752 = vadd.f32 %v2582, %v2734
        %v2753 = vadd.f32 %v2583, %v2737
        %v2754 = vadd.f32 %v2584, %v2742
        %v2755 = vadd.f32 %v2585, %v2745
        %v2756 = vld [vmem:[%s1895] sm:$0xf]
        %v2757 = vld [vmem:[%s1895 + $0x4] sm:$0x1]
        %v2758 = vld [vmem:[%s1895 + $0x8] sm:$0xf]
        %v2759 = vld [vmem:[%s1895 + $0xc] sm:$0x1]
        %v2760 = vld [vmem:[%s1895 + $0x10] sm:$0xf]
        %v2761 = vld [vmem:[%s1895 + $0x14] sm:$0x1]
        %v2762 = vld [vmem:[%s1895 + $0x18] sm:$0xf]
        %v2763 = vld [vmem:[%s1895 + $0x1c] sm:$0x1]
        %v2764 = vld [vmem:[%s1895 + $0x20] sm:$0xf]
        %v2765 = vld [vmem:[%s1895 + $0x24] sm:$0x1]
        %v2766 = vld [vmem:[%s1895 + $0x28] sm:$0xf]
        %v2767 = vld [vmem:[%s1895 + $0x2c] sm:$0x1]
        %v2768 = vld [vmem:[%s1895 + $0x30] sm:$0xf]
        %v2769 = vld [vmem:[%s1895 + $0x34] sm:$0x1]
        %v2770 = vld [vmem:[%s1895 + $0x38] sm:$0xf]
        %v2771 = vld [vmem:[%s1895 + $0x3c] sm:$0x1]
        %v2773 = vshrl.u32 %v2756, 16
        %v2775 = vrot.slane %v2773, 4
        %v2776 = vshll.u32 %v2756, 16
        %v2778 = vrot.slane %v2776, 5
        %v2779 = vor.u32 %v2775, %v2778
        %v2780 = vrot.slane %v2779, 4
        %v2782 = vshll.u32 %v2757, 16
        %v2784 = vrot.slane %v2782, 5
        %v2785 = vsel %vm589, %v2780, %v2784
        %v2787 = vshrl.u32 %v2758, 16
        %v2789 = vrot.slane %v2787, 4
        %v2790 = vshll.u32 %v2758, 16
        %v2792 = vrot.slane %v2790, 5
        %v2793 = vor.u32 %v2789, %v2792
        %v2794 = vrot.slane %v2793, 4
        %v2796 = vshll.u32 %v2759, 16
        %v2798 = vrot.slane %v2796, 5
        %v2799 = vsel %vm589, %v2794, %v2798
        %v2801 = vshrl.u32 %v2760, 16
        %v2803 = vrot.slane %v2801, 4
        %v2804 = vshll.u32 %v2760, 16
        %v2806 = vrot.slane %v2804, 5
        %v2807 = vor.u32 %v2803, %v2806
        %v2808 = vrot.slane %v2807, 4
        %v2810 = vshll.u32 %v2761, 16
        %v2812 = vrot.slane %v2810, 5
        %v2813 = vsel %vm589, %v2808, %v2812
        %v2815 = vshrl.u32 %v2762, 16
        %v2817 = vrot.slane %v2815, 4
        %v2818 = vshll.u32 %v2762, 16
        %v2820 = vrot.slane %v2818, 5
        %v2821 = vor.u32 %v2817, %v2820
        %v2822 = vrot.slane %v2821, 4
        %v2824 = vshll.u32 %v2763, 16
        %v2826 = vrot.slane %v2824, 5
        %v2827 = vsel %vm589, %v2822, %v2826
        %v2829 = vshrl.u32 %v2764, 16
        %v2831 = vrot.slane %v2829, 4
        %v2832 = vshll.u32 %v2764, 16
        %v2834 = vrot.slane %v2832, 5
        %v2835 = vor.u32 %v2831, %v2834
        %v2836 = vrot.slane %v2835, 4
        %v2838 = vshll.u32 %v2765, 16
        %v2840 = vrot.slane %v2838, 5
        %v2841 = vsel %vm589, %v2836, %v2840
        %v2843 = vshrl.u32 %v2766, 16
        %v2845 = vrot.slane %v2843, 4
        %v2846 = vshll.u32 %v2766, 16
        %v2848 = vrot.slane %v2846, 5
        %v2849 = vor.u32 %v2845, %v2848
        %v2850 = vrot.slane %v2849, 4
        %v2852 = vshll.u32 %v2767, 16
        %v2854 = vrot.slane %v2852, 5
        %v2855 = vsel %vm589, %v2850, %v2854
        %v2857 = vshrl.u32 %v2768, 16
        %v2859 = vrot.slane %v2857, 4
        %v2860 = vshll.u32 %v2768, 16
        %v2862 = vrot.slane %v2860, 5
        %v2863 = vor.u32 %v2859, %v2862
        %v2864 = vrot.slane %v2863, 4
        %v2866 = vshll.u32 %v2769, 16
        %v2868 = vrot.slane %v2866, 5
        %v2869 = vsel %vm589, %v2864, %v2868
        %v2871 = vshrl.u32 %v2770, 16
        %v2873 = vrot.slane %v2871, 4
        %v2874 = vshll.u32 %v2770, 16
        %v2876 = vrot.slane %v2874, 5
        %v2877 = vor.u32 %v2873, %v2876
        %v2878 = vrot.slane %v2877, 4
        %v2880 = vshll.u32 %v2771, 16
        %v2882 = vrot.slane %v2880, 5
        %v2883 = vsel %vm589, %v2878, %v2882
        %s2884 = scalar_lea.vmem [#allocation9], 256
        %v2885 = vld [vmem:[%s2884] sm:$0xf]
        %v2886 = vld [vmem:[%s2884 + $0x4] sm:$0xf]
        %v2887 = vld [vmem:[%s2884 + $0x8] sm:$0xf]
        %v2888 = vld [vmem:[%s2884 + $0xc] sm:$0xf]
        %v2889 = vld [vmem:[%s2884 + $0x10] sm:$0xf]
        %v2890 = vld [vmem:[%s2884 + $0x14] sm:$0xf]
        %v2891 = vld [vmem:[%s2884 + $0x18] sm:$0xf]
        %v2892 = vld [vmem:[%s2884 + $0x1c] sm:$0xf]
        %v2893 = vld [vmem:[%s2884 + $0x20] sm:$0xf]
        %v2894 = vld [vmem:[%s2884 + $0x24] sm:$0xf]
        %v2895 = vld [vmem:[%s2884 + $0x28] sm:$0xf]
        %v2896 = vld [vmem:[%s2884 + $0x2c] sm:$0xf]
        %v2897 = vld [vmem:[%s2884 + $0x30] sm:$0xf]
        %v2898 = vld [vmem:[%s2884 + $0x34] sm:$0xf]
        %v2899 = vld [vmem:[%s2884 + $0x38] sm:$0xf]
        %v2900 = vld [vmem:[%s2884 + $0x3c] sm:$0xf]
        %v2901 = vunpack.c.l.b16 %v2785
        %v2902 = vunpack.c.l.b16 %v2799
        %v2903 = vunpack.c.l.b16 %v2813
        %v2904 = vunpack.c.l.b16 %v2827
        %v2905 = vunpack.c.l.b16 %v2841
        %v2906 = vunpack.c.l.b16 %v2855
        %v2907 = vunpack.c.l.b16 %v2869
        %v2908 = vunpack.c.l.b16 %v2883
        %v2909 = vpack.c.b16 %v2902, %v2901
        %v2910 = vpack.c.b16 %v2904, %v2903
        %v2911 = vpack.c.b16 %v2906, %v2905
        %v2912 = vpack.c.b16 %v2908, %v2907
        %v2933 = vunpack.c.l.b16 %v2885
        %v2934 = vunpack.c.l.b16 %v2886
        %v2935 = vunpack.c.l.b16 %v2887
        %v2936 = vunpack.c.l.b16 %v2888
        %v2937 = vunpack.c.l.b16 %v2889
        %v2938 = vunpack.c.l.b16 %v2890
        %v2939 = vunpack.c.l.b16 %v2891
        %v2940 = vunpack.c.l.b16 %v2892
        %v2941 = vunpack.c.l.b16 %v2893
        %v2942 = vunpack.c.l.b16 %v2894
        %v2943 = vunpack.c.l.b16 %v2895
        %v2944 = vunpack.c.l.b16 %v2896
        %v2945 = vunpack.c.l.b16 %v2897
        %v2946 = vunpack.c.l.b16 %v2898
        %v2947 = vunpack.c.l.b16 %v2899
        %v2948 = vunpack.c.l.b16 %v2900
        %v2949 = vpack.c.b16 %v2934, %v2933
        %v2950 = vpack.c.b16 %v2936, %v2935
        %v2951 = vpack.c.b16 %v2938, %v2937
        %v2952 = vpack.c.b16 %v2940, %v2939
        %v2953 = vpack.c.b16 %v2942, %v2941
        %v2954 = vpack.c.b16 %v2944, %v2943
        %v2955 = vpack.c.b16 %v2946, %v2945
        %v2956 = vpack.c.b16 %v2948, %v2947
        %2965 = vmatprep.subr.bf16.mxu0 0
        %2966 = vmatpush1.bf16.msra.mxu0 %v2956
        %2967 = vmatprep.subr.bf16.mxu0 0
        %2968 = vmatpush1.bf16.msra.mxu0 %v2955
        %2969 = vmatprep.subr.bf16.mxu0 0
        %2970 = vmatpush1.bf16.msra.mxu0 %v2954
        %2971 = vmatprep.subr.bf16.mxu0 0
        %2972 = vmatpush1.bf16.msra.mxu0 %v2953
        %2973 = vmatprep.subr.bf16.mxu0 0
        %2974 = vmatpush1.bf16.msra.mxu0 %v2952
        %2975 = vmatprep.subr.bf16.mxu0 0
        %2976 = vmatpush1.bf16.msra.mxu0 %v2951
        %2977 = vmatprep.subr.bf16.mxu0 0
        %2978 = vmatpush1.bf16.msra.mxu0 %v2950
        %2979 = vmatprep.subr.bf16.mxu0 0
        %2980 = vmatpush1.bf16.msra.mxu0 %v2949
        %2981 = vmatprep.subr.bf16.mxu0 0
        %2982 = vmatpush2.bf16.msra.mxu0 0
        %2983 = vmatprep.subr.bf16.mxu0 0
        %2984 = vmatpush2.bf16.msra.mxu0 0
        %2985 = vmatprep.subr.bf16.mxu0 0
        %2986 = vmatpush2.bf16.msra.mxu0 0
        %2987 = vmatprep.subr.bf16.mxu0 0
        %2988 = vmatpush2.bf16.msra.mxu0 0
        %2989 = vmatprep.subr.bf16.mxu0 0
        %2990 = vmatpush2.bf16.msra.mxu0 0
        %2991 = vmatprep.subr.bf16.mxu0 0
        %2992 = vmatpush2.bf16.msra.mxu0 0
        %2993 = vmatprep.subr.bf16.mxu0 0
        %2994 = vmatpush2.bf16.msra.mxu0 0
        %2995 = vmatprep.subr.bf16.mxu0 0
        %2996 = vmatpush2.bf16.msra.mxu0 0
        %2997 = vmatprep.mubr.bf16.mxu0 0
        %2998 = vmatmul.mubr.bf16.gmra.mxu0 %v2909
        %v2999 = vpop.f32.mrf.mxu0
        %v3000 = vadd.f32 0.0, %v2999
        %v3001 = vpop.f32.mrf.mxu0
        %v3002 = vpop.f32.mrf.mxu0
        %v3003 = vadd.f32 0.0, %v3002
        %v3004 = vpop.f32.mrf.mxu0
        %3005 = vmatprep.mubr.bf16.mxu0 0
        %3006 = vmatmul.mubr.bf16.gmra.mxu0 %v2910
        %v3007 = vpop.f32.mrf.mxu0
        %v3008 = vadd.f32 0.0, %v3007
        %v3009 = vpop.f32.mrf.mxu0
        %v3010 = vpop.f32.mrf.mxu0
        %v3011 = vadd.f32 0.0, %v3010
        %v3012 = vpop.f32.mrf.mxu0
        %3013 = vmatprep.mubr.bf16.mxu0 0
        %3014 = vmatmul.mubr.bf16.gmra.mxu0 %v2911
        %v3015 = vpop.f32.mrf.mxu0
        %v3016 = vadd.f32 0.0, %v3015
        %v3017 = vpop.f32.mrf.mxu0
        %v3018 = vpop.f32.mrf.mxu0
        %v3019 = vadd.f32 0.0, %v3018
        %v3020 = vpop.f32.mrf.mxu0
        %3021 = vmatprep.mubr.bf16.mxu0 0
        %3022 = vmatmul.mubr.bf16.gmra.mxu0 %v2912
        %v3023 = vpop.f32.mrf.mxu0
        %v3024 = vadd.f32 0.0, %v3023
        %v3025 = vpop.f32.mrf.mxu0
        %v3026 = vpop.f32.mrf.mxu0
        %v3027 = vadd.f32 0.0, %v3026
        %v3028 = vpop.f32.mrf.mxu0
        %3029 = vdwg.mxu0
        %v3030 = vadd.f32 %v2748, %v3000
        %v3031 = vadd.f32 %v2749, %v3003
        %v3032 = vadd.f32 %v2750, %v3008
        %v3033 = vadd.f32 %v2751, %v3011
        %v3034 = vadd.f32 %v2752, %v3016
        %v3035 = vadd.f32 %v2753, %v3019
        %v3036 = vadd.f32 %v2754, %v3024
        %v3037 = vadd.f32 %v2755, %v3027
        %v3038 = vld [vmem:[%s1895] sm:$0xe]
        %v3039 = vld [vmem:[%s1895 + $0x8] sm:$0xe]
        %v3040 = vld [vmem:[%s1895 + $0x10] sm:$0xe]
        %v3041 = vld [vmem:[%s1895 + $0x18] sm:$0xe]
        %v3042 = vld [vmem:[%s1895 + $0x20] sm:$0xe]
        %v3043 = vld [vmem:[%s1895 + $0x28] sm:$0xe]
        %v3044 = vld [vmem:[%s1895 + $0x30] sm:$0xe]
        %v3045 = vld [vmem:[%s1895 + $0x38] sm:$0xe]
        %v3062 = vrot.slane %v3038, 5
        %v3063 = vrot.slane %v3062, 4
        %v3064 = vrot.slane %v2757, 5
        %v3065 = vsel %vm2399, %v3063, %v3064
        %v3066 = vrot.slane %v3039, 5
        %v3067 = vrot.slane %v3066, 4
        %v3068 = vrot.slane %v2759, 5
        %v3069 = vsel %vm2399, %v3067, %v3068
        %v3070 = vrot.slane %v3040, 5
        %v3071 = vrot.slane %v3070, 4
        %v3072 = vrot.slane %v2761, 5
        %v3073 = vsel %vm2399, %v3071, %v3072
        %v3074 = vrot.slane %v3041, 5
        %v3075 = vrot.slane %v3074, 4
        %v3076 = vrot.slane %v2763, 5
        %v3077 = vsel %vm2399, %v3075, %v3076
        %v3078 = vrot.slane %v3042, 5
        %v3079 = vrot.slane %v3078, 4
        %v3080 = vrot.slane %v2765, 5
        %v3081 = vsel %vm2399, %v3079, %v3080
        %v3082 = vrot.slane %v3043, 5
        %v3083 = vrot.slane %v3082, 4
        %v3084 = vrot.slane %v2767, 5
        %v3085 = vsel %vm2399, %v3083, %v3084
        %v3086 = vrot.slane %v3044, 5
        %v3087 = vrot.slane %v3086, 4
        %v3088 = vrot.slane %v2769, 5
        %v3089 = vsel %vm2399, %v3087, %v3088
        %v3090 = vrot.slane %v3045, 5
        %v3091 = vrot.slane %v3090, 4
        %v3092 = vrot.slane %v2771, 5
        %v3093 = vsel %vm2399, %v3091, %v3092
        %s3094 = scalar_lea.vmem [#allocation9], 320
        %v3095 = vld [vmem:[%s3094] sm:$0xf]
        %v3096 = vld [vmem:[%s3094 + $0x4] sm:$0xf]
        %v3097 = vld [vmem:[%s3094 + $0x8] sm:$0xf]
        %v3098 = vld [vmem:[%s3094 + $0xc] sm:$0xf]
        %v3099 = vld [vmem:[%s3094 + $0x10] sm:$0xf]
        %v3100 = vld [vmem:[%s3094 + $0x14] sm:$0xf]
        %v3101 = vld [vmem:[%s3094 + $0x18] sm:$0xf]
        %v3102 = vld [vmem:[%s3094 + $0x1c] sm:$0xf]
        %v3103 = vld [vmem:[%s3094 + $0x20] sm:$0xf]
        %v3104 = vld [vmem:[%s3094 + $0x24] sm:$0xf]
        %v3105 = vld [vmem:[%s3094 + $0x28] sm:$0xf]
        %v3106 = vld [vmem:[%s3094 + $0x2c] sm:$0xf]
        %v3107 = vld [vmem:[%s3094 + $0x30] sm:$0xf]
        %v3108 = vld [vmem:[%s3094 + $0x34] sm:$0xf]
        %v3109 = vld [vmem:[%s3094 + $0x38] sm:$0xf]
        %v3110 = vld [vmem:[%s3094 + $0x3c] sm:$0xf]
        %v3111 = vunpack.c.l.b16 %v3065
        %v3112 = vunpack.c.l.b16 %v3069
        %v3113 = vunpack.c.l.b16 %v3073
        %v3114 = vunpack.c.l.b16 %v3077
        %v3115 = vunpack.c.l.b16 %v3081
        %v3116 = vunpack.c.l.b16 %v3085
        %v3117 = vunpack.c.l.b16 %v3089
        %v3118 = vunpack.c.l.b16 %v3093
        %v3119 = vpack.c.b16 %v3112, %v3111
        %v3120 = vpack.c.b16 %v3114, %v3113
        %v3121 = vpack.c.b16 %v3116, %v3115
        %v3122 = vpack.c.b16 %v3118, %v3117
        %v3143 = vunpack.c.l.b16 %v3095
        %v3144 = vunpack.c.l.b16 %v3096
        %v3145 = vunpack.c.l.b16 %v3097
        %v3146 = vunpack.c.l.b16 %v3098
        %v3147 = vunpack.c.l.b16 %v3099
        %v3148 = vunpack.c.l.b16 %v3100
        %v3149 = vunpack.c.l.b16 %v3101
        %v3150 = vunpack.c.l.b16 %v3102
        %v3151 = vunpack.c.l.b16 %v3103
        %v3152 = vunpack.c.l.b16 %v3104
        %v3153 = vunpack.c.l.b16 %v3105
        %v3154 = vunpack.c.l.b16 %v3106
        %v3155 = vunpack.c.l.b16 %v3107
        %v3156 = vunpack.c.l.b16 %v3108
        %v3157 = vunpack.c.l.b16 %v3109
        %v3158 = vunpack.c.l.b16 %v3110
        %v3159 = vpack.c.b16 %v3144, %v3143
        %v3160 = vpack.c.b16 %v3146, %v3145
        %v3161 = vpack.c.b16 %v3148, %v3147
        %v3162 = vpack.c.b16 %v3150, %v3149
        %v3163 = vpack.c.b16 %v3152, %v3151
        %v3164 = vpack.c.b16 %v3154, %v3153
        %v3165 = vpack.c.b16 %v3156, %v3155
        %v3166 = vpack.c.b16 %v3158, %v3157
        %3175 = vmatprep.subr.bf16.mxu0 0
        %3176 = vmatpush1.bf16.msra.mxu0 %v3166
        %3177 = vmatprep.subr.bf16.mxu0 0
        %3178 = vmatpush1.bf16.msra.mxu0 %v3165
        %3179 = vmatprep.subr.bf16.mxu0 0
        %3180 = vmatpush1.bf16.msra.mxu0 %v3164
        %3181 = vmatprep.subr.bf16.mxu0 0
        %3182 = vmatpush1.bf16.msra.mxu0 %v3163
        %3183 = vmatprep.subr.bf16.mxu0 0
        %3184 = vmatpush1.bf16.msra.mxu0 %v3162
        %3185 = vmatprep.subr.bf16.mxu0 0
        %3186 = vmatpush1.bf16.msra.mxu0 %v3161
        %3187 = vmatprep.subr.bf16.mxu0 0
        %3188 = vmatpush1.bf16.msra.mxu0 %v3160
        %3189 = vmatprep.subr.bf16.mxu0 0
        %3190 = vmatpush1.bf16.msra.mxu0 %v3159
        %3191 = vmatprep.subr.bf16.mxu0 0
        %3192 = vmatpush2.bf16.msra.mxu0 0
        %3193 = vmatprep.subr.bf16.mxu0 0
        %3194 = vmatpush2.bf16.msra.mxu0 0
        %3195 = vmatprep.subr.bf16.mxu0 0
        %3196 = vmatpush2.bf16.msra.mxu0 0
        %3197 = vmatprep.subr.bf16.mxu0 0
        %3198 = vmatpush2.bf16.msra.mxu0 0
        %3199 = vmatprep.subr.bf16.mxu0 0
        %3200 = vmatpush2.bf16.msra.mxu0 0
        %3201 = vmatprep.subr.bf16.mxu0 0
        %3202 = vmatpush2.bf16.msra.mxu0 0
        %3203 = vmatprep.subr.bf16.mxu0 0
        %3204 = vmatpush2.bf16.msra.mxu0 0
        %3205 = vmatprep.subr.bf16.mxu0 0
        %3206 = vmatpush2.bf16.msra.mxu0 0
        %3207 = vmatprep.mubr.bf16.mxu0 0
        %3208 = vmatmul.mubr.bf16.gmra.mxu0 %v3119
        %v3209 = vpop.f32.mrf.mxu0
        %v3210 = vadd.f32 0.0, %v3209
        %v3211 = vpop.f32.mrf.mxu0
        %v3212 = vpop.f32.mrf.mxu0
        %v3213 = vadd.f32 0.0, %v3212
        %v3214 = vpop.f32.mrf.mxu0
        %3215 = vmatprep.mubr.bf16.mxu0 0
        %3216 = vmatmul.mubr.bf16.gmra.mxu0 %v3120
        %v3217 = vpop.f32.mrf.mxu0
        %v3218 = vadd.f32 0.0, %v3217
        %v3219 = vpop.f32.mrf.mxu0
        %v3220 = vpop.f32.mrf.mxu0
        %v3221 = vadd.f32 0.0, %v3220
        %v3222 = vpop.f32.mrf.mxu0
        %3223 = vmatprep.mubr.bf16.mxu0 0
        %3224 = vmatmul.mubr.bf16.gmra.mxu0 %v3121
        %v3225 = vpop.f32.mrf.mxu0
        %v3226 = vadd.f32 0.0, %v3225
        %v3227 = vpop.f32.mrf.mxu0
        %v3228 = vpop.f32.mrf.mxu0
        %v3229 = vadd.f32 0.0, %v3228
        %v3230 = vpop.f32.mrf.mxu0
        %3231 = vmatprep.mubr.bf16.mxu0 0
        %3232 = vmatmul.mubr.bf16.gmra.mxu0 %v3122
        %v3233 = vpop.f32.mrf.mxu0
        %v3234 = vadd.f32 0.0, %v3233
        %v3235 = vpop.f32.mrf.mxu0
        %v3236 = vpop.f32.mrf.mxu0
        %v3237 = vadd.f32 0.0, %v3236
        %v3238 = vpop.f32.mrf.mxu0
        %3239 = vdwg.mxu0
        %v3240 = vadd.f32 %v3030, %v3210
        %v3241 = vadd.f32 %v3031, %v3213
        %v3242 = vadd.f32 %v3032, %v3218
        %v3243 = vadd.f32 %v3033, %v3221
        %v3244 = vadd.f32 %v3034, %v3226
        %v3245 = vadd.f32 %v3035, %v3229
        %v3246 = vadd.f32 %v3036, %v3234
        %v3247 = vadd.f32 %v3037, %v3237
        %s3248 = scalar_lea.vmem [#allocation3], 16
        %v3249 = vld [vmem:[%s3248] sm:$0xf]
        %v3250 = vld [vmem:[%s3248 + $0x8] sm:$0xf]
        %v3251 = vld [vmem:[%s3248 + $0x10] sm:$0xf]
        %v3252 = vld [vmem:[%s3248 + $0x18] sm:$0xf]
        %v3253 = vld [vmem:[%s3248 + $0x20] sm:$0xf]
        %v3254 = vld [vmem:[%s3248 + $0x28] sm:$0xf]
        %v3255 = vld [vmem:[%s3248 + $0x30] sm:$0xf]
        %v3256 = vld [vmem:[%s3248 + $0x38] sm:$0xf]
        %s3257 = scalar_lea.vmem [#allocation9], 384
        %v3258 = vld [vmem:[%s3257] sm:$0xf]
        %v3259 = vld [vmem:[%s3257 + $0x4] sm:$0xf]
        %v3260 = vld [vmem:[%s3257 + $0x8] sm:$0xf]
        %v3261 = vld [vmem:[%s3257 + $0xc] sm:$0xf]
        %v3262 = vld [vmem:[%s3257 + $0x10] sm:$0xf]
        %v3263 = vld [vmem:[%s3257 + $0x14] sm:$0xf]
        %v3264 = vld [vmem:[%s3257 + $0x18] sm:$0xf]
        %v3265 = vld [vmem:[%s3257 + $0x1c] sm:$0xf]
        %v3266 = vld [vmem:[%s3257 + $0x20] sm:$0xf]
        %v3267 = vld [vmem:[%s3257 + $0x24] sm:$0xf]
        %v3268 = vld [vmem:[%s3257 + $0x28] sm:$0xf]
        %v3269 = vld [vmem:[%s3257 + $0x2c] sm:$0xf]
        %v3270 = vld [vmem:[%s3257 + $0x30] sm:$0xf]
        %v3271 = vld [vmem:[%s3257 + $0x34] sm:$0xf]
        %v3272 = vld [vmem:[%s3257 + $0x38] sm:$0xf]
        %v3273 = vld [vmem:[%s3257 + $0x3c] sm:$0xf]
        %v3282 = vunpack.c.l.b16 %v3249
        %v3283 = vunpack.c.l.b16 %v3250
        %v3284 = vunpack.c.l.b16 %v3251
        %v3285 = vunpack.c.l.b16 %v3252
        %v3286 = vunpack.c.l.b16 %v3253
        %v3287 = vunpack.c.l.b16 %v3254
        %v3288 = vunpack.c.l.b16 %v3255
        %v3289 = vunpack.c.l.b16 %v3256
        %v3290 = vpack.c.b16 %v3283, %v3282
        %v3291 = vpack.c.b16 %v3285, %v3284
        %v3292 = vpack.c.b16 %v3287, %v3286
        %v3293 = vpack.c.b16 %v3289, %v3288
        %v3314 = vunpack.c.l.b16 %v3258
        %v3315 = vunpack.c.l.b16 %v3259
        %v3316 = vunpack.c.l.b16 %v3260
        %v3317 = vunpack.c.l.b16 %v3261
        %v3318 = vunpack.c.l.b16 %v3262
        %v3319 = vunpack.c.l.b16 %v3263
        %v3320 = vunpack.c.l.b16 %v3264
        %v3321 = vunpack.c.l.b16 %v3265
        %v3322 = vunpack.c.l.b16 %v3266
        %v3323 = vunpack.c.l.b16 %v3267
        %v3324 = vunpack.c.l.b16 %v3268
        %v3325 = vunpack.c.l.b16 %v3269
        %v3326 = vunpack.c.l.b16 %v3270
        %v3327 = vunpack.c.l.b16 %v3271
        %v3328 = vunpack.c.l.b16 %v3272
        %v3329 = vunpack.c.l.b16 %v3273
        %v3330 = vpack.c.b16 %v3315, %v3314
        %v3331 = vpack.c.b16 %v3317, %v3316
        %v3332 = vpack.c.b16 %v3319, %v3318
        %v3333 = vpack.c.b16 %v3321, %v3320
        %v3334 = vpack.c.b16 %v3323, %v3322
        %v3335 = vpack.c.b16 %v3325, %v3324
        %v3336 = vpack.c.b16 %v3327, %v3326
        %v3337 = vpack.c.b16 %v3329, %v3328
        %3346 = vmatprep.subr.bf16.mxu0 0
        %3347 = vmatpush1.bf16.msra.mxu0 %v3337
        %3348 = vmatprep.subr.bf16.mxu0 0
        %3349 = vmatpush1.bf16.msra.mxu0 %v3336
        %3350 = vmatprep.subr.bf16.mxu0 0
        %3351 = vmatpush1.bf16.msra.mxu0 %v3335
        %3352 = vmatprep.subr.bf16.mxu0 0
        %3353 = vmatpush1.bf16.msra.mxu0 %v3334
        %3354 = vmatprep.subr.bf16.mxu0 0
        %3355 = vmatpush1.bf16.msra.mxu0 %v3333
        %3356 = vmatprep.subr.bf16.mxu0 0
        %3357 = vmatpush1.bf16.msra.mxu0 %v3332
        %3358 = vmatprep.subr.bf16.mxu0 0
        %3359 = vmatpush1.bf16.msra.mxu0 %v3331
        %3360 = vmatprep.subr.bf16.mxu0 0
        %3361 = vmatpush1.bf16.msra.mxu0 %v3330
        %3362 = vmatprep.subr.bf16.mxu0 0
        %3363 = vmatpush2.bf16.msra.mxu0 0
        %3364 = vmatprep.subr.bf16.mxu0 0
        %3365 = vmatpush2.bf16.msra.mxu0 0
        %3366 = vmatprep.subr.bf16.mxu0 0
        %3367 = vmatpush2.bf16.msra.mxu0 0
        %3368 = vmatprep.subr.bf16.mxu0 0
        %3369 = vmatpush2.bf16.msra.mxu0 0
        %3370 = vmatprep.subr.bf16.mxu0 0
        %3371 = vmatpush2.bf16.msra.mxu0 0
        %3372 = vmatprep.subr.bf16.mxu0 0
        %3373 = vmatpush2.bf16.msra.mxu0 0
        %3374 = vmatprep.subr.bf16.mxu0 0
        %3375 = vmatpush2.bf16.msra.mxu0 0
        %3376 = vmatprep.subr.bf16.mxu0 0
        %3377 = vmatpush2.bf16.msra.mxu0 0
        %3378 = vmatprep.mubr.bf16.mxu0 0
        %3379 = vmatmul.mubr.bf16.gmra.mxu0 %v3290
        %v3380 = vpop.f32.mrf.mxu0
        %v3381 = vadd.f32 0.0, %v3380
        %v3382 = vpop.f32.mrf.mxu0
        %v3383 = vpop.f32.mrf.mxu0
        %v3384 = vadd.f32 0.0, %v3383
        %v3385 = vpop.f32.mrf.mxu0
        %3386 = vmatprep.mubr.bf16.mxu0 0
        %3387 = vmatmul.mubr.bf16.gmra.mxu0 %v3291
        %v3388 = vpop.f32.mrf.mxu0
        %v3389 = vadd.f32 0.0, %v3388
        %v3390 = vpop.f32.mrf.mxu0
        %v3391 = vpop.f32.mrf.mxu0
        %v3392 = vadd.f32 0.0, %v3391
        %v3393 = vpop.f32.mrf.mxu0
        %3394 = vmatprep.mubr.bf16.mxu0 0
        %3395 = vmatmul.mubr.bf16.gmra.mxu0 %v3292
        %v3396 = vpop.f32.mrf.mxu0
        %v3397 = vadd.f32 0.0, %v3396
        %v3398 = vpop.f32.mrf.mxu0
        %v3399 = vpop.f32.mrf.mxu0
        %v3400 = vadd.f32 0.0, %v3399
        %v3401 = vpop.f32.mrf.mxu0
        %3402 = vmatprep.mubr.bf16.mxu0 0
        %3403 = vmatmul.mubr.bf16.gmra.mxu0 %v3293
        %v3404 = vpop.f32.mrf.mxu0
        %v3405 = vadd.f32 0.0, %v3404
        %v3406 = vpop.f32.mrf.mxu0
        %v3407 = vpop.f32.mrf.mxu0
        %v3408 = vadd.f32 0.0, %v3407
        %v3409 = vpop.f32.mrf.mxu0
        %3410 = vdwg.mxu0
        %v3411 = vadd.f32 %v3240, %v3381
        %v3412 = vadd.f32 %v3241, %v3384
        %v3413 = vadd.f32 %v3242, %v3389
        %v3414 = vadd.f32 %v3243, %v3392
        %v3415 = vadd.f32 %v3244, %v3397
        %v3416 = vadd.f32 %v3245, %v3400
        %v3417 = vadd.f32 %v3246, %v3405
        %v3418 = vadd.f32 %v3247, %v3408
        %v3419 = vld [vmem:[%s3248] sm:$0xf]
        %v3420 = vld [vmem:[%s3248 + $0x4] sm:$0x1]
        %v3421 = vld [vmem:[%s3248 + $0x8] sm:$0xf]
        %v3422 = vld [vmem:[%s3248 + $0xc] sm:$0x1]
        %v3423 = vld [vmem:[%s3248 + $0x10] sm:$0xf]
        %v3424 = vld [vmem:[%s3248 + $0x14] sm:$0x1]
        %v3425 = vld [vmem:[%s3248 + $0x18] sm:$0xf]
        %v3426 = vld [vmem:[%s3248 + $0x1c] sm:$0x1]
        %v3427 = vld [vmem:[%s3248 + $0x20] sm:$0xf]
        %v3428 = vld [vmem:[%s3248 + $0x24] sm:$0x1]
        %v3429 = vld [vmem:[%s3248 + $0x28] sm:$0xf]
        %v3430 = vld [vmem:[%s3248 + $0x2c] sm:$0x1]
        %v3431 = vld [vmem:[%s3248 + $0x30] sm:$0xf]
        %v3432 = vld [vmem:[%s3248 + $0x34] sm:$0x1]
        %v3433 = vld [vmem:[%s3248 + $0x38] sm:$0xf]
        %v3434 = vld [vmem:[%s3248 + $0x3c] sm:$0x1]
        %v3436 = vshrl.u32 %v3419, 16
        %v3438 = vrot.slane %v3436, 4
        %v3439 = vshll.u32 %v3419, 16
        %v3441 = vrot.slane %v3439, 5
        %v3442 = vor.u32 %v3438, %v3441
        %v3443 = vrot.slane %v3442, 4
        %v3445 = vshll.u32 %v3420, 16
        %v3447 = vrot.slane %v3445, 5
        %v3448 = vsel %vm589, %v3443, %v3447
        %v3450 = vshrl.u32 %v3421, 16
        %v3452 = vrot.slane %v3450, 4
        %v3453 = vshll.u32 %v3421, 16
        %v3455 = vrot.slane %v3453, 5
        %v3456 = vor.u32 %v3452, %v3455
        %v3457 = vrot.slane %v3456, 4
        %v3459 = vshll.u32 %v3422, 16
        %v3461 = vrot.slane %v3459, 5
        %v3462 = vsel %vm589, %v3457, %v3461
        %v3464 = vshrl.u32 %v3423, 16
        %v3466 = vrot.slane %v3464, 4
        %v3467 = vshll.u32 %v3423, 16
        %v3469 = vrot.slane %v3467, 5
        %v3470 = vor.u32 %v3466, %v3469
        %v3471 = vrot.slane %v3470, 4
        %v3473 = vshll.u32 %v3424, 16
        %v3475 = vrot.slane %v3473, 5
        %v3476 = vsel %vm589, %v3471, %v3475
        %v3478 = vshrl.u32 %v3425, 16
        %v3480 = vrot.slane %v3478, 4
        %v3481 = vshll.u32 %v3425, 16
        %v3483 = vrot.slane %v3481, 5
        %v3484 = vor.u32 %v3480, %v3483
        %v3485 = vrot.slane %v3484, 4
        %v3487 = vshll.u32 %v3426, 16
        %v3489 = vrot.slane %v3487, 5
        %v3490 = vsel %vm589, %v3485, %v3489
        %v3492 = vshrl.u32 %v3427, 16
        %v3494 = vrot.slane %v3492, 4
        %v3495 = vshll.u32 %v3427, 16
        %v3497 = vrot.slane %v3495, 5
        %v3498 = vor.u32 %v3494, %v3497
        %v3499 = vrot.slane %v3498, 4
        %v3501 = vshll.u32 %v3428, 16
        %v3503 = vrot.slane %v3501, 5
        %v3504 = vsel %vm589, %v3499, %v3503
        %v3506 = vshrl.u32 %v3429, 16
        %v3508 = vrot.slane %v3506, 4
        %v3509 = vshll.u32 %v3429, 16
        %v3511 = vrot.slane %v3509, 5
        %v3512 = vor.u32 %v3508, %v3511
        %v3513 = vrot.slane %v3512, 4
        %v3515 = vshll.u32 %v3430, 16
        %v3517 = vrot.slane %v3515, 5
        %v3518 = vsel %vm589, %v3513, %v3517
        %v3520 = vshrl.u32 %v3431, 16
        %v3522 = vrot.slane %v3520, 4
        %v3523 = vshll.u32 %v3431, 16
        %v3525 = vrot.slane %v3523, 5
        %v3526 = vor.u32 %v3522, %v3525
        %v3527 = vrot.slane %v3526, 4
        %v3529 = vshll.u32 %v3432, 16
        %v3531 = vrot.slane %v3529, 5
        %v3532 = vsel %vm589, %v3527, %v3531
        %v3534 = vshrl.u32 %v3433, 16
        %v3536 = vrot.slane %v3534, 4
        %v3537 = vshll.u32 %v3433, 16
        %v3539 = vrot.slane %v3537, 5
        %v3540 = vor.u32 %v3536, %v3539
        %v3541 = vrot.slane %v3540, 4
        %v3543 = vshll.u32 %v3434, 16
        %v3545 = vrot.slane %v3543, 5
        %v3546 = vsel %vm589, %v3541, %v3545
        %s3547 = scalar_lea.vmem [#allocation9], 448
        %v3548 = vld [vmem:[%s3547] sm:$0xf]
        %v3549 = vld [vmem:[%s3547 + $0x4] sm:$0xf]
        %v3550 = vld [vmem:[%s3547 + $0x8] sm:$0xf]
        %v3551 = vld [vmem:[%s3547 + $0xc] sm:$0xf]
        %v3552 = vld [vmem:[%s3547 + $0x10] sm:$0xf]
        %v3553 = vld [vmem:[%s3547 + $0x14] sm:$0xf]
        %v3554 = vld [vmem:[%s3547 + $0x18] sm:$0xf]
        %v3555 = vld [vmem:[%s3547 + $0x1c] sm:$0xf]
        %v3556 = vld [vmem:[%s3547 + $0x20] sm:$0xf]
        %v3557 = vld [vmem:[%s3547 + $0x24] sm:$0xf]
        %v3558 = vld [vmem:[%s3547 + $0x28] sm:$0xf]
        %v3559 = vld [vmem:[%s3547 + $0x2c] sm:$0xf]
        %v3560 = vld [vmem:[%s3547 + $0x30] sm:$0xf]
        %v3561 = vld [vmem:[%s3547 + $0x34] sm:$0xf]
        %v3562 = vld [vmem:[%s3547 + $0x38] sm:$0xf]
        %v3563 = vld [vmem:[%s3547 + $0x3c] sm:$0xf]
        %v3564 = vunpack.c.l.b16 %v3448
        %v3565 = vunpack.c.l.b16 %v3462
        %v3566 = vunpack.c.l.b16 %v3476
        %v3567 = vunpack.c.l.b16 %v3490
        %v3568 = vunpack.c.l.b16 %v3504
        %v3569 = vunpack.c.l.b16 %v3518
        %v3570 = vunpack.c.l.b16 %v3532
        %v3571 = vunpack.c.l.b16 %v3546
        %v3572 = vpack.c.b16 %v3565, %v3564
        %v3573 = vpack.c.b16 %v3567, %v3566
        %v3574 = vpack.c.b16 %v3569, %v3568
        %v3575 = vpack.c.b16 %v3571, %v3570
        %v3596 = vunpack.c.l.b16 %v3548
        %v3597 = vunpack.c.l.b16 %v3549
        %v3598 = vunpack.c.l.b16 %v3550
        %v3599 = vunpack.c.l.b16 %v3551
        %v3600 = vunpack.c.l.b16 %v3552
        %v3601 = vunpack.c.l.b16 %v3553
        %v3602 = vunpack.c.l.b16 %v3554
        %v3603 = vunpack.c.l.b16 %v3555
        %v3604 = vunpack.c.l.b16 %v3556
        %v3605 = vunpack.c.l.b16 %v3557
        %v3606 = vunpack.c.l.b16 %v3558
        %v3607 = vunpack.c.l.b16 %v3559
        %v3608 = vunpack.c.l.b16 %v3560
        %v3609 = vunpack.c.l.b16 %v3561
        %v3610 = vunpack.c.l.b16 %v3562
        %v3611 = vunpack.c.l.b16 %v3563
        %v3612 = vpack.c.b16 %v3597, %v3596
        %v3613 = vpack.c.b16 %v3599, %v3598
        %v3614 = vpack.c.b16 %v3601, %v3600
        %v3615 = vpack.c.b16 %v3603, %v3602
        %v3616 = vpack.c.b16 %v3605, %v3604
        %v3617 = vpack.c.b16 %v3607, %v3606
        %v3618 = vpack.c.b16 %v3609, %v3608
        %v3619 = vpack.c.b16 %v3611, %v3610
        %3628 = vmatprep.subr.bf16.mxu0 0
        %3629 = vmatpush1.bf16.msra.mxu0 %v3619
        %3630 = vmatprep.subr.bf16.mxu0 0
        %3631 = vmatpush1.bf16.msra.mxu0 %v3618
        %3632 = vmatprep.subr.bf16.mxu0 0
        %3633 = vmatpush1.bf16.msra.mxu0 %v3617
        %3634 = vmatprep.subr.bf16.mxu0 0
        %3635 = vmatpush1.bf16.msra.mxu0 %v3616
        %3636 = vmatprep.subr.bf16.mxu0 0
        %3637 = vmatpush1.bf16.msra.mxu0 %v3615
        %3638 = vmatprep.subr.bf16.mxu0 0
        %3639 = vmatpush1.bf16.msra.mxu0 %v3614
        %3640 = vmatprep.subr.bf16.mxu0 0
        %3641 = vmatpush1.bf16.msra.mxu0 %v3613
        %3642 = vmatprep.subr.bf16.mxu0 0
        %3643 = vmatpush1.bf16.msra.mxu0 %v3612
        %3644 = vmatprep.subr.bf16.mxu0 0
        %3645 = vmatpush2.bf16.msra.mxu0 0
        %3646 = vmatprep.subr.bf16.mxu0 0
        %3647 = vmatpush2.bf16.msra.mxu0 0
        %3648 = vmatprep.subr.bf16.mxu0 0
        %3649 = vmatpush2.bf16.msra.mxu0 0
        %3650 = vmatprep.subr.bf16.mxu0 0
        %3651 = vmatpush2.bf16.msra.mxu0 0
        %3652 = vmatprep.subr.bf16.mxu0 0
        %3653 = vmatpush2.bf16.msra.mxu0 0
        %3654 = vmatprep.subr.bf16.mxu0 0
        %3655 = vmatpush2.bf16.msra.mxu0 0
        %3656 = vmatprep.subr.bf16.mxu0 0
        %3657 = vmatpush2.bf16.msra.mxu0 0
        %3658 = vmatprep.subr.bf16.mxu0 0
        %3659 = vmatpush2.bf16.msra.mxu0 0
        %3660 = vmatprep.mubr.bf16.mxu0 0
        %3661 = vmatmul.mubr.bf16.gmra.mxu0 %v3572
        %v3662 = vpop.f32.mrf.mxu0
        %v3663 = vadd.f32 0.0, %v3662
        %v3664 = vpop.f32.mrf.mxu0
        %v3665 = vpop.f32.mrf.mxu0
        %v3666 = vadd.f32 0.0, %v3665
        %v3667 = vpop.f32.mrf.mxu0
        %3668 = vmatprep.mubr.bf16.mxu0 0
        %3669 = vmatmul.mubr.bf16.gmra.mxu0 %v3573
        %v3670 = vpop.f32.mrf.mxu0
        %v3671 = vadd.f32 0.0, %v3670
        %v3672 = vpop.f32.mrf.mxu0
        %v3673 = vpop.f32.mrf.mxu0
        %v3674 = vadd.f32 0.0, %v3673
        %v3675 = vpop.f32.mrf.mxu0
        %3676 = vmatprep.mubr.bf16.mxu0 0
        %3677 = vmatmul.mubr.bf16.gmra.mxu0 %v3574
        %v3678 = vpop.f32.mrf.mxu0
        %v3679 = vadd.f32 0.0, %v3678
        %v3680 = vpop.f32.mrf.mxu0
        %v3681 = vpop.f32.mrf.mxu0
        %v3682 = vadd.f32 0.0, %v3681
        %v3683 = vpop.f32.mrf.mxu0
        %3684 = vmatprep.mubr.bf16.mxu0 0
        %3685 = vmatmul.mubr.bf16.gmra.mxu0 %v3575
        %v3686 = vpop.f32.mrf.mxu0
        %v3687 = vadd.f32 0.0, %v3686
        %v3688 = vpop.f32.mrf.mxu0
        %v3689 = vpop.f32.mrf.mxu0
        %v3690 = vadd.f32 0.0, %v3689
        %v3691 = vpop.f32.mrf.mxu0
        %3692 = vdwg.mxu0
        %v3693 = vadd.f32 %v3411, %v3663
        %v3694 = vadd.f32 %v3412, %v3666
        %v3695 = vadd.f32 %v3413, %v3671
        %v3696 = vadd.f32 %v3414, %v3674
        %v3697 = vadd.f32 %v3415, %v3679
        %v3698 = vadd.f32 %v3416, %v3682
        %v3699 = vadd.f32 %v3417, %v3687
        %v3700 = vadd.f32 %v3418, %v3690
        %v3701 = vld [vmem:[%s3248] sm:$0xe]
        %v3702 = vld [vmem:[%s3248 + $0x8] sm:$0xe]
        %v3703 = vld [vmem:[%s3248 + $0x10] sm:$0xe]
        %v3704 = vld [vmem:[%s3248 + $0x18] sm:$0xe]
        %v3705 = vld [vmem:[%s3248 + $0x20] sm:$0xe]
        %v3706 = vld [vmem:[%s3248 + $0x28] sm:$0xe]
        %v3707 = vld [vmem:[%s3248 + $0x30] sm:$0xe]
        %v3708 = vld [vmem:[%s3248 + $0x38] sm:$0xe]
        %v3725 = vrot.slane %v3701, 5
        %v3726 = vrot.slane %v3725, 4
        %v3727 = vrot.slane %v3420, 5
        %v3728 = vsel %vm2399, %v3726, %v3727
        %v3729 = vrot.slane %v3702, 5
        %v3730 = vrot.slane %v3729, 4
        %v3731 = vrot.slane %v3422, 5
        %v3732 = vsel %vm2399, %v3730, %v3731
        %v3733 = vrot.slane %v3703, 5
        %v3734 = vrot.slane %v3733, 4
        %v3735 = vrot.slane %v3424, 5
        %v3736 = vsel %vm2399, %v3734, %v3735
        %v3737 = vrot.slane %v3704, 5
        %v3738 = vrot.slane %v3737, 4
        %v3739 = vrot.slane %v3426, 5
        %v3740 = vsel %vm2399, %v3738, %v3739
        %v3741 = vrot.slane %v3705, 5
        %v3742 = vrot.slane %v3741, 4
        %v3743 = vrot.slane %v3428, 5
        %v3744 = vsel %vm2399, %v3742, %v3743
        %v3745 = vrot.slane %v3706, 5
        %v3746 = vrot.slane %v3745, 4
        %v3747 = vrot.slane %v3430, 5
        %v3748 = vsel %vm2399, %v3746, %v3747
        %v3749 = vrot.slane %v3707, 5
        %v3750 = vrot.slane %v3749, 4
        %v3751 = vrot.slane %v3432, 5
        %v3752 = vsel %vm2399, %v3750, %v3751
        %v3753 = vrot.slane %v3708, 5
        %v3754 = vrot.slane %v3753, 4
        %v3755 = vrot.slane %v3434, 5
        %v3756 = vsel %vm2399, %v3754, %v3755
        %s3757 = scalar_lea.vmem [#allocation9], 512
        %v3758 = vld [vmem:[%s3757] sm:$0xf]
        %v3759 = vld [vmem:[%s3757 + $0x4] sm:$0xf]
        %v3760 = vld [vmem:[%s3757 + $0x8] sm:$0xf]
        %v3761 = vld [vmem:[%s3757 + $0xc] sm:$0xf]
        %v3762 = vld [vmem:[%s3757 + $0x10] sm:$0xf]
        %v3763 = vld [vmem:[%s3757 + $0x14] sm:$0xf]
        %v3764 = vld [vmem:[%s3757 + $0x18] sm:$0xf]
        %v3765 = vld [vmem:[%s3757 + $0x1c] sm:$0xf]
        %v3766 = vld [vmem:[%s3757 + $0x20] sm:$0xf]
        %v3767 = vld [vmem:[%s3757 + $0x24] sm:$0xf]
        %v3768 = vld [vmem:[%s3757 + $0x28] sm:$0xf]
        %v3769 = vld [vmem:[%s3757 + $0x2c] sm:$0xf]
        %v3770 = vld [vmem:[%s3757 + $0x30] sm:$0xf]
        %v3771 = vld [vmem:[%s3757 + $0x34] sm:$0xf]
        %v3772 = vld [vmem:[%s3757 + $0x38] sm:$0xf]
        %v3773 = vld [vmem:[%s3757 + $0x3c] sm:$0xf]
        %v3774 = vunpack.c.l.b16 %v3728
        %v3775 = vunpack.c.l.b16 %v3732
        %v3776 = vunpack.c.l.b16 %v3736
        %v3777 = vunpack.c.l.b16 %v3740
        %v3778 = vunpack.c.l.b16 %v3744
        %v3779 = vunpack.c.l.b16 %v3748
        %v3780 = vunpack.c.l.b16 %v3752
        %v3781 = vunpack.c.l.b16 %v3756
        %v3782 = vpack.c.b16 %v3775, %v3774
        %v3783 = vpack.c.b16 %v3777, %v3776
        %v3784 = vpack.c.b16 %v3779, %v3778
        %v3785 = vpack.c.b16 %v3781, %v3780
        %v3806 = vunpack.c.l.b16 %v3758
        %v3807 = vunpack.c.l.b16 %v3759
        %v3808 = vunpack.c.l.b16 %v3760
        %v3809 = vunpack.c.l.b16 %v3761
        %v3810 = vunpack.c.l.b16 %v3762
        %v3811 = vunpack.c.l.b16 %v3763
        %v3812 = vunpack.c.l.b16 %v3764
        %v3813 = vunpack.c.l.b16 %v3765
        %v3814 = vunpack.c.l.b16 %v3766
        %v3815 = vunpack.c.l.b16 %v3767
        %v3816 = vunpack.c.l.b16 %v3768
        %v3817 = vunpack.c.l.b16 %v3769
        %v3818 = vunpack.c.l.b16 %v3770
        %v3819 = vunpack.c.l.b16 %v3771
        %v3820 = vunpack.c.l.b16 %v3772
        %v3821 = vunpack.c.l.b16 %v3773
        %v3822 = vpack.c.b16 %v3807, %v3806
        %v3823 = vpack.c.b16 %v3809, %v3808
        %v3824 = vpack.c.b16 %v3811, %v3810
        %v3825 = vpack.c.b16 %v3813, %v3812
        %v3826 = vpack.c.b16 %v3815, %v3814
        %v3827 = vpack.c.b16 %v3817, %v3816
        %v3828 = vpack.c.b16 %v3819, %v3818
        %v3829 = vpack.c.b16 %v3821, %v3820
        %3838 = vmatprep.subr.bf16.mxu0 0
        %3839 = vmatpush1.bf16.msra.mxu0 %v3829
        %3840 = vmatprep.subr.bf16.mxu0 0
        %3841 = vmatpush1.bf16.msra.mxu0 %v3828
        %3842 = vmatprep.subr.bf16.mxu0 0
        %3843 = vmatpush1.bf16.msra.mxu0 %v3827
        %3844 = vmatprep.subr.bf16.mxu0 0
        %3845 = vmatpush1.bf16.msra.mxu0 %v3826
        %3846 = vmatprep.subr.bf16.mxu0 0
        %3847 = vmatpush1.bf16.msra.mxu0 %v3825
        %3848 = vmatprep.subr.bf16.mxu0 0
        %3849 = vmatpush1.bf16.msra.mxu0 %v3824
        %3850 = vmatprep.subr.bf16.mxu0 0
        %3851 = vmatpush1.bf16.msra.mxu0 %v3823
        %3852 = vmatprep.subr.bf16.mxu0 0
        %3853 = vmatpush1.bf16.msra.mxu0 %v3822
        %3854 = vmatprep.subr.bf16.mxu0 0
        %3855 = vmatpush2.bf16.msra.mxu0 0
        %3856 = vmatprep.subr.bf16.mxu0 0
        %3857 = vmatpush2.bf16.msra.mxu0 0
        %3858 = vmatprep.subr.bf16.mxu0 0
        %3859 = vmatpush2.bf16.msra.mxu0 0
        %3860 = vmatprep.subr.bf16.mxu0 0
        %3861 = vmatpush2.bf16.msra.mxu0 0
        %3862 = vmatprep.subr.bf16.mxu0 0
        %3863 = vmatpush2.bf16.msra.mxu0 0
        %3864 = vmatprep.subr.bf16.mxu0 0
        %3865 = vmatpush2.bf16.msra.mxu0 0
        %3866 = vmatprep.subr.bf16.mxu0 0
        %3867 = vmatpush2.bf16.msra.mxu0 0
        %3868 = vmatprep.subr.bf16.mxu0 0
        %3869 = vmatpush2.bf16.msra.mxu0 0
        %3870 = vmatprep.mubr.bf16.mxu0 0
        %3871 = vmatmul.mubr.bf16.gmra.mxu0 %v3782
        %v3872 = vpop.f32.mrf.mxu0
        %v3873 = vadd.f32 0.0, %v3872
        %v3874 = vpop.f32.mrf.mxu0
        %v3875 = vpop.f32.mrf.mxu0
        %v3876 = vadd.f32 0.0, %v3875
        %v3877 = vpop.f32.mrf.mxu0
        %3878 = vmatprep.mubr.bf16.mxu0 0
        %3879 = vmatmul.mubr.bf16.gmra.mxu0 %v3783
        %v3880 = vpop.f32.mrf.mxu0
        %v3881 = vadd.f32 0.0, %v3880
        %v3882 = vpop.f32.mrf.mxu0
        %v3883 = vpop.f32.mrf.mxu0
        %v3884 = vadd.f32 0.0, %v3883
        %v3885 = vpop.f32.mrf.mxu0
        %3886 = vmatprep.mubr.bf16.mxu0 0
        %3887 = vmatmul.mubr.bf16.gmra.mxu0 %v3784
        %v3888 = vpop.f32.mrf.mxu0
        %v3889 = vadd.f32 0.0, %v3888
        %v3890 = vpop.f32.mrf.mxu0
        %v3891 = vpop.f32.mrf.mxu0
        %v3892 = vadd.f32 0.0, %v3891
        %v3893 = vpop.f32.mrf.mxu0
        %3894 = vmatprep.mubr.bf16.mxu0 0
        %3895 = vmatmul.mubr.bf16.gmra.mxu0 %v3785
        %v3896 = vpop.f32.mrf.mxu0
        %v3897 = vadd.f32 0.0, %v3896
        %v3898 = vpop.f32.mrf.mxu0
        %v3899 = vpop.f32.mrf.mxu0
        %v3900 = vadd.f32 0.0, %v3899
        %v3901 = vpop.f32.mrf.mxu0
        %3902 = vdwg.mxu0
        %v3903 = vadd.f32 %v3693, %v3873
        %v3904 = vadd.f32 %v3694, %v3876
        %v3905 = vadd.f32 %v3695, %v3881
        %v3906 = vadd.f32 %v3696, %v3884
        %v3907 = vadd.f32 %v3697, %v3889
        %v3908 = vadd.f32 %v3698, %v3892
        %v3909 = vadd.f32 %v3699, %v3897
        %v3910 = vadd.f32 %v3700, %v3900
        %v3911 = vld [vmem:[%s4] sm:$0x1]
        %v3913 = vlaneseq
        %v3914 = vshrl.u32 %v3913, 7
        %v3915 = vsub.s32 0, %v3914
        %v3916 = vrot.slane %v3911, %v3915
        %v3918 = vadd.f32 %v3903, %v3916
        %v3919 = vadd.f32 %v3904, %v3916
        %v3920 = vadd.f32 %v3905, %v3916
        %v3921 = vadd.f32 %v3906, %v3916
        %v3922 = vadd.f32 %v3907, %v3916
        %v3923 = vadd.f32 %v3908, %v3916
        %v3924 = vadd.f32 %v3909, %v3916
        %v3925 = vadd.f32 %v3910, %v3916
        %v3926 = vld [vmem:[%s5] sm:$0x3]
        %v3927 = vld [vmem:[%s6] sm:$0x1]
        %v3929 = vlaneseq
        %v3930 = vshrl.u32 %v3929, 7
        %v3931 = vsub.s32 0, %v3930
        %v3932 = vrot.slane %v3927, %v3931
        %v3942 = vunpack.c.l.b16 %v431
        %v3943 = vunpack.c.l.b16 %v432
        %v3944 = vunpack.c.l.b16 %v433
        %v3945 = vunpack.c.l.b16 %v434
        %v3946 = vunpack.c.l.b16 %v435
        %v3947 = vunpack.c.l.b16 %v436
        %v3948 = vunpack.c.l.b16 %v437
        %v3949 = vunpack.c.l.b16 %v438
        %v3950 = vpack.c.b16 %v3943, %v3942
        %v3951 = vpack.c.b16 %v3945, %v3944
        %v3952 = vpack.c.b16 %v3947, %v3946
        %v3953 = vpack.c.b16 %v3949, %v3948
        %v3955 = vsel %vm724, %v3950, 0
        %v3958 = vsel %vm724, %v3951, 0
        %v3961 = vsel %vm724, %v3952, 0
        %v3964 = vsel %vm724, %v3953, 0
        %v3967 = vsel %vm737, %v3926, 0
        %3969 = vmatprep.subr.bf16.mxu0 0
        %3970 = vmatpush1.bf16.msra.mxu0 0
        %3971 = vmatprep.subr.bf16.mxu0 0
        %3972 = vmatpush1.bf16.msra.mxu0 0
        %3973 = vmatprep.subr.bf16.mxu0 0
        %3974 = vmatpush1.bf16.msra.mxu0 0
        %3975 = vmatprep.subr.bf16.mxu0 0
        %3976 = vmatpush1.bf16.msra.mxu0 0
        %3977 = vmatprep.subr.bf16.mxu0 0
        %3978 = vmatpush1.bf16.msra.mxu0 0
        %3979 = vmatprep.subr.bf16.mxu0 0
        %3980 = vmatpush1.bf16.msra.mxu0 0
        %3981 = vmatprep.subr.bf16.mxu0 0
        %3982 = vmatpush1.bf16.msra.mxu0 0
        %3983 = vmatprep.subr.bf16.mxu0 0
        %3984 = vmatpush1.bf16.msra.mxu0 %v3967
        %3985 = vmatprep.subr.bf16.mxu0 0
        %3986 = vmatpush2.bf16.msra.mxu0 0
        %3987 = vmatprep.subr.bf16.mxu0 0
        %3988 = vmatpush2.bf16.msra.mxu0 0
        %3989 = vmatprep.subr.bf16.mxu0 0
        %3990 = vmatpush2.bf16.msra.mxu0 0
        %3991 = vmatprep.subr.bf16.mxu0 0
        %3992 = vmatpush2.bf16.msra.mxu0 0
        %3993 = vmatprep.subr.bf16.mxu0 0
        %3994 = vmatpush2.bf16.msra.mxu0 0
        %3995 = vmatprep.subr.bf16.mxu0 0
        %3996 = vmatpush2.bf16.msra.mxu0 0
        %3997 = vmatprep.subr.bf16.mxu0 0
        %3998 = vmatpush2.bf16.msra.mxu0 0
        %3999 = vmatprep.subr.bf16.mxu0 0
        %4000 = vmatpush2.bf16.msra.mxu0 0
        %4001 = vmatprep.mubr.bf16.mxu0 0
        %4002 = vmatmul.mubr.bf16.gmra.mxu0 %v3955
        %v4003 = vpop.f32.mrf.mxu0
        %v4004 = vadd.f32 %v3932, %v4003
        %v4005 = vpop.f32.mrf.mxu0
        %v4006 = vpop.f32.mrf.mxu0
        %v4007 = vadd.f32 %v3932, %v4006
        %v4008 = vpop.f32.mrf.mxu0
        %4009 = vmatprep.mubr.bf16.mxu0 0
        %4010 = vmatmul.mubr.bf16.gmra.mxu0 %v3958
        %v4011 = vpop.f32.mrf.mxu0
        %v4012 = vadd.f32 %v3932, %v4011
        %v4013 = vpop.f32.mrf.mxu0
        %v4014 = vpop.f32.mrf.mxu0
        %v4015 = vadd.f32 %v3932, %v4014
        %v4016 = vpop.f32.mrf.mxu0
        %4017 = vmatprep.mubr.bf16.mxu0 0
        %4018 = vmatmul.mubr.bf16.gmra.mxu0 %v3961
        %v4019 = vpop.f32.mrf.mxu0
        %v4020 = vadd.f32 %v3932, %v4019
        %v4021 = vpop.f32.mrf.mxu0
        %v4022 = vpop.f32.mrf.mxu0
        %v4023 = vadd.f32 %v3932, %v4022
        %v4024 = vpop.f32.mrf.mxu0
        %4025 = vmatprep.mubr.bf16.mxu0 0
        %4026 = vmatmul.mubr.bf16.gmra.mxu0 %v3964
        %v4027 = vpop.f32.mrf.mxu0
        %v4028 = vadd.f32 %v3932, %v4027
        %v4029 = vpop.f32.mrf.mxu0
        %v4030 = vpop.f32.mrf.mxu0
        %v4031 = vadd.f32 %v3932, %v4030
        %v4032 = vpop.f32.mrf.mxu0
        %4033 = vdwg.mxu0
        %v4034 = vadd.f32 %v3918, %v4004
        %v4035 = vadd.f32 %v3919, %v4007
        %v4036 = vadd.f32 %v3920, %v4012
        %v4037 = vadd.f32 %v3921, %v4015
        %v4038 = vadd.f32 %v3922, %v4020
        %v4039 = vadd.f32 %v3923, %v4023
        %v4040 = vadd.f32 %v3924, %v4028
        %v4041 = vadd.f32 %v3925, %v4031
        %v4042 = vmax.f32 %v4034, 0.0
        %v4043 = vmax.f32 %v4035, 0.0
        %v4044 = vmax.f32 %v4036, 0.0
        %v4045 = vmax.f32 %v4037, 0.0
        %v4046 = vmax.f32 %v4038, 0.0
        %v4047 = vmax.f32 %v4039, 0.0
        %v4048 = vmax.f32 %v4040, 0.0
        %v4049 = vmax.f32 %v4041, 0.0
        %4050 = vst [vmem:[%s325] sm:$0xff] %v4042
        %4051 = vst [vmem:[%s325 + $0x8] sm:$0xff] %v4043
        %4052 = vst [vmem:[%s325 + $0x10] sm:$0xff] %v4044
        %4053 = vst [vmem:[%s325 + $0x18] sm:$0xff] %v4045
        %4054 = vst [vmem:[%s325 + $0x20] sm:$0xff] %v4046
        %4055 = vst [vmem:[%s325 + $0x28] sm:$0xff] %v4047
        %4056 = vst [vmem:[%s325 + $0x30] sm:$0xff] %v4048
        %4057 = vst [vmem:[%s325 + $0x38] sm:$0xff] %v4049
        %s4058 = sand.u32 %s185, 1
        %s4059 = scalar_lea.sflag [#allocation6], %s4058
        %s4060 = sand.u32 %s185, 1
        %s4061 = smul.addr %s4060, 64
        %s4062 = scalar_lea.vmem [#allocation10], %s4061
        // Predicated region
        $region61: #{tpu_custom_call.1} parent=47 // pred_check
          %p4063 = pneg %p195
        $region62: #{tpu_custom_call.1} parent=47 // pred_check_branch
          %4065 = sbr.rel (%p4063) target = $region64
        $region63: #{tpu_custom_call.1} parent=47 // pred_region
          %s4067 = ssub.s32 1024, 1024
          %4068 = vsyncadd %s4059, %s4067
          %s4069 = smul.addr %s25, 8
          %s4070 = smul.addr %s4069, 128
          %s4071 = scalar_lea.hbm %s7, %s4070
          %s4072 = sshll.u32 %s4062, 4
          %s4073 = int_to_ptr.vmem [resolvable:$true] %s4072
          %4078 = dma.vmem_to_hbm [thread:$0]  %s4073, 1024, %s4071, %s4059, 128, 128, 8
        $region64: #{tpu_custom_call.1} parent=47 // pred_fallthru
          _
      $region48: #{tpu_custom_call.1} parent=5 // pred_fallthru
        _
      %p4079 = scmp.le.s32.totalorder 2, %s20
      // Predicated region
      $region65: #{tpu_custom_call.1} parent=5 // pred_check
        %p4080 = pneg %p4079
      $region66: #{tpu_custom_call.1} parent=5 // pred_check_branch
        %4082 = sbr.rel (%p4080) target = $region68
      $region67: #{tpu_custom_call.1} parent=5 // pred_region
        %s4083 = ssub.s32 %s20, 2
        // Predicated region
        $region69: #{tpu_custom_call.1} parent=67 // pred_check
          %p4084 = pneg %p201
        $region70: #{tpu_custom_call.1} parent=67 // pred_check_branch
          %4086 = sbr.rel (%p4084) target = $region72
        $region71: #{tpu_custom_call.1} parent=67 // pred_region
          %s4087 = sand.u32 %s186, 1
          %s4088 = scalar_lea.sflag [#allocation6], %s4087
          %s4089 = sand.u32 %s186, 1
          %s4090 = smul.addr %s4089, 64
          %s4091 = scalar_lea.vmem [#allocation10], %s4090
          %4092 = dma.done %s4088, 1024
        $region72: #{tpu_custom_call.1} parent=67 // pred_fallthru
          _
      $region68: #{tpu_custom_call.1} parent=5 // pred_fallthru
        _
    $region6: #{tpu_custom_call.1} parent=1 // loop_footer
      %s24 = sadd.s32 1, %s20
    $region7: #{tpu_custom_call.1} parent=1 // loop_footer_branch
      %19 = sbr.rel target = $region3
    $region8: #{tpu_custom_call.1} parent=1 // loop_exit
      _
    %4093 = vsyncpa [#allocation5], 1
    %s4094 = scalar_lea.sflag [#allocation5], 1
    %4095 = vsyncpa %s4094, 1
    %4096 = vsyncpa [#allocation8], 1
    %4097 = vsyncpa [#allocation6], 1
    %s4098 = scalar_lea.sflag [#allocation6], 1
    %4099 = vsyncpa %s4098, 1

</llo_original>
